<compile_context>
chip_gen: v6e
topology: v6e:2x2x1
jax: 0.10.0
libtpu: 0.0.40
codegen_flags: <defaults>
</compile_context>

<pallas_src>
import functools

import jax
import jax.numpy as jnp
from jax import lax
from jax.experimental import pallas as pl
from jax.experimental.pallas import tpu as pltpu


# Concrete feature-stack geometry (make_modules equivalent).
C1, C2 = 8, 16          # conv1 / conv2 output channels
K1, K2 = 5, 3           # conv kernel sizes
POOL_K, POOL_S = 3, 2   # maxpool kernel / stride

_LAYER_GEOM = [  # (kernel_size, stride, padding, dilation) for insize_from_outsize
    (K1, 1, 0, 1),
    (POOL_K, POOL_S, 0, 1),
    (K2, 1, 0, 1),
]


def insize_from_outsize(layers, outsize):
    """Replicates topaz insize_from_outsize over (k, s, p, d) descriptors."""
    for (k, s, p, d) in layers[::-1]:
        outsize = (outsize - 1) * s + 1 + d * (k - 1) - 2 * p
    return outsize


# ----------------------------------------------------------------------------
# Fused Pallas kernel: conv1+ReLU -> strided maxpool -> conv2+ReLU, per batch elem
# ----------------------------------------------------------------------------
def _resnet_fused_kernel(x_ref, w1_ref, b1_ref, w2_ref, b2_ref, o_ref, *,
                         k1, c1, kp, sp, k2, c2):
    """x_ref: (1,1,H,W) VMEM (NCHW, W on lanes)
       w1_ref: (k1*k1, c1) SMEM scalars     b1_ref: (c1,) SMEM scalars
       w2_ref: (c2, k2*k2*c1) VMEM (im2col) b2_ref: (c2, 1) VMEM
       o_ref:  (1, c2, Ho2*Wo2) VMEM (lane-flat spatial)."""
    H, W = x_ref.shape[2], x_ref.shape[3]
    Ho1, Wo1 = H - k1 + 1, W - k1 + 1
    Hp, Wp = (Ho1 - kp) // sp + 1, (Wo1 - kp) // sp + 1
    Ho2, Wo2 = Hp - k2 + 1, Wp - k2 + 1

    # ---- conv1 (Cin=1) as VPU multiply-add stencil; W stays on the lane axis ----
    x2d = x_ref[0, 0]                                          # (H, W)
    patches = [x2d[ky:ky + Ho1, kx:kx + Wo1]
               for ky in range(k1) for kx in range(k1)]        # k1*k1 shifted views
    chans = []
    for c in range(c1):
        acc = jnp.zeros((Ho1, Wo1), jnp.float32)
        for t in range(k1 * k1):
            acc = acc + w1_ref[t, c] * patches[t]              # scalar * (Ho1, Wo1)
        chans.append(jnp.maximum(acc + b1_ref[c], 0.0))
    a1 = jnp.stack(chans, axis=0)                              # (c1, Ho1, Wo1)

    # ---- maxpool kp x kp, stride sp: only the strided output positions are computed ----
    vrows = []
    for i in range(Hp):                                        # vertical window max
        r = a1[:, sp * i, :]
        for ky in range(1, kp):
            r = jnp.maximum(r, a1[:, sp * i + ky, :])
        vrows.append(r)                                        # (c1, Wo1)
    vm = jnp.stack(vrows, axis=1)                              # (c1, Hp, Wo1)
    pcols = []
    for j in range(Wp):                                        # horizontal window max
        col = vm[:, :, sp * j]
        for kx in range(1, kp):
            col = jnp.maximum(col, vm[:, :, sp * j + kx])
        pcols.append(col)                                      # (c1, Hp)
    pooled = jnp.stack(pcols, axis=2)                          # (c1, Hp, Wp)

    # ---- conv2 as im2col + ONE MXU matmul (contraction = k2*k2*c1) ----
    blocks = []
    for dy in range(k2):
        for dx in range(k2):
            win = pooled[:, dy:dy + Ho2, dx:dx + Wo2]          # (c1, Ho2, Wo2)
            flat = jnp.concatenate([win[:, r, :] for r in range(Ho2)], axis=1)
            blocks.append(flat)                                # (c1, Ho2*Wo2)
    pmat = jnp.concatenate(blocks, axis=0)                     # (k2*k2*c1, Ho2*Wo2)
    out2 = jnp.dot(w2_ref[...], pmat, preferred_element_type=jnp.float32)
    out2 = jnp.maximum(out2 + b2_ref[...], 0.0)                # (c2, Ho2*Wo2)
    o_ref[0] = out2


# ----------------------------------------------------------------------------
# pallas_call wrapper (NCHW in, NCHW out; weights pre-packed once)
# ----------------------------------------------------------------------------
def _prep_params(params):
    """Torch OIHW weights -> kernel layouts (done once; tiny weight-only reshapes)."""
    w1 = params["w1"].astype(jnp.float32)                      # (C1, 1, K1, K1)
    w2 = params["w2"].astype(jnp.float32)                      # (C2, C1, K2, K2)
    w1_tap = jnp.transpose(w1[:, 0], (1, 2, 0)).reshape(K1 * K1, C1)       # (taps, C1)
    w2_mat = jnp.transpose(w2, (0, 2, 3, 1)).reshape(C2, K2 * K2 * C1)     # im2col
    b1 = params["b1"].astype(jnp.float32)                      # (C1,)
    b2 = params["b2"].astype(jnp.float32).reshape(C2, 1)       # (C2, 1)
    return w1_tap, b1, w2_mat, b2


def resnet_features_fused(x4, w1_tap, b1, w2_mat, b2):
    B, Cin, H, W = x4.shape
    assert Cin == 1
    Ho1, Wo1 = H - K1 + 1, W - K1 + 1
    Hp, Wp = (Ho1 - POOL_K) // POOL_S + 1, (Wo1 - POOL_K) // POOL_S + 1
    Ho2, Wo2 = Hp - K2 + 1, Wp - K2 + 1

    kernel = functools.partial(_resnet_fused_kernel, k1=K1, c1=C1,
                               kp=POOL_K, sp=POOL_S, k2=K2, c2=C2)
    out = pl.pallas_call(
        kernel,
        out_shape=jax.ShapeDtypeStruct((B, C2, Ho2 * Wo2), jnp.float32),
        grid=(B,),
        in_specs=[
            pl.BlockSpec((1, 1, H, W), lambda b: (b, 0, 0, 0)),
            pl.BlockSpec(memory_space=pltpu.MemorySpace.SMEM),       # conv1 weights
            pl.BlockSpec(memory_space=pltpu.MemorySpace.SMEM),       # conv1 bias
            pl.BlockSpec((C2, K2 * K2 * C1), lambda b: (0, 0)),      # conv2 im2col weights
            pl.BlockSpec((C2, 1), lambda b: (0, 0)),                 # conv2 bias
        ],
        out_specs=pl.BlockSpec((1, C2, Ho2 * Wo2), lambda b: (b, 0, 0)),
        compiler_params=pltpu.CompilerParams(
            dimension_semantics=("parallel",)),
    )(x4.astype(jnp.float32), w1_tap, b1, w2_mat, b2)
    return out.reshape(B, C2, Ho2, Wo2)                        # free reshape, no transpose


def resnet_forward(x, params, *, dims=2, pad=False):
    """Matches ResNet.forward: unsqueeze -> (optional) pad -> features."""
    if x.ndim < dims + 2:
        x = x[:, None]                                         # like x.unsqueeze(1)
    if pad:
        p = insize_from_outsize(_LAYER_GEOM, 1) // 2           # self.width // 2
        x = jnp.pad(x, ((0, 0), (0, 0), (p, p), (p, p)))
    w1_tap, b1, w2_mat, b2 = _prep_params(params)
    return resnet_features_fused(x, w1_tap, b1, w2_mat, b2)


# ----------------------------------------------------------------------------
# Pure-JAX reference (lax.conv / reduce_window) for validation
# ----------------------------------------------------------------------------
def resnet_forward_ref(x, params, *, dims=2, pad=False):
    if x.ndim < dims + 2:
        x = x[:, None]
    if pad:
        p = insize_from_outsize(_LAYER_GEOM, 1) // 2
        x = jnp.pad(x, ((0, 0), (0, 0), (p, p), (p, p)))
    dn = ("NCHW", "OIHW", "NCHW")
    y = lax.conv_general_dilated(x, params["w1"], (1, 1), "VALID",
                                 dimension_numbers=dn)
    y = jnp.maximum(y + params["b1"][None, :, None, None], 0.0)
    y = lax.reduce_window(y, -jnp.inf, lax.max,
                          (1, 1, POOL_K, POOL_K), (1, 1, POOL_S, POOL_S), "VALID")
    y = lax.conv_general_dilated(y, params["w2"], (1, 1), "VALID",
                                 dimension_numbers=dn)
    y = jnp.maximum(y + params["b2"][None, :, None, None], 0.0)
    return y


def init_params(key):
    k1, k2, k3, k4 = jax.random.split(key, 4)
    return {  # torch OIHW conv weight layout
        "w1": 0.1 * jax.random.normal(k1, (C1, 1, K1, K1), jnp.float32),
        "b1": 0.1 * jax.random.normal(k2, (C1,), jnp.float32),
        "w2": 0.1 * jax.random.normal(k3, (C2, C1, K2, K2), jnp.float32),
        "b2": 0.1 * jax.random.normal(k4, (C2,), jnp.float32),
    }


if __name__ == "__main__":
    key = jax.random.PRNGKey(0)
    kx, kp = jax.random.split(key)
    params = init_params(kp)

    # Single-channel micrograph-style input (B, H, W); forward unsqueezes to NCHW.
    x = jax.random.normal(kx, (2, 16, 16), jnp.float32)

    out = jax.block_until_ready(jax.jit(resnet_forward)(x, params))
    ref = jax.block_until_ready(resnet_forward_ref(x, params))

    assert out.shape == (2, C2, 3, 3), out.shape
    assert jnp.allclose(out, ref, rtol=1e-4, atol=1e-4), float(
        jnp.max(jnp.abs(out - ref)))
    print("KERNEL_OK")
</pallas_src>

<mosaic_0001>
module attributes {stable_mosaic.version = 11 : i64} {
  func.func @_resnet_fused_kernel(%arg0: i32, %arg1: memref<1x1x16x16xf32, #tpu.memory_space<vmem>>, %arg2: memref<25x8xf32, #tpu.memory_space<smem>>, %arg3: memref<8xf32, #tpu.memory_space<smem>>, %arg4: memref<16x72xf32, #tpu.memory_space<vmem>>, %arg5: memref<16x1xf32, #tpu.memory_space<vmem>>, %arg6: memref<1x16x9xf32, #tpu.memory_space<vmem>>) attributes {dimension_semantics = [#tpu.dimension_semantics<parallel>], iteration_bounds = array<i64: 2>, scalar_prefetch = 0 : i64, scratch_operands = 0 : i64, tpu.core_type = #tpu.core_type<tc>, window_params = [{transform_indices = @transform_0, window_bounds = array<i64: 1, 1, 16, 16>}, {transform_indices = @transform_1, window_bounds = array<i64: 25, 8>}, {transform_indices = @transform_2, window_bounds = array<i64: 8>}, {pipeline_mode = #tpu.pipeline_mode<synchronous>, transform_indices = @transform_3, window_bounds = array<i64: 16, 72>}, {pipeline_mode = #tpu.pipeline_mode<synchronous>, transform_indices = @transform_4, window_bounds = array<i64: 16, 1>}, {transform_indices = @transform_5, window_bounds = array<i64: 1, 16, 9>}]} {
    %c0 = arith.constant 0 : index
    %c0_0 = arith.constant 0 : index
    %c0_1 = arith.constant 0 : index
    %c0_2 = arith.constant 0 : index
    %0 = vector.load %arg1[%c0, %c0_0, %c0_1, %c0_2] : memref<1x1x16x16xf32, #tpu.memory_space<vmem>>, vector<1x1x16x16xf32>
    %1 = vector.shape_cast %0 : vector<1x1x16x16xf32> to vector<16x16xf32>
    %2 = vector.extract_strided_slice %1 {offsets = [0, 0], sizes = [12, 12], strides = [1, 1]} : vector<16x16xf32> to vector<12x12xf32>
    %3 = vector.extract_strided_slice %1 {offsets = [0, 1], sizes = [12, 12], strides = [1, 1]} : vector<16x16xf32> to vector<12x12xf32>
    %4 = vector.extract_strided_slice %1 {offsets = [0, 2], sizes = [12, 12], strides = [1, 1]} : vector<16x16xf32> to vector<12x12xf32>
    %5 = vector.extract_strided_slice %1 {offsets = [0, 3], sizes = [12, 12], strides = [1, 1]} : vector<16x16xf32> to vector<12x12xf32>
    %6 = vector.extract_strided_slice %1 {offsets = [0, 4], sizes = [12, 12], strides = [1, 1]} : vector<16x16xf32> to vector<12x12xf32>
    %7 = vector.extract_strided_slice %1 {offsets = [1, 0], sizes = [12, 12], strides = [1, 1]} : vector<16x16xf32> to vector<12x12xf32>
    %8 = vector.extract_strided_slice %1 {offsets = [1, 1], sizes = [12, 12], strides = [1, 1]} : vector<16x16xf32> to vector<12x12xf32>
    %9 = vector.extract_strided_slice %1 {offsets = [1, 2], sizes = [12, 12], strides = [1, 1]} : vector<16x16xf32> to vector<12x12xf32>
    %10 = vector.extract_strided_slice %1 {offsets = [1, 3], sizes = [12, 12], strides = [1, 1]} : vector<16x16xf32> to vector<12x12xf32>
    %11 = vector.extract_strided_slice %1 {offsets = [1, 4], sizes = [12, 12], strides = [1, 1]} : vector<16x16xf32> to vector<12x12xf32>
    %12 = vector.extract_strided_slice %1 {offsets = [2, 0], sizes = [12, 12], strides = [1, 1]} : vector<16x16xf32> to vector<12x12xf32>
    %13 = vector.extract_strided_slice %1 {offsets = [2, 1], sizes = [12, 12], strides = [1, 1]} : vector<16x16xf32> to vector<12x12xf32>
    %14 = vector.extract_strided_slice %1 {offsets = [2, 2], sizes = [12, 12], strides = [1, 1]} : vector<16x16xf32> to vector<12x12xf32>
    %15 = vector.extract_strided_slice %1 {offsets = [2, 3], sizes = [12, 12], strides = [1, 1]} : vector<16x16xf32> to vector<12x12xf32>
    %16 = vector.extract_strided_slice %1 {offsets = [2, 4], sizes = [12, 12], strides = [1, 1]} : vector<16x16xf32> to vector<12x12xf32>
    %17 = vector.extract_strided_slice %1 {offsets = [3, 0], sizes = [12, 12], strides = [1, 1]} : vector<16x16xf32> to vector<12x12xf32>
    %18 = vector.extract_strided_slice %1 {offsets = [3, 1], sizes = [12, 12], strides = [1, 1]} : vector<16x16xf32> to vector<12x12xf32>
    %19 = vector.extract_strided_slice %1 {offsets = [3, 2], sizes = [12, 12], strides = [1, 1]} : vector<16x16xf32> to vector<12x12xf32>
    %20 = vector.extract_strided_slice %1 {offsets = [3, 3], sizes = [12, 12], strides = [1, 1]} : vector<16x16xf32> to vector<12x12xf32>
    %21 = vector.extract_strided_slice %1 {offsets = [3, 4], sizes = [12, 12], strides = [1, 1]} : vector<16x16xf32> to vector<12x12xf32>
    %22 = vector.extract_strided_slice %1 {offsets = [4, 0], sizes = [12, 12], strides = [1, 1]} : vector<16x16xf32> to vector<12x12xf32>
    %23 = vector.extract_strided_slice %1 {offsets = [4, 1], sizes = [12, 12], strides = [1, 1]} : vector<16x16xf32> to vector<12x12xf32>
    %24 = vector.extract_strided_slice %1 {offsets = [4, 2], sizes = [12, 12], strides = [1, 1]} : vector<16x16xf32> to vector<12x12xf32>
    %25 = vector.extract_strided_slice %1 {offsets = [4, 3], sizes = [12, 12], strides = [1, 1]} : vector<16x16xf32> to vector<12x12xf32>
    %26 = vector.extract_strided_slice %1 {offsets = [4, 4], sizes = [12, 12], strides = [1, 1]} : vector<16x16xf32> to vector<12x12xf32>
    %cst = arith.constant 0.000000e+00 : f32
    %27 = vector.broadcast %cst : f32 to vector<12x12xf32>
    %c0_3 = arith.constant 0 : index
    %c0_4 = arith.constant 0 : index
    %28 = memref.load %arg2[%c0_3, %c0_4] : memref<25x8xf32, #tpu.memory_space<smem>>
    %29 = vector.broadcast %28 : f32 to vector<12x12xf32>
    %30 = arith.mulf %29, %2 : vector<12x12xf32>
    %31 = arith.addf %27, %30 : vector<12x12xf32>
    %c1 = arith.constant 1 : index
    %c0_5 = arith.constant 0 : index
    %32 = memref.load %arg2[%c1, %c0_5] : memref<25x8xf32, #tpu.memory_space<smem>>
    %33 = vector.broadcast %32 : f32 to vector<12x12xf32>
    %34 = arith.mulf %33, %3 : vector<12x12xf32>
    %35 = arith.addf %31, %34 : vector<12x12xf32>
    %c2 = arith.constant 2 : index
    %c0_6 = arith.constant 0 : index
    %36 = memref.load %arg2[%c2, %c0_6] : memref<25x8xf32, #tpu.memory_space<smem>>
    %37 = vector.broadcast %36 : f32 to vector<12x12xf32>
    %38 = arith.mulf %37, %4 : vector<12x12xf32>
    %39 = arith.addf %35, %38 : vector<12x12xf32>
    %c3 = arith.constant 3 : index
    %c0_7 = arith.constant 0 : index
    %40 = memref.load %arg2[%c3, %c0_7] : memref<25x8xf32, #tpu.memory_space<smem>>
    %41 = vector.broadcast %40 : f32 to vector<12x12xf32>
    %42 = arith.mulf %41, %5 : vector<12x12xf32>
    %43 = arith.addf %39, %42 : vector<12x12xf32>
    %c4 = arith.constant 4 : index
    %c0_8 = arith.constant 0 : index
    %44 = memref.load %arg2[%c4, %c0_8] : memref<25x8xf32, #tpu.memory_space<smem>>
    %45 = vector.broadcast %44 : f32 to vector<12x12xf32>
    %46 = arith.mulf %45, %6 : vector<12x12xf32>
    %47 = arith.addf %43, %46 : vector<12x12xf32>
    %c5 = arith.constant 5 : index
    %c0_9 = arith.constant 0 : index
    %48 = memref.load %arg2[%c5, %c0_9] : memref<25x8xf32, #tpu.memory_space<smem>>
    %49 = vector.broadcast %48 : f32 to vector<12x12xf32>
    %50 = arith.mulf %49, %7 : vector<12x12xf32>
    %51 = arith.addf %47, %50 : vector<12x12xf32>
    %c6 = arith.constant 6 : index
    %c0_10 = arith.constant 0 : index
    %52 = memref.load %arg2[%c6, %c0_10] : memref<25x8xf32, #tpu.memory_space<smem>>
    %53 = vector.broadcast %52 : f32 to vector<12x12xf32>
    %54 = arith.mulf %53, %8 : vector<12x12xf32>
    %55 = arith.addf %51, %54 : vector<12x12xf32>
    %c7 = arith.constant 7 : index
    %c0_11 = arith.constant 0 : index
    %56 = memref.load %arg2[%c7, %c0_11] : memref<25x8xf32, #tpu.memory_space<smem>>
    %57 = vector.broadcast %56 : f32 to vector<12x12xf32>
    %58 = arith.mulf %57, %9 : vector<12x12xf32>
    %59 = arith.addf %55, %58 : vector<12x12xf32>
    %c8 = arith.constant 8 : index
    %c0_12 = arith.constant 0 : index
    %60 = memref.load %arg2[%c8, %c0_12] : memref<25x8xf32, #tpu.memory_space<smem>>
    %61 = vector.broadcast %60 : f32 to vector<12x12xf32>
    %62 = arith.mulf %61, %10 : vector<12x12xf32>
    %63 = arith.addf %59, %62 : vector<12x12xf32>
    %c9 = arith.constant 9 : index
    %c0_13 = arith.constant 0 : index
    %64 = memref.load %arg2[%c9, %c0_13] : memref<25x8xf32, #tpu.memory_space<smem>>
    %65 = vector.broadcast %64 : f32 to vector<12x12xf32>
    %66 = arith.mulf %65, %11 : vector<12x12xf32>
    %67 = arith.addf %63, %66 : vector<12x12xf32>
    %c10 = arith.constant 10 : index
    %c0_14 = arith.constant 0 : index
    %68 = memref.load %arg2[%c10, %c0_14] : memref<25x8xf32, #tpu.memory_space<smem>>
    %69 = vector.broadcast %68 : f32 to vector<12x12xf32>
    %70 = arith.mulf %69, %12 : vector<12x12xf32>
    %71 = arith.addf %67, %70 : vector<12x12xf32>
    %c11 = arith.constant 11 : index
    %c0_15 = arith.constant 0 : index
    %72 = memref.load %arg2[%c11, %c0_15] : memref<25x8xf32, #tpu.memory_space<smem>>
    %73 = vector.broadcast %72 : f32 to vector<12x12xf32>
    %74 = arith.mulf %73, %13 : vector<12x12xf32>
    %75 = arith.addf %71, %74 : vector<12x12xf32>
    %c12 = arith.constant 12 : index
    %c0_16 = arith.constant 0 : index
    %76 = memref.load %arg2[%c12, %c0_16] : memref<25x8xf32, #tpu.memory_space<smem>>
    %77 = vector.broadcast %76 : f32 to vector<12x12xf32>
    %78 = arith.mulf %77, %14 : vector<12x12xf32>
    %79 = arith.addf %75, %78 : vector<12x12xf32>
    %c13 = arith.constant 13 : index
    %c0_17 = arith.constant 0 : index
    %80 = memref.load %arg2[%c13, %c0_17] : memref<25x8xf32, #tpu.memory_space<smem>>
    %81 = vector.broadcast %80 : f32 to vector<12x12xf32>
    %82 = arith.mulf %81, %15 : vector<12x12xf32>
    %83 = arith.addf %79, %82 : vector<12x12xf32>
    %c14 = arith.constant 14 : index
    %c0_18 = arith.constant 0 : index
    %84 = memref.load %arg2[%c14, %c0_18] : memref<25x8xf32, #tpu.memory_space<smem>>
    %85 = vector.broadcast %84 : f32 to vector<12x12xf32>
    %86 = arith.mulf %85, %16 : vector<12x12xf32>
    %87 = arith.addf %83, %86 : vector<12x12xf32>
    %c15 = arith.constant 15 : index
    %c0_19 = arith.constant 0 : index
    %88 = memref.load %arg2[%c15, %c0_19] : memref<25x8xf32, #tpu.memory_space<smem>>
    %89 = vector.broadcast %88 : f32 to vector<12x12xf32>
    %90 = arith.mulf %89, %17 : vector<12x12xf32>
    %91 = arith.addf %87, %90 : vector<12x12xf32>
    %c16 = arith.constant 16 : index
    %c0_20 = arith.constant 0 : index
    %92 = memref.load %arg2[%c16, %c0_20] : memref<25x8xf32, #tpu.memory_space<smem>>
    %93 = vector.broadcast %92 : f32 to vector<12x12xf32>
    %94 = arith.mulf %93, %18 : vector<12x12xf32>
    %95 = arith.addf %91, %94 : vector<12x12xf32>
    %c17 = arith.constant 17 : index
    %c0_21 = arith.constant 0 : index
    %96 = memref.load %arg2[%c17, %c0_21] : memref<25x8xf32, #tpu.memory_space<smem>>
    %97 = vector.broadcast %96 : f32 to vector<12x12xf32>
    %98 = arith.mulf %97, %19 : vector<12x12xf32>
    %99 = arith.addf %95, %98 : vector<12x12xf32>
    %c18 = arith.constant 18 : index
    %c0_22 = arith.constant 0 : index
    %100 = memref.load %arg2[%c18, %c0_22] : memref<25x8xf32, #tpu.memory_space<smem>>
    %101 = vector.broadcast %100 : f32 to vector<12x12xf32>
    %102 = arith.mulf %101, %20 : vector<12x12xf32>
    %103 = arith.addf %99, %102 : vector<12x12xf32>
    %c19 = arith.constant 19 : index
    %c0_23 = arith.constant 0 : index
    %104 = memref.load %arg2[%c19, %c0_23] : memref<25x8xf32, #tpu.memory_space<smem>>
    %105 = vector.broadcast %104 : f32 to vector<12x12xf32>
    %106 = arith.mulf %105, %21 : vector<12x12xf32>
    %107 = arith.addf %103, %106 : vector<12x12xf32>
    %c20 = arith.constant 20 : index
    %c0_24 = arith.constant 0 : index
    %108 = memref.load %arg2[%c20, %c0_24] : memref<25x8xf32, #tpu.memory_space<smem>>
    %109 = vector.broadcast %108 : f32 to vector<12x12xf32>
    %110 = arith.mulf %109, %22 : vector<12x12xf32>
    %111 = arith.addf %107, %110 : vector<12x12xf32>
    %c21 = arith.constant 21 : index
    %c0_25 = arith.constant 0 : index
    %112 = memref.load %arg2[%c21, %c0_25] : memref<25x8xf32, #tpu.memory_space<smem>>
    %113 = vector.broadcast %112 : f32 to vector<12x12xf32>
    %114 = arith.mulf %113, %23 : vector<12x12xf32>
    %115 = arith.addf %111, %114 : vector<12x12xf32>
    %c22 = arith.constant 22 : index
    %c0_26 = arith.constant 0 : index
    %116 = memref.load %arg2[%c22, %c0_26] : memref<25x8xf32, #tpu.memory_space<smem>>
    %117 = vector.broadcast %116 : f32 to vector<12x12xf32>
    %118 = arith.mulf %117, %24 : vector<12x12xf32>
    %119 = arith.addf %115, %118 : vector<12x12xf32>
    %c23 = arith.constant 23 : index
    %c0_27 = arith.constant 0 : index
    %120 = memref.load %arg2[%c23, %c0_27] : memref<25x8xf32, #tpu.memory_space<smem>>
    %121 = vector.broadcast %120 : f32 to vector<12x12xf32>
    %122 = arith.mulf %121, %25 : vector<12x12xf32>
    %123 = arith.addf %119, %122 : vector<12x12xf32>
    %c24 = arith.constant 24 : index
    %c0_28 = arith.constant 0 : index
    %124 = memref.load %arg2[%c24, %c0_28] : memref<25x8xf32, #tpu.memory_space<smem>>
    %125 = vector.broadcast %124 : f32 to vector<12x12xf32>
    %126 = arith.mulf %125, %26 : vector<12x12xf32>
    %127 = arith.addf %123, %126 : vector<12x12xf32>
    %c0_29 = arith.constant 0 : index
    %128 = memref.load %arg3[%c0_29] : memref<8xf32, #tpu.memory_space<smem>>
    %129 = vector.broadcast %128 : f32 to vector<12x12xf32>
    %130 = arith.addf %127, %129 : vector<12x12xf32>
    %cst_30 = arith.constant 0.000000e+00 : f32
    %131 = vector.broadcast %cst_30 : f32 to vector<12x12xf32>
    %132 = arith.maximumf %130, %131 : vector<12x12xf32>
    %cst_31 = arith.constant 0.000000e+00 : f32
    %133 = vector.broadcast %cst_31 : f32 to vector<12x12xf32>
    %c0_32 = arith.constant 0 : index
    %c1_33 = arith.constant 1 : index
    %134 = memref.load %arg2[%c0_32, %c1_33] : memref<25x8xf32, #tpu.memory_space<smem>>
    %135 = vector.broadcast %134 : f32 to vector<12x12xf32>
    %136 = arith.mulf %135, %2 : vector<12x12xf32>
    %137 = arith.addf %133, %136 : vector<12x12xf32>
    %c1_34 = arith.constant 1 : index
    %c1_35 = arith.constant 1 : index
    %138 = memref.load %arg2[%c1_34, %c1_35] : memref<25x8xf32, #tpu.memory_space<smem>>
    %139 = vector.broadcast %138 : f32 to vector<12x12xf32>
    %140 = arith.mulf %139, %3 : vector<12x12xf32>
    %141 = arith.addf %137, %140 : vector<12x12xf32>
    %c2_36 = arith.constant 2 : index
    %c1_37 = arith.constant 1 : index
    %142 = memref.load %arg2[%c2_36, %c1_37] : memref<25x8xf32, #tpu.memory_space<smem>>
    %143 = vector.broadcast %142 : f32 to vector<12x12xf32>
    %144 = arith.mulf %143, %4 : vector<12x12xf32>
    %145 = arith.addf %141, %144 : vector<12x12xf32>
    %c3_38 = arith.constant 3 : index
    %c1_39 = arith.constant 1 : index
    %146 = memref.load %arg2[%c3_38, %c1_39] : memref<25x8xf32, #tpu.memory_space<smem>>
    %147 = vector.broadcast %146 : f32 to vector<12x12xf32>
    %148 = arith.mulf %147, %5 : vector<12x12xf32>
    %149 = arith.addf %145, %148 : vector<12x12xf32>
    %c4_40 = arith.constant 4 : index
    %c1_41 = arith.constant 1 : index
    %150 = memref.load %arg2[%c4_40, %c1_41] : memref<25x8xf32, #tpu.memory_space<smem>>
    %151 = vector.broadcast %150 : f32 to vector<12x12xf32>
    %152 = arith.mulf %151, %6 : vector<12x12xf32>
    %153 = arith.addf %149, %152 : vector<12x12xf32>
    %c5_42 = arith.constant 5 : index
    %c1_43 = arith.constant 1 : index
    %154 = memref.load %arg2[%c5_42, %c1_43] : memref<25x8xf32, #tpu.memory_space<smem>>
    %155 = vector.broadcast %154 : f32 to vector<12x12xf32>
    %156 = arith.mulf %155, %7 : vector<12x12xf32>
    %157 = arith.addf %153, %156 : vector<12x12xf32>
    %c6_44 = arith.constant 6 : index
    %c1_45 = arith.constant 1 : index
    %158 = memref.load %arg2[%c6_44, %c1_45] : memref<25x8xf32, #tpu.memory_space<smem>>
    %159 = vector.broadcast %158 : f32 to vector<12x12xf32>
    %160 = arith.mulf %159, %8 : vector<12x12xf32>
    %161 = arith.addf %157, %160 : vector<12x12xf32>
    %c7_46 = arith.constant 7 : index
    %c1_47 = arith.constant 1 : index
    %162 = memref.load %arg2[%c7_46, %c1_47] : memref<25x8xf32, #tpu.memory_space<smem>>
    %163 = vector.broadcast %162 : f32 to vector<12x12xf32>
    %164 = arith.mulf %163, %9 : vector<12x12xf32>
    %165 = arith.addf %161, %164 : vector<12x12xf32>
    %c8_48 = arith.constant 8 : index
    %c1_49 = arith.constant 1 : index
    %166 = memref.load %arg2[%c8_48, %c1_49] : memref<25x8xf32, #tpu.memory_space<smem>>
    %167 = vector.broadcast %166 : f32 to vector<12x12xf32>
    %168 = arith.mulf %167, %10 : vector<12x12xf32>
    %169 = arith.addf %165, %168 : vector<12x12xf32>
    %c9_50 = arith.constant 9 : index
    %c1_51 = arith.constant 1 : index
    %170 = memref.load %arg2[%c9_50, %c1_51] : memref<25x8xf32, #tpu.memory_space<smem>>
    %171 = vector.broadcast %170 : f32 to vector<12x12xf32>
    %172 = arith.mulf %171, %11 : vector<12x12xf32>
    %173 = arith.addf %169, %172 : vector<12x12xf32>
    %c10_52 = arith.constant 10 : index
    %c1_53 = arith.constant 1 : index
    %174 = memref.load %arg2[%c10_52, %c1_53] : memref<25x8xf32, #tpu.memory_space<smem>>
    %175 = vector.broadcast %174 : f32 to vector<12x12xf32>
    %176 = arith.mulf %175, %12 : vector<12x12xf32>
    %177 = arith.addf %173, %176 : vector<12x12xf32>
    %c11_54 = arith.constant 11 : index
    %c1_55 = arith.constant 1 : index
    %178 = memref.load %arg2[%c11_54, %c1_55] : memref<25x8xf32, #tpu.memory_space<smem>>
    %179 = vector.broadcast %178 : f32 to vector<12x12xf32>
    %180 = arith.mulf %179, %13 : vector<12x12xf32>
    %181 = arith.addf %177, %180 : vector<12x12xf32>
    %c12_56 = arith.constant 12 : index
    %c1_57 = arith.constant 1 : index
    %182 = memref.load %arg2[%c12_56, %c1_57] : memref<25x8xf32, #tpu.memory_space<smem>>
    %183 = vector.broadcast %182 : f32 to vector<12x12xf32>
    %184 = arith.mulf %183, %14 : vector<12x12xf32>
    %185 = arith.addf %181, %184 : vector<12x12xf32>
    %c13_58 = arith.constant 13 : index
    %c1_59 = arith.constant 1 : index
    %186 = memref.load %arg2[%c13_58, %c1_59] : memref<25x8xf32, #tpu.memory_space<smem>>
    %187 = vector.broadcast %186 : f32 to vector<12x12xf32>
    %188 = arith.mulf %187, %15 : vector<12x12xf32>
    %189 = arith.addf %185, %188 : vector<12x12xf32>
    %c14_60 = arith.constant 14 : index
    %c1_61 = arith.constant 1 : index
    %190 = memref.load %arg2[%c14_60, %c1_61] : memref<25x8xf32, #tpu.memory_space<smem>>
    %191 = vector.broadcast %190 : f32 to vector<12x12xf32>
    %192 = arith.mulf %191, %16 : vector<12x12xf32>
    %193 = arith.addf %189, %192 : vector<12x12xf32>
    %c15_62 = arith.constant 15 : index
    %c1_63 = arith.constant 1 : index
    %194 = memref.load %arg2[%c15_62, %c1_63] : memref<25x8xf32, #tpu.memory_space<smem>>
    %195 = vector.broadcast %194 : f32 to vector<12x12xf32>
    %196 = arith.mulf %195, %17 : vector<12x12xf32>
    %197 = arith.addf %193, %196 : vector<12x12xf32>
    %c16_64 = arith.constant 16 : index
    %c1_65 = arith.constant 1 : index
    %198 = memref.load %arg2[%c16_64, %c1_65] : memref<25x8xf32, #tpu.memory_space<smem>>
    %199 = vector.broadcast %198 : f32 to vector<12x12xf32>
    %200 = arith.mulf %199, %18 : vector<12x12xf32>
    %201 = arith.addf %197, %200 : vector<12x12xf32>
    %c17_66 = arith.constant 17 : index
    %c1_67 = arith.constant 1 : index
    %202 = memref.load %arg2[%c17_66, %c1_67] : memref<25x8xf32, #tpu.memory_space<smem>>
    %203 = vector.broadcast %202 : f32 to vector<12x12xf32>
    %204 = arith.mulf %203, %19 : vector<12x12xf32>
    %205 = arith.addf %201, %204 : vector<12x12xf32>
    %c18_68 = arith.constant 18 : index
    %c1_69 = arith.constant 1 : index
    %206 = memref.load %arg2[%c18_68, %c1_69] : memref<25x8xf32, #tpu.memory_space<smem>>
    %207 = vector.broadcast %206 : f32 to vector<12x12xf32>
    %208 = arith.mulf %207, %20 : vector<12x12xf32>
    %209 = arith.addf %205, %208 : vector<12x12xf32>
    %c19_70 = arith.constant 19 : index
    %c1_71 = arith.constant 1 : index
    %210 = memref.load %arg2[%c19_70, %c1_71] : memref<25x8xf32, #tpu.memory_space<smem>>
    %211 = vector.broadcast %210 : f32 to vector<12x12xf32>
    %212 = arith.mulf %211, %21 : vector<12x12xf32>
    %213 = arith.addf %209, %212 : vector<12x12xf32>
    %c20_72 = arith.constant 20 : index
    %c1_73 = arith.constant 1 : index
    %214 = memref.load %arg2[%c20_72, %c1_73] : memref<25x8xf32, #tpu.memory_space<smem>>
    %215 = vector.broadcast %214 : f32 to vector<12x12xf32>
    %216 = arith.mulf %215, %22 : vector<12x12xf32>
    %217 = arith.addf %213, %216 : vector<12x12xf32>
    %c21_74 = arith.constant 21 : index
    %c1_75 = arith.constant 1 : index
    %218 = memref.load %arg2[%c21_74, %c1_75] : memref<25x8xf32, #tpu.memory_space<smem>>
    %219 = vector.broadcast %218 : f32 to vector<12x12xf32>
    %220 = arith.mulf %219, %23 : vector<12x12xf32>
    %221 = arith.addf %217, %220 : vector<12x12xf32>
    %c22_76 = arith.constant 22 : index
    %c1_77 = arith.constant 1 : index
    %222 = memref.load %arg2[%c22_76, %c1_77] : memref<25x8xf32, #tpu.memory_space<smem>>
    %223 = vector.broadcast %222 : f32 to vector<12x12xf32>
    %224 = arith.mulf %223, %24 : vector<12x12xf32>
    %225 = arith.addf %221, %224 : vector<12x12xf32>
    %c23_78 = arith.constant 23 : index
    %c1_79 = arith.constant 1 : index
    %226 = memref.load %arg2[%c23_78, %c1_79] : memref<25x8xf32, #tpu.memory_space<smem>>
    %227 = vector.broadcast %226 : f32 to vector<12x12xf32>
    %228 = arith.mulf %227, %25 : vector<12x12xf32>
    %229 = arith.addf %225, %228 : vector<12x12xf32>
    %c24_80 = arith.constant 24 : index
    %c1_81 = arith.constant 1 : index
    %230 = memref.load %arg2[%c24_80, %c1_81] : memref<25x8xf32, #tpu.memory_space<smem>>
    %231 = vector.broadcast %230 : f32 to vector<12x12xf32>
    %232 = arith.mulf %231, %26 : vector<12x12xf32>
    %233 = arith.addf %229, %232 : vector<12x12xf32>
    %c1_82 = arith.constant 1 : index
    %234 = memref.load %arg3[%c1_82] : memref<8xf32, #tpu.memory_space<smem>>
    %235 = vector.broadcast %234 : f32 to vector<12x12xf32>
    %236 = arith.addf %233, %235 : vector<12x12xf32>
    %cst_83 = arith.constant 0.000000e+00 : f32
    %237 = vector.broadcast %cst_83 : f32 to vector<12x12xf32>
    %238 = arith.maximumf %236, %237 : vector<12x12xf32>
    %cst_84 = arith.constant 0.000000e+00 : f32
    %239 = vector.broadcast %cst_84 : f32 to vector<12x12xf32>
    %c0_85 = arith.constant 0 : index
    %c2_86 = arith.constant 2 : index
    %240 = memref.load %arg2[%c0_85, %c2_86] : memref<25x8xf32, #tpu.memory_space<smem>>
    %241 = vector.broadcast %240 : f32 to vector<12x12xf32>
    %242 = arith.mulf %241, %2 : vector<12x12xf32>
    %243 = arith.addf %239, %242 : vector<12x12xf32>
    %c1_87 = arith.constant 1 : index
    %c2_88 = arith.constant 2 : index
    %244 = memref.load %arg2[%c1_87, %c2_88] : memref<25x8xf32, #tpu.memory_space<smem>>
    %245 = vector.broadcast %244 : f32 to vector<12x12xf32>
    %246 = arith.mulf %245, %3 : vector<12x12xf32>
    %247 = arith.addf %243, %246 : vector<12x12xf32>
    %c2_89 = arith.constant 2 : index
    %c2_90 = arith.constant 2 : index
    %248 = memref.load %arg2[%c2_89, %c2_90] : memref<25x8xf32, #tpu.memory_space<smem>>
    %249 = vector.broadcast %248 : f32 to vector<12x12xf32>
    %250 = arith.mulf %249, %4 : vector<12x12xf32>
    %251 = arith.addf %247, %250 : vector<12x12xf32>
    %c3_91 = arith.constant 3 : index
    %c2_92 = arith.constant 2 : index
    %252 = memref.load %arg2[%c3_91, %c2_92] : memref<25x8xf32, #tpu.memory_space<smem>>
    %253 = vector.broadcast %252 : f32 to vector<12x12xf32>
    %254 = arith.mulf %253, %5 : vector<12x12xf32>
    %255 = arith.addf %251, %254 : vector<12x12xf32>
    %c4_93 = arith.constant 4 : index
    %c2_94 = arith.constant 2 : index
    %256 = memref.load %arg2[%c4_93, %c2_94] : memref<25x8xf32, #tpu.memory_space<smem>>
    %257 = vector.broadcast %256 : f32 to vector<12x12xf32>
    %258 = arith.mulf %257, %6 : vector<12x12xf32>
    %259 = arith.addf %255, %258 : vector<12x12xf32>
    %c5_95 = arith.constant 5 : index
    %c2_96 = arith.constant 2 : index
    %260 = memref.load %arg2[%c5_95, %c2_96] : memref<25x8xf32, #tpu.memory_space<smem>>
    %261 = vector.broadcast %260 : f32 to vector<12x12xf32>
    %262 = arith.mulf %261, %7 : vector<12x12xf32>
    %263 = arith.addf %259, %262 : vector<12x12xf32>
    %c6_97 = arith.constant 6 : index
    %c2_98 = arith.constant 2 : index
    %264 = memref.load %arg2[%c6_97, %c2_98] : memref<25x8xf32, #tpu.memory_space<smem>>
    %265 = vector.broadcast %264 : f32 to vector<12x12xf32>
    %266 = arith.mulf %265, %8 : vector<12x12xf32>
    %267 = arith.addf %263, %266 : vector<12x12xf32>
    %c7_99 = arith.constant 7 : index
    %c2_100 = arith.constant 2 : index
    %268 = memref.load %arg2[%c7_99, %c2_100] : memref<25x8xf32, #tpu.memory_space<smem>>
    %269 = vector.broadcast %268 : f32 to vector<12x12xf32>
    %270 = arith.mulf %269, %9 : vector<12x12xf32>
    %271 = arith.addf %267, %270 : vector<12x12xf32>
    %c8_101 = arith.constant 8 : index
    %c2_102 = arith.constant 2 : index
    %272 = memref.load %arg2[%c8_101, %c2_102] : memref<25x8xf32, #tpu.memory_space<smem>>
    %273 = vector.broadcast %272 : f32 to vector<12x12xf32>
    %274 = arith.mulf %273, %10 : vector<12x12xf32>
    %275 = arith.addf %271, %274 : vector<12x12xf32>
    %c9_103 = arith.constant 9 : index
    %c2_104 = arith.constant 2 : index
    %276 = memref.load %arg2[%c9_103, %c2_104] : memref<25x8xf32, #tpu.memory_space<smem>>
    %277 = vector.broadcast %276 : f32 to vector<12x12xf32>
    %278 = arith.mulf %277, %11 : vector<12x12xf32>
    %279 = arith.addf %275, %278 : vector<12x12xf32>
    %c10_105 = arith.constant 10 : index
    %c2_106 = arith.constant 2 : index
    %280 = memref.load %arg2[%c10_105, %c2_106] : memref<25x8xf32, #tpu.memory_space<smem>>
    %281 = vector.broadcast %280 : f32 to vector<12x12xf32>
    %282 = arith.mulf %281, %12 : vector<12x12xf32>
    %283 = arith.addf %279, %282 : vector<12x12xf32>
    %c11_107 = arith.constant 11 : index
    %c2_108 = arith.constant 2 : index
    %284 = memref.load %arg2[%c11_107, %c2_108] : memref<25x8xf32, #tpu.memory_space<smem>>
    %285 = vector.broadcast %284 : f32 to vector<12x12xf32>
    %286 = arith.mulf %285, %13 : vector<12x12xf32>
    %287 = arith.addf %283, %286 : vector<12x12xf32>
    %c12_109 = arith.constant 12 : index
    %c2_110 = arith.constant 2 : index
    %288 = memref.load %arg2[%c12_109, %c2_110] : memref<25x8xf32, #tpu.memory_space<smem>>
    %289 = vector.broadcast %288 : f32 to vector<12x12xf32>
    %290 = arith.mulf %289, %14 : vector<12x12xf32>
    %291 = arith.addf %287, %290 : vector<12x12xf32>
    %c13_111 = arith.constant 13 : index
    %c2_112 = arith.constant 2 : index
    %292 = memref.load %arg2[%c13_111, %c2_112] : memref<25x8xf32, #tpu.memory_space<smem>>
    %293 = vector.broadcast %292 : f32 to vector<12x12xf32>
    %294 = arith.mulf %293, %15 : vector<12x12xf32>
    %295 = arith.addf %291, %294 : vector<12x12xf32>
    %c14_113 = arith.constant 14 : index
    %c2_114 = arith.constant 2 : index
    %296 = memref.load %arg2[%c14_113, %c2_114] : memref<25x8xf32, #tpu.memory_space<smem>>
    %297 = vector.broadcast %296 : f32 to vector<12x12xf32>
    %298 = arith.mulf %297, %16 : vector<12x12xf32>
    %299 = arith.addf %295, %298 : vector<12x12xf32>
    %c15_115 = arith.constant 15 : index
    %c2_116 = arith.constant 2 : index
    %300 = memref.load %arg2[%c15_115, %c2_116] : memref<25x8xf32, #tpu.memory_space<smem>>
    %301 = vector.broadcast %300 : f32 to vector<12x12xf32>
    %302 = arith.mulf %301, %17 : vector<12x12xf32>
    %303 = arith.addf %299, %302 : vector<12x12xf32>
    %c16_117 = arith.constant 16 : index
    %c2_118 = arith.constant 2 : index
    %304 = memref.load %arg2[%c16_117, %c2_118] : memref<25x8xf32, #tpu.memory_space<smem>>
    %305 = vector.broadcast %304 : f32 to vector<12x12xf32>
    %306 = arith.mulf %305, %18 : vector<12x12xf32>
    %307 = arith.addf %303, %306 : vector<12x12xf32>
    %c17_119 = arith.constant 17 : index
    %c2_120 = arith.constant 2 : index
    %308 = memref.load %arg2[%c17_119, %c2_120] : memref<25x8xf32, #tpu.memory_space<smem>>
    %309 = vector.broadcast %308 : f32 to vector<12x12xf32>
    %310 = arith.mulf %309, %19 : vector<12x12xf32>
    %311 = arith.addf %307, %310 : vector<12x12xf32>
    %c18_121 = arith.constant 18 : index
    %c2_122 = arith.constant 2 : index
    %312 = memref.load %arg2[%c18_121, %c2_122] : memref<25x8xf32, #tpu.memory_space<smem>>
    %313 = vector.broadcast %312 : f32 to vector<12x12xf32>
    %314 = arith.mulf %313, %20 : vector<12x12xf32>
    %315 = arith.addf %311, %314 : vector<12x12xf32>
    %c19_123 = arith.constant 19 : index
    %c2_124 = arith.constant 2 : index
    %316 = memref.load %arg2[%c19_123, %c2_124] : memref<25x8xf32, #tpu.memory_space<smem>>
    %317 = vector.broadcast %316 : f32 to vector<12x12xf32>
    %318 = arith.mulf %317, %21 : vector<12x12xf32>
    %319 = arith.addf %315, %318 : vector<12x12xf32>
    %c20_125 = arith.constant 20 : index
    %c2_126 = arith.constant 2 : index
    %320 = memref.load %arg2[%c20_125, %c2_126] : memref<25x8xf32, #tpu.memory_space<smem>>
    %321 = vector.broadcast %320 : f32 to vector<12x12xf32>
    %322 = arith.mulf %321, %22 : vector<12x12xf32>
    %323 = arith.addf %319, %322 : vector<12x12xf32>
    %c21_127 = arith.constant 21 : index
    %c2_128 = arith.constant 2 : index
    %324 = memref.load %arg2[%c21_127, %c2_128] : memref<25x8xf32, #tpu.memory_space<smem>>
    %325 = vector.broadcast %324 : f32 to vector<12x12xf32>
    %326 = arith.mulf %325, %23 : vector<12x12xf32>
    %327 = arith.addf %323, %326 : vector<12x12xf32>
    %c22_129 = arith.constant 22 : index
    %c2_130 = arith.constant 2 : index
    %328 = memref.load %arg2[%c22_129, %c2_130] : memref<25x8xf32, #tpu.memory_space<smem>>
    %329 = vector.broadcast %328 : f32 to vector<12x12xf32>
    %330 = arith.mulf %329, %24 : vector<12x12xf32>
    %331 = arith.addf %327, %330 : vector<12x12xf32>
    %c23_131 = arith.constant 23 : index
    %c2_132 = arith.constant 2 : index
    %332 = memref.load %arg2[%c23_131, %c2_132] : memref<25x8xf32, #tpu.memory_space<smem>>
    %333 = vector.broadcast %332 : f32 to vector<12x12xf32>
    %334 = arith.mulf %333, %25 : vector<12x12xf32>
    %335 = arith.addf %331, %334 : vector<12x12xf32>
    %c24_133 = arith.constant 24 : index
    %c2_134 = arith.constant 2 : index
    %336 = memref.load %arg2[%c24_133, %c2_134] : memref<25x8xf32, #tpu.memory_space<smem>>
    %337 = vector.broadcast %336 : f32 to vector<12x12xf32>
    %338 = arith.mulf %337, %26 : vector<12x12xf32>
    %339 = arith.addf %335, %338 : vector<12x12xf32>
    %c2_135 = arith.constant 2 : index
    %340 = memref.load %arg3[%c2_135] : memref<8xf32, #tpu.memory_space<smem>>
    %341 = vector.broadcast %340 : f32 to vector<12x12xf32>
    %342 = arith.addf %339, %341 : vector<12x12xf32>
    %cst_136 = arith.constant 0.000000e+00 : f32
    %343 = vector.broadcast %cst_136 : f32 to vector<12x12xf32>
    %344 = arith.maximumf %342, %343 : vector<12x12xf32>
    %cst_137 = arith.constant 0.000000e+00 : f32
    %345 = vector.broadcast %cst_137 : f32 to vector<12x12xf32>
    %c0_138 = arith.constant 0 : index
    %c3_139 = arith.constant 3 : index
    %346 = memref.load %arg2[%c0_138, %c3_139] : memref<25x8xf32, #tpu.memory_space<smem>>
    %347 = vector.broadcast %346 : f32 to vector<12x12xf32>
    %348 = arith.mulf %347, %2 : vector<12x12xf32>
    %349 = arith.addf %345, %348 : vector<12x12xf32>
    %c1_140 = arith.constant 1 : index
    %c3_141 = arith.constant 3 : index
    %350 = memref.load %arg2[%c1_140, %c3_141] : memref<25x8xf32, #tpu.memory_space<smem>>
    %351 = vector.broadcast %350 : f32 to vector<12x12xf32>
    %352 = arith.mulf %351, %3 : vector<12x12xf32>
    %353 = arith.addf %349, %352 : vector<12x12xf32>
    %c2_142 = arith.constant 2 : index
    %c3_143 = arith.constant 3 : index
    %354 = memref.load %arg2[%c2_142, %c3_143] : memref<25x8xf32, #tpu.memory_space<smem>>
    %355 = vector.broadcast %354 : f32 to vector<12x12xf32>
    %356 = arith.mulf %355, %4 : vector<12x12xf32>
    %357 = arith.addf %353, %356 : vector<12x12xf32>
    %c3_144 = arith.constant 3 : index
    %c3_145 = arith.constant 3 : index
    %358 = memref.load %arg2[%c3_144, %c3_145] : memref<25x8xf32, #tpu.memory_space<smem>>
    %359 = vector.broadcast %358 : f32 to vector<12x12xf32>
    %360 = arith.mulf %359, %5 : vector<12x12xf32>
    %361 = arith.addf %357, %360 : vector<12x12xf32>
    %c4_146 = arith.constant 4 : index
    %c3_147 = arith.constant 3 : index
    %362 = memref.load %arg2[%c4_146, %c3_147] : memref<25x8xf32, #tpu.memory_space<smem>>
    %363 = vector.broadcast %362 : f32 to vector<12x12xf32>
    %364 = arith.mulf %363, %6 : vector<12x12xf32>
    %365 = arith.addf %361, %364 : vector<12x12xf32>
    %c5_148 = arith.constant 5 : index
    %c3_149 = arith.constant 3 : index
    %366 = memref.load %arg2[%c5_148, %c3_149] : memref<25x8xf32, #tpu.memory_space<smem>>
    %367 = vector.broadcast %366 : f32 to vector<12x12xf32>
    %368 = arith.mulf %367, %7 : vector<12x12xf32>
    %369 = arith.addf %365, %368 : vector<12x12xf32>
    %c6_150 = arith.constant 6 : index
    %c3_151 = arith.constant 3 : index
    %370 = memref.load %arg2[%c6_150, %c3_151] : memref<25x8xf32, #tpu.memory_space<smem>>
    %371 = vector.broadcast %370 : f32 to vector<12x12xf32>
    %372 = arith.mulf %371, %8 : vector<12x12xf32>
    %373 = arith.addf %369, %372 : vector<12x12xf32>
    %c7_152 = arith.constant 7 : index
    %c3_153 = arith.constant 3 : index
    %374 = memref.load %arg2[%c7_152, %c3_153] : memref<25x8xf32, #tpu.memory_space<smem>>
    %375 = vector.broadcast %374 : f32 to vector<12x12xf32>
    %376 = arith.mulf %375, %9 : vector<12x12xf32>
    %377 = arith.addf %373, %376 : vector<12x12xf32>
    %c8_154 = arith.constant 8 : index
    %c3_155 = arith.constant 3 : index
    %378 = memref.load %arg2[%c8_154, %c3_155] : memref<25x8xf32, #tpu.memory_space<smem>>
    %379 = vector.broadcast %378 : f32 to vector<12x12xf32>
    %380 = arith.mulf %379, %10 : vector<12x12xf32>
    %381 = arith.addf %377, %380 : vector<12x12xf32>
    %c9_156 = arith.constant 9 : index
    %c3_157 = arith.constant 3 : index
    %382 = memref.load %arg2[%c9_156, %c3_157] : memref<25x8xf32, #tpu.memory_space<smem>>
    %383 = vector.broadcast %382 : f32 to vector<12x12xf32>
    %384 = arith.mulf %383, %11 : vector<12x12xf32>
    %385 = arith.addf %381, %384 : vector<12x12xf32>
    %c10_158 = arith.constant 10 : index
    %c3_159 = arith.constant 3 : index
    %386 = memref.load %arg2[%c10_158, %c3_159] : memref<25x8xf32, #tpu.memory_space<smem>>
    %387 = vector.broadcast %386 : f32 to vector<12x12xf32>
    %388 = arith.mulf %387, %12 : vector<12x12xf32>
    %389 = arith.addf %385, %388 : vector<12x12xf32>
    %c11_160 = arith.constant 11 : index
    %c3_161 = arith.constant 3 : index
    %390 = memref.load %arg2[%c11_160, %c3_161] : memref<25x8xf32, #tpu.memory_space<smem>>
    %391 = vector.broadcast %390 : f32 to vector<12x12xf32>
    %392 = arith.mulf %391, %13 : vector<12x12xf32>
    %393 = arith.addf %389, %392 : vector<12x12xf32>
    %c12_162 = arith.constant 12 : index
    %c3_163 = arith.constant 3 : index
    %394 = memref.load %arg2[%c12_162, %c3_163] : memref<25x8xf32, #tpu.memory_space<smem>>
    %395 = vector.broadcast %394 : f32 to vector<12x12xf32>
    %396 = arith.mulf %395, %14 : vector<12x12xf32>
    %397 = arith.addf %393, %396 : vector<12x12xf32>
    %c13_164 = arith.constant 13 : index
    %c3_165 = arith.constant 3 : index
    %398 = memref.load %arg2[%c13_164, %c3_165] : memref<25x8xf32, #tpu.memory_space<smem>>
    %399 = vector.broadcast %398 : f32 to vector<12x12xf32>
    %400 = arith.mulf %399, %15 : vector<12x12xf32>
    %401 = arith.addf %397, %400 : vector<12x12xf32>
    %c14_166 = arith.constant 14 : index
    %c3_167 = arith.constant 3 : index
    %402 = memref.load %arg2[%c14_166, %c3_167] : memref<25x8xf32, #tpu.memory_space<smem>>
    %403 = vector.broadcast %402 : f32 to vector<12x12xf32>
    %404 = arith.mulf %403, %16 : vector<12x12xf32>
    %405 = arith.addf %401, %404 : vector<12x12xf32>
    %c15_168 = arith.constant 15 : index
    %c3_169 = arith.constant 3 : index
    %406 = memref.load %arg2[%c15_168, %c3_169] : memref<25x8xf32, #tpu.memory_space<smem>>
    %407 = vector.broadcast %406 : f32 to vector<12x12xf32>
    %408 = arith.mulf %407, %17 : vector<12x12xf32>
    %409 = arith.addf %405, %408 : vector<12x12xf32>
    %c16_170 = arith.constant 16 : index
    %c3_171 = arith.constant 3 : index
    %410 = memref.load %arg2[%c16_170, %c3_171] : memref<25x8xf32, #tpu.memory_space<smem>>
    %411 = vector.broadcast %410 : f32 to vector<12x12xf32>
    %412 = arith.mulf %411, %18 : vector<12x12xf32>
    %413 = arith.addf %409, %412 : vector<12x12xf32>
    %c17_172 = arith.constant 17 : index
    %c3_173 = arith.constant 3 : index
    %414 = memref.load %arg2[%c17_172, %c3_173] : memref<25x8xf32, #tpu.memory_space<smem>>
    %415 = vector.broadcast %414 : f32 to vector<12x12xf32>
    %416 = arith.mulf %415, %19 : vector<12x12xf32>
    %417 = arith.addf %413, %416 : vector<12x12xf32>
    %c18_174 = arith.constant 18 : index
    %c3_175 = arith.constant 3 : index
    %418 = memref.load %arg2[%c18_174, %c3_175] : memref<25x8xf32, #tpu.memory_space<smem>>
    %419 = vector.broadcast %418 : f32 to vector<12x12xf32>
    %420 = arith.mulf %419, %20 : vector<12x12xf32>
    %421 = arith.addf %417, %420 : vector<12x12xf32>
    %c19_176 = arith.constant 19 : index
    %c3_177 = arith.constant 3 : index
    %422 = memref.load %arg2[%c19_176, %c3_177] : memref<25x8xf32, #tpu.memory_space<smem>>
    %423 = vector.broadcast %422 : f32 to vector<12x12xf32>
    %424 = arith.mulf %423, %21 : vector<12x12xf32>
    %425 = arith.addf %421, %424 : vector<12x12xf32>
    %c20_178 = arith.constant 20 : index
    %c3_179 = arith.constant 3 : index
    %426 = memref.load %arg2[%c20_178, %c3_179] : memref<25x8xf32, #tpu.memory_space<smem>>
    %427 = vector.broadcast %426 : f32 to vector<12x12xf32>
    %428 = arith.mulf %427, %22 : vector<12x12xf32>
    %429 = arith.addf %425, %428 : vector<12x12xf32>
    %c21_180 = arith.constant 21 : index
    %c3_181 = arith.constant 3 : index
    %430 = memref.load %arg2[%c21_180, %c3_181] : memref<25x8xf32, #tpu.memory_space<smem>>
    %431 = vector.broadcast %430 : f32 to vector<12x12xf32>
    %432 = arith.mulf %431, %23 : vector<12x12xf32>
    %433 = arith.addf %429, %432 : vector<12x12xf32>
    %c22_182 = arith.constant 22 : index
    %c3_183 = arith.constant 3 : index
    %434 = memref.load %arg2[%c22_182, %c3_183] : memref<25x8xf32, #tpu.memory_space<smem>>
    %435 = vector.broadcast %434 : f32 to vector<12x12xf32>
    %436 = arith.mulf %435, %24 : vector<12x12xf32>
    %437 = arith.addf %433, %436 : vector<12x12xf32>
    %c23_184 = arith.constant 23 : index
    %c3_185 = arith.constant 3 : index
    %438 = memref.load %arg2[%c23_184, %c3_185] : memref<25x8xf32, #tpu.memory_space<smem>>
    %439 = vector.broadcast %438 : f32 to vector<12x12xf32>
    %440 = arith.mulf %439, %25 : vector<12x12xf32>
    %441 = arith.addf %437, %440 : vector<12x12xf32>
    %c24_186 = arith.constant 24 : index
    %c3_187 = arith.constant 3 : index
    %442 = memref.load %arg2[%c24_186, %c3_187] : memref<25x8xf32, #tpu.memory_space<smem>>
    %443 = vector.broadcast %442 : f32 to vector<12x12xf32>
    %444 = arith.mulf %443, %26 : vector<12x12xf32>
    %445 = arith.addf %441, %444 : vector<12x12xf32>
    %c3_188 = arith.constant 3 : index
    %446 = memref.load %arg3[%c3_188] : memref<8xf32, #tpu.memory_space<smem>>
    %447 = vector.broadcast %446 : f32 to vector<12x12xf32>
    %448 = arith.addf %445, %447 : vector<12x12xf32>
    %cst_189 = arith.constant 0.000000e+00 : f32
    %449 = vector.broadcast %cst_189 : f32 to vector<12x12xf32>
    %450 = arith.maximumf %448, %449 : vector<12x12xf32>
    %cst_190 = arith.constant 0.000000e+00 : f32
    %451 = vector.broadcast %cst_190 : f32 to vector<12x12xf32>
    %c0_191 = arith.constant 0 : index
    %c4_192 = arith.constant 4 : index
    %452 = memref.load %arg2[%c0_191, %c4_192] : memref<25x8xf32, #tpu.memory_space<smem>>
    %453 = vector.broadcast %452 : f32 to vector<12x12xf32>
    %454 = arith.mulf %453, %2 : vector<12x12xf32>
    %455 = arith.addf %451, %454 : vector<12x12xf32>
    %c1_193 = arith.constant 1 : index
    %c4_194 = arith.constant 4 : index
    %456 = memref.load %arg2[%c1_193, %c4_194] : memref<25x8xf32, #tpu.memory_space<smem>>
    %457 = vector.broadcast %456 : f32 to vector<12x12xf32>
    %458 = arith.mulf %457, %3 : vector<12x12xf32>
    %459 = arith.addf %455, %458 : vector<12x12xf32>
    %c2_195 = arith.constant 2 : index
    %c4_196 = arith.constant 4 : index
    %460 = memref.load %arg2[%c2_195, %c4_196] : memref<25x8xf32, #tpu.memory_space<smem>>
    %461 = vector.broadcast %460 : f32 to vector<12x12xf32>
    %462 = arith.mulf %461, %4 : vector<12x12xf32>
    %463 = arith.addf %459, %462 : vector<12x12xf32>
    %c3_197 = arith.constant 3 : index
    %c4_198 = arith.constant 4 : index
    %464 = memref.load %arg2[%c3_197, %c4_198] : memref<25x8xf32, #tpu.memory_space<smem>>
    %465 = vector.broadcast %464 : f32 to vector<12x12xf32>
    %466 = arith.mulf %465, %5 : vector<12x12xf32>
    %467 = arith.addf %463, %466 : vector<12x12xf32>
    %c4_199 = arith.constant 4 : index
    %c4_200 = arith.constant 4 : index
    %468 = memref.load %arg2[%c4_199, %c4_200] : memref<25x8xf32, #tpu.memory_space<smem>>
    %469 = vector.broadcast %468 : f32 to vector<12x12xf32>
    %470 = arith.mulf %469, %6 : vector<12x12xf32>
    %471 = arith.addf %467, %470 : vector<12x12xf32>
    %c5_201 = arith.constant 5 : index
    %c4_202 = arith.constant 4 : index
    %472 = memref.load %arg2[%c5_201, %c4_202] : memref<25x8xf32, #tpu.memory_space<smem>>
    %473 = vector.broadcast %472 : f32 to vector<12x12xf32>
    %474 = arith.mulf %473, %7 : vector<12x12xf32>
    %475 = arith.addf %471, %474 : vector<12x12xf32>
    %c6_203 = arith.constant 6 : index
    %c4_204 = arith.constant 4 : index
    %476 = memref.load %arg2[%c6_203, %c4_204] : memref<25x8xf32, #tpu.memory_space<smem>>
    %477 = vector.broadcast %476 : f32 to vector<12x12xf32>
    %478 = arith.mulf %477, %8 : vector<12x12xf32>
    %479 = arith.addf %475, %478 : vector<12x12xf32>
    %c7_205 = arith.constant 7 : index
    %c4_206 = arith.constant 4 : index
    %480 = memref.load %arg2[%c7_205, %c4_206] : memref<25x8xf32, #tpu.memory_space<smem>>
    %481 = vector.broadcast %480 : f32 to vector<12x12xf32>
    %482 = arith.mulf %481, %9 : vector<12x12xf32>
    %483 = arith.addf %479, %482 : vector<12x12xf32>
    %c8_207 = arith.constant 8 : index
    %c4_208 = arith.constant 4 : index
    %484 = memref.load %arg2[%c8_207, %c4_208] : memref<25x8xf32, #tpu.memory_space<smem>>
    %485 = vector.broadcast %484 : f32 to vector<12x12xf32>
    %486 = arith.mulf %485, %10 : vector<12x12xf32>
    %487 = arith.addf %483, %486 : vector<12x12xf32>
    %c9_209 = arith.constant 9 : index
    %c4_210 = arith.constant 4 : index
    %488 = memref.load %arg2[%c9_209, %c4_210] : memref<25x8xf32, #tpu.memory_space<smem>>
    %489 = vector.broadcast %488 : f32 to vector<12x12xf32>
    %490 = arith.mulf %489, %11 : vector<12x12xf32>
    %491 = arith.addf %487, %490 : vector<12x12xf32>
    %c10_211 = arith.constant 10 : index
    %c4_212 = arith.constant 4 : index
    %492 = memref.load %arg2[%c10_211, %c4_212] : memref<25x8xf32, #tpu.memory_space<smem>>
    %493 = vector.broadcast %492 : f32 to vector<12x12xf32>
    %494 = arith.mulf %493, %12 : vector<12x12xf32>
    %495 = arith.addf %491, %494 : vector<12x12xf32>
    %c11_213 = arith.constant 11 : index
    %c4_214 = arith.constant 4 : index
    %496 = memref.load %arg2[%c11_213, %c4_214] : memref<25x8xf32, #tpu.memory_space<smem>>
    %497 = vector.broadcast %496 : f32 to vector<12x12xf32>
    %498 = arith.mulf %497, %13 : vector<12x12xf32>
    %499 = arith.addf %495, %498 : vector<12x12xf32>
    %c12_215 = arith.constant 12 : index
    %c4_216 = arith.constant 4 : index
    %500 = memref.load %arg2[%c12_215, %c4_216] : memref<25x8xf32, #tpu.memory_space<smem>>
    %501 = vector.broadcast %500 : f32 to vector<12x12xf32>
    %502 = arith.mulf %501, %14 : vector<12x12xf32>
    %503 = arith.addf %499, %502 : vector<12x12xf32>
    %c13_217 = arith.constant 13 : index
    %c4_218 = arith.constant 4 : index
    %504 = memref.load %arg2[%c13_217, %c4_218] : memref<25x8xf32, #tpu.memory_space<smem>>
    %505 = vector.broadcast %504 : f32 to vector<12x12xf32>
    %506 = arith.mulf %505, %15 : vector<12x12xf32>
    %507 = arith.addf %503, %506 : vector<12x12xf32>
    %c14_219 = arith.constant 14 : index
    %c4_220 = arith.constant 4 : index
    %508 = memref.load %arg2[%c14_219, %c4_220] : memref<25x8xf32, #tpu.memory_space<smem>>
    %509 = vector.broadcast %508 : f32 to vector<12x12xf32>
    %510 = arith.mulf %509, %16 : vector<12x12xf32>
    %511 = arith.addf %507, %510 : vector<12x12xf32>
    %c15_221 = arith.constant 15 : index
    %c4_222 = arith.constant 4 : index
    %512 = memref.load %arg2[%c15_221, %c4_222] : memref<25x8xf32, #tpu.memory_space<smem>>
    %513 = vector.broadcast %512 : f32 to vector<12x12xf32>
    %514 = arith.mulf %513, %17 : vector<12x12xf32>
    %515 = arith.addf %511, %514 : vector<12x12xf32>
    %c16_223 = arith.constant 16 : index
    %c4_224 = arith.constant 4 : index
    %516 = memref.load %arg2[%c16_223, %c4_224] : memref<25x8xf32, #tpu.memory_space<smem>>
    %517 = vector.broadcast %516 : f32 to vector<12x12xf32>
    %518 = arith.mulf %517, %18 : vector<12x12xf32>
    %519 = arith.addf %515, %518 : vector<12x12xf32>
    %c17_225 = arith.constant 17 : index
    %c4_226 = arith.constant 4 : index
    %520 = memref.load %arg2[%c17_225, %c4_226] : memref<25x8xf32, #tpu.memory_space<smem>>
    %521 = vector.broadcast %520 : f32 to vector<12x12xf32>
    %522 = arith.mulf %521, %19 : vector<12x12xf32>
    %523 = arith.addf %519, %522 : vector<12x12xf32>
    %c18_227 = arith.constant 18 : index
    %c4_228 = arith.constant 4 : index
    %524 = memref.load %arg2[%c18_227, %c4_228] : memref<25x8xf32, #tpu.memory_space<smem>>
    %525 = vector.broadcast %524 : f32 to vector<12x12xf32>
    %526 = arith.mulf %525, %20 : vector<12x12xf32>
    %527 = arith.addf %523, %526 : vector<12x12xf32>
    %c19_229 = arith.constant 19 : index
    %c4_230 = arith.constant 4 : index
    %528 = memref.load %arg2[%c19_229, %c4_230] : memref<25x8xf32, #tpu.memory_space<smem>>
    %529 = vector.broadcast %528 : f32 to vector<12x12xf32>
    %530 = arith.mulf %529, %21 : vector<12x12xf32>
    %531 = arith.addf %527, %530 : vector<12x12xf32>
    %c20_231 = arith.constant 20 : index
    %c4_232 = arith.constant 4 : index
    %532 = memref.load %arg2[%c20_231, %c4_232] : memref<25x8xf32, #tpu.memory_space<smem>>
    %533 = vector.broadcast %532 : f32 to vector<12x12xf32>
    %534 = arith.mulf %533, %22 : vector<12x12xf32>
    %535 = arith.addf %531, %534 : vector<12x12xf32>
    %c21_233 = arith.constant 21 : index
    %c4_234 = arith.constant 4 : index
    %536 = memref.load %arg2[%c21_233, %c4_234] : memref<25x8xf32, #tpu.memory_space<smem>>
    %537 = vector.broadcast %536 : f32 to vector<12x12xf32>
    %538 = arith.mulf %537, %23 : vector<12x12xf32>
    %539 = arith.addf %535, %538 : vector<12x12xf32>
    %c22_235 = arith.constant 22 : index
    %c4_236 = arith.constant 4 : index
    %540 = memref.load %arg2[%c22_235, %c4_236] : memref<25x8xf32, #tpu.memory_space<smem>>
    %541 = vector.broadcast %540 : f32 to vector<12x12xf32>
    %542 = arith.mulf %541, %24 : vector<12x12xf32>
    %543 = arith.addf %539, %542 : vector<12x12xf32>
    %c23_237 = arith.constant 23 : index
    %c4_238 = arith.constant 4 : index
    %544 = memref.load %arg2[%c23_237, %c4_238] : memref<25x8xf32, #tpu.memory_space<smem>>
    %545 = vector.broadcast %544 : f32 to vector<12x12xf32>
    %546 = arith.mulf %545, %25 : vector<12x12xf32>
    %547 = arith.addf %543, %546 : vector<12x12xf32>
    %c24_239 = arith.constant 24 : index
    %c4_240 = arith.constant 4 : index
    %548 = memref.load %arg2[%c24_239, %c4_240] : memref<25x8xf32, #tpu.memory_space<smem>>
    %549 = vector.broadcast %548 : f32 to vector<12x12xf32>
    %550 = arith.mulf %549, %26 : vector<12x12xf32>
    %551 = arith.addf %547, %550 : vector<12x12xf32>
    %c4_241 = arith.constant 4 : index
    %552 = memref.load %arg3[%c4_241] : memref<8xf32, #tpu.memory_space<smem>>
    %553 = vector.broadcast %552 : f32 to vector<12x12xf32>
    %554 = arith.addf %551, %553 : vector<12x12xf32>
    %cst_242 = arith.constant 0.000000e+00 : f32
    %555 = vector.broadcast %cst_242 : f32 to vector<12x12xf32>
    %556 = arith.maximumf %554, %555 : vector<12x12xf32>
    %cst_243 = arith.constant 0.000000e+00 : f32
    %557 = vector.broadcast %cst_243 : f32 to vector<12x12xf32>
    %c0_244 = arith.constant 0 : index
    %c5_245 = arith.constant 5 : index
    %558 = memref.load %arg2[%c0_244, %c5_245] : memref<25x8xf32, #tpu.memory_space<smem>>
    %559 = vector.broadcast %558 : f32 to vector<12x12xf32>
    %560 = arith.mulf %559, %2 : vector<12x12xf32>
    %561 = arith.addf %557, %560 : vector<12x12xf32>
    %c1_246 = arith.constant 1 : index
    %c5_247 = arith.constant 5 : index
    %562 = memref.load %arg2[%c1_246, %c5_247] : memref<25x8xf32, #tpu.memory_space<smem>>
    %563 = vector.broadcast %562 : f32 to vector<12x12xf32>
    %564 = arith.mulf %563, %3 : vector<12x12xf32>
    %565 = arith.addf %561, %564 : vector<12x12xf32>
    %c2_248 = arith.constant 2 : index
    %c5_249 = arith.constant 5 : index
    %566 = memref.load %arg2[%c2_248, %c5_249] : memref<25x8xf32, #tpu.memory_space<smem>>
    %567 = vector.broadcast %566 : f32 to vector<12x12xf32>
    %568 = arith.mulf %567, %4 : vector<12x12xf32>
    %569 = arith.addf %565, %568 : vector<12x12xf32>
    %c3_250 = arith.constant 3 : index
    %c5_251 = arith.constant 5 : index
    %570 = memref.load %arg2[%c3_250, %c5_251] : memref<25x8xf32, #tpu.memory_space<smem>>
    %571 = vector.broadcast %570 : f32 to vector<12x12xf32>
    %572 = arith.mulf %571, %5 : vector<12x12xf32>
    %573 = arith.addf %569, %572 : vector<12x12xf32>
    %c4_252 = arith.constant 4 : index
    %c5_253 = arith.constant 5 : index
    %574 = memref.load %arg2[%c4_252, %c5_253] : memref<25x8xf32, #tpu.memory_space<smem>>
    %575 = vector.broadcast %574 : f32 to vector<12x12xf32>
    %576 = arith.mulf %575, %6 : vector<12x12xf32>
    %577 = arith.addf %573, %576 : vector<12x12xf32>
    %c5_254 = arith.constant 5 : index
    %c5_255 = arith.constant 5 : index
    %578 = memref.load %arg2[%c5_254, %c5_255] : memref<25x8xf32, #tpu.memory_space<smem>>
    %579 = vector.broadcast %578 : f32 to vector<12x12xf32>
    %580 = arith.mulf %579, %7 : vector<12x12xf32>
    %581 = arith.addf %577, %580 : vector<12x12xf32>
    %c6_256 = arith.constant 6 : index
    %c5_257 = arith.constant 5 : index
    %582 = memref.load %arg2[%c6_256, %c5_257] : memref<25x8xf32, #tpu.memory_space<smem>>
    %583 = vector.broadcast %582 : f32 to vector<12x12xf32>
    %584 = arith.mulf %583, %8 : vector<12x12xf32>
    %585 = arith.addf %581, %584 : vector<12x12xf32>
    %c7_258 = arith.constant 7 : index
    %c5_259 = arith.constant 5 : index
    %586 = memref.load %arg2[%c7_258, %c5_259] : memref<25x8xf32, #tpu.memory_space<smem>>
    %587 = vector.broadcast %586 : f32 to vector<12x12xf32>
    %588 = arith.mulf %587, %9 : vector<12x12xf32>
    %589 = arith.addf %585, %588 : vector<12x12xf32>
    %c8_260 = arith.constant 8 : index
    %c5_261 = arith.constant 5 : index
    %590 = memref.load %arg2[%c8_260, %c5_261] : memref<25x8xf32, #tpu.memory_space<smem>>
    %591 = vector.broadcast %590 : f32 to vector<12x12xf32>
    %592 = arith.mulf %591, %10 : vector<12x12xf32>
    %593 = arith.addf %589, %592 : vector<12x12xf32>
    %c9_262 = arith.constant 9 : index
    %c5_263 = arith.constant 5 : index
    %594 = memref.load %arg2[%c9_262, %c5_263] : memref<25x8xf32, #tpu.memory_space<smem>>
    %595 = vector.broadcast %594 : f32 to vector<12x12xf32>
    %596 = arith.mulf %595, %11 : vector<12x12xf32>
    %597 = arith.addf %593, %596 : vector<12x12xf32>
    %c10_264 = arith.constant 10 : index
    %c5_265 = arith.constant 5 : index
    %598 = memref.load %arg2[%c10_264, %c5_265] : memref<25x8xf32, #tpu.memory_space<smem>>
    %599 = vector.broadcast %598 : f32 to vector<12x12xf32>
    %600 = arith.mulf %599, %12 : vector<12x12xf32>
    %601 = arith.addf %597, %600 : vector<12x12xf32>
    %c11_266 = arith.constant 11 : index
    %c5_267 = arith.constant 5 : index
    %602 = memref.load %arg2[%c11_266, %c5_267] : memref<25x8xf32, #tpu.memory_space<smem>>
    %603 = vector.broadcast %602 : f32 to vector<12x12xf32>
    %604 = arith.mulf %603, %13 : vector<12x12xf32>
    %605 = arith.addf %601, %604 : vector<12x12xf32>
    %c12_268 = arith.constant 12 : index
    %c5_269 = arith.constant 5 : index
    %606 = memref.load %arg2[%c12_268, %c5_269] : memref<25x8xf32, #tpu.memory_space<smem>>
    %607 = vector.broadcast %606 : f32 to vector<12x12xf32>
    %608 = arith.mulf %607, %14 : vector<12x12xf32>
    %609 = arith.addf %605, %608 : vector<12x12xf32>
    %c13_270 = arith.constant 13 : index
    %c5_271 = arith.constant 5 : index
    %610 = memref.load %arg2[%c13_270, %c5_271] : memref<25x8xf32, #tpu.memory_space<smem>>
    %611 = vector.broadcast %610 : f32 to vector<12x12xf32>
    %612 = arith.mulf %611, %15 : vector<12x12xf32>
    %613 = arith.addf %609, %612 : vector<12x12xf32>
    %c14_272 = arith.constant 14 : index
    %c5_273 = arith.constant 5 : index
    %614 = memref.load %arg2[%c14_272, %c5_273] : memref<25x8xf32, #tpu.memory_space<smem>>
    %615 = vector.broadcast %614 : f32 to vector<12x12xf32>
    %616 = arith.mulf %615, %16 : vector<12x12xf32>
    %617 = arith.addf %613, %616 : vector<12x12xf32>
    %c15_274 = arith.constant 15 : index
    %c5_275 = arith.constant 5 : index
    %618 = memref.load %arg2[%c15_274, %c5_275] : memref<25x8xf32, #tpu.memory_space<smem>>
    %619 = vector.broadcast %618 : f32 to vector<12x12xf32>
    %620 = arith.mulf %619, %17 : vector<12x12xf32>
    %621 = arith.addf %617, %620 : vector<12x12xf32>
    %c16_276 = arith.constant 16 : index
    %c5_277 = arith.constant 5 : index
    %622 = memref.load %arg2[%c16_276, %c5_277] : memref<25x8xf32, #tpu.memory_space<smem>>
    %623 = vector.broadcast %622 : f32 to vector<12x12xf32>
    %624 = arith.mulf %623, %18 : vector<12x12xf32>
    %625 = arith.addf %621, %624 : vector<12x12xf32>
    %c17_278 = arith.constant 17 : index
    %c5_279 = arith.constant 5 : index
    %626 = memref.load %arg2[%c17_278, %c5_279] : memref<25x8xf32, #tpu.memory_space<smem>>
    %627 = vector.broadcast %626 : f32 to vector<12x12xf32>
    %628 = arith.mulf %627, %19 : vector<12x12xf32>
    %629 = arith.addf %625, %628 : vector<12x12xf32>
    %c18_280 = arith.constant 18 : index
    %c5_281 = arith.constant 5 : index
    %630 = memref.load %arg2[%c18_280, %c5_281] : memref<25x8xf32, #tpu.memory_space<smem>>
    %631 = vector.broadcast %630 : f32 to vector<12x12xf32>
    %632 = arith.mulf %631, %20 : vector<12x12xf32>
    %633 = arith.addf %629, %632 : vector<12x12xf32>
    %c19_282 = arith.constant 19 : index
    %c5_283 = arith.constant 5 : index
    %634 = memref.load %arg2[%c19_282, %c5_283] : memref<25x8xf32, #tpu.memory_space<smem>>
    %635 = vector.broadcast %634 : f32 to vector<12x12xf32>
    %636 = arith.mulf %635, %21 : vector<12x12xf32>
    %637 = arith.addf %633, %636 : vector<12x12xf32>
    %c20_284 = arith.constant 20 : index
    %c5_285 = arith.constant 5 : index
    %638 = memref.load %arg2[%c20_284, %c5_285] : memref<25x8xf32, #tpu.memory_space<smem>>
    %639 = vector.broadcast %638 : f32 to vector<12x12xf32>
    %640 = arith.mulf %639, %22 : vector<12x12xf32>
    %641 = arith.addf %637, %640 : vector<12x12xf32>
    %c21_286 = arith.constant 21 : index
    %c5_287 = arith.constant 5 : index
    %642 = memref.load %arg2[%c21_286, %c5_287] : memref<25x8xf32, #tpu.memory_space<smem>>
    %643 = vector.broadcast %642 : f32 to vector<12x12xf32>
    %644 = arith.mulf %643, %23 : vector<12x12xf32>
    %645 = arith.addf %641, %644 : vector<12x12xf32>
    %c22_288 = arith.constant 22 : index
    %c5_289 = arith.constant 5 : index
    %646 = memref.load %arg2[%c22_288, %c5_289] : memref<25x8xf32, #tpu.memory_space<smem>>
    %647 = vector.broadcast %646 : f32 to vector<12x12xf32>
    %648 = arith.mulf %647, %24 : vector<12x12xf32>
    %649 = arith.addf %645, %648 : vector<12x12xf32>
    %c23_290 = arith.constant 23 : index
    %c5_291 = arith.constant 5 : index
    %650 = memref.load %arg2[%c23_290, %c5_291] : memref<25x8xf32, #tpu.memory_space<smem>>
    %651 = vector.broadcast %650 : f32 to vector<12x12xf32>
    %652 = arith.mulf %651, %25 : vector<12x12xf32>
    %653 = arith.addf %649, %652 : vector<12x12xf32>
    %c24_292 = arith.constant 24 : index
    %c5_293 = arith.constant 5 : index
    %654 = memref.load %arg2[%c24_292, %c5_293] : memref<25x8xf32, #tpu.memory_space<smem>>
    %655 = vector.broadcast %654 : f32 to vector<12x12xf32>
    %656 = arith.mulf %655, %26 : vector<12x12xf32>
    %657 = arith.addf %653, %656 : vector<12x12xf32>
    %c5_294 = arith.constant 5 : index
    %658 = memref.load %arg3[%c5_294] : memref<8xf32, #tpu.memory_space<smem>>
    %659 = vector.broadcast %658 : f32 to vector<12x12xf32>
    %660 = arith.addf %657, %659 : vector<12x12xf32>
    %cst_295 = arith.constant 0.000000e+00 : f32
    %661 = vector.broadcast %cst_295 : f32 to vector<12x12xf32>
    %662 = arith.maximumf %660, %661 : vector<12x12xf32>
    %cst_296 = arith.constant 0.000000e+00 : f32
    %663 = vector.broadcast %cst_296 : f32 to vector<12x12xf32>
    %c0_297 = arith.constant 0 : index
    %c6_298 = arith.constant 6 : index
    %664 = memref.load %arg2[%c0_297, %c6_298] : memref<25x8xf32, #tpu.memory_space<smem>>
    %665 = vector.broadcast %664 : f32 to vector<12x12xf32>
    %666 = arith.mulf %665, %2 : vector<12x12xf32>
    %667 = arith.addf %663, %666 : vector<12x12xf32>
    %c1_299 = arith.constant 1 : index
    %c6_300 = arith.constant 6 : index
    %668 = memref.load %arg2[%c1_299, %c6_300] : memref<25x8xf32, #tpu.memory_space<smem>>
    %669 = vector.broadcast %668 : f32 to vector<12x12xf32>
    %670 = arith.mulf %669, %3 : vector<12x12xf32>
    %671 = arith.addf %667, %670 : vector<12x12xf32>
    %c2_301 = arith.constant 2 : index
    %c6_302 = arith.constant 6 : index
    %672 = memref.load %arg2[%c2_301, %c6_302] : memref<25x8xf32, #tpu.memory_space<smem>>
    %673 = vector.broadcast %672 : f32 to vector<12x12xf32>
    %674 = arith.mulf %673, %4 : vector<12x12xf32>
    %675 = arith.addf %671, %674 : vector<12x12xf32>
    %c3_303 = arith.constant 3 : index
    %c6_304 = arith.constant 6 : index
    %676 = memref.load %arg2[%c3_303, %c6_304] : memref<25x8xf32, #tpu.memory_space<smem>>
    %677 = vector.broadcast %676 : f32 to vector<12x12xf32>
    %678 = arith.mulf %677, %5 : vector<12x12xf32>
    %679 = arith.addf %675, %678 : vector<12x12xf32>
    %c4_305 = arith.constant 4 : index
    %c6_306 = arith.constant 6 : index
    %680 = memref.load %arg2[%c4_305, %c6_306] : memref<25x8xf32, #tpu.memory_space<smem>>
    %681 = vector.broadcast %680 : f32 to vector<12x12xf32>
    %682 = arith.mulf %681, %6 : vector<12x12xf32>
    %683 = arith.addf %679, %682 : vector<12x12xf32>
    %c5_307 = arith.constant 5 : index
    %c6_308 = arith.constant 6 : index
    %684 = memref.load %arg2[%c5_307, %c6_308] : memref<25x8xf32, #tpu.memory_space<smem>>
    %685 = vector.broadcast %684 : f32 to vector<12x12xf32>
    %686 = arith.mulf %685, %7 : vector<12x12xf32>
    %687 = arith.addf %683, %686 : vector<12x12xf32>
    %c6_309 = arith.constant 6 : index
    %c6_310 = arith.constant 6 : index
    %688 = memref.load %arg2[%c6_309, %c6_310] : memref<25x8xf32, #tpu.memory_space<smem>>
    %689 = vector.broadcast %688 : f32 to vector<12x12xf32>
    %690 = arith.mulf %689, %8 : vector<12x12xf32>
    %691 = arith.addf %687, %690 : vector<12x12xf32>
    %c7_311 = arith.constant 7 : index
    %c6_312 = arith.constant 6 : index
    %692 = memref.load %arg2[%c7_311, %c6_312] : memref<25x8xf32, #tpu.memory_space<smem>>
    %693 = vector.broadcast %692 : f32 to vector<12x12xf32>
    %694 = arith.mulf %693, %9 : vector<12x12xf32>
    %695 = arith.addf %691, %694 : vector<12x12xf32>
    %c8_313 = arith.constant 8 : index
    %c6_314 = arith.constant 6 : index
    %696 = memref.load %arg2[%c8_313, %c6_314] : memref<25x8xf32, #tpu.memory_space<smem>>
    %697 = vector.broadcast %696 : f32 to vector<12x12xf32>
    %698 = arith.mulf %697, %10 : vector<12x12xf32>
    %699 = arith.addf %695, %698 : vector<12x12xf32>
    %c9_315 = arith.constant 9 : index
    %c6_316 = arith.constant 6 : index
    %700 = memref.load %arg2[%c9_315, %c6_316] : memref<25x8xf32, #tpu.memory_space<smem>>
    %701 = vector.broadcast %700 : f32 to vector<12x12xf32>
    %702 = arith.mulf %701, %11 : vector<12x12xf32>
    %703 = arith.addf %699, %702 : vector<12x12xf32>
    %c10_317 = arith.constant 10 : index
    %c6_318 = arith.constant 6 : index
    %704 = memref.load %arg2[%c10_317, %c6_318] : memref<25x8xf32, #tpu.memory_space<smem>>
    %705 = vector.broadcast %704 : f32 to vector<12x12xf32>
    %706 = arith.mulf %705, %12 : vector<12x12xf32>
    %707 = arith.addf %703, %706 : vector<12x12xf32>
    %c11_319 = arith.constant 11 : index
    %c6_320 = arith.constant 6 : index
    %708 = memref.load %arg2[%c11_319, %c6_320] : memref<25x8xf32, #tpu.memory_space<smem>>
    %709 = vector.broadcast %708 : f32 to vector<12x12xf32>
    %710 = arith.mulf %709, %13 : vector<12x12xf32>
    %711 = arith.addf %707, %710 : vector<12x12xf32>
    %c12_321 = arith.constant 12 : index
    %c6_322 = arith.constant 6 : index
    %712 = memref.load %arg2[%c12_321, %c6_322] : memref<25x8xf32, #tpu.memory_space<smem>>
    %713 = vector.broadcast %712 : f32 to vector<12x12xf32>
    %714 = arith.mulf %713, %14 : vector<12x12xf32>
    %715 = arith.addf %711, %714 : vector<12x12xf32>
    %c13_323 = arith.constant 13 : index
    %c6_324 = arith.constant 6 : index
    %716 = memref.load %arg2[%c13_323, %c6_324] : memref<25x8xf32, #tpu.memory_space<smem>>
    %717 = vector.broadcast %716 : f32 to vector<12x12xf32>
    %718 = arith.mulf %717, %15 : vector<12x12xf32>
    %719 = arith.addf %715, %718 : vector<12x12xf32>
    %c14_325 = arith.constant 14 : index
    %c6_326 = arith.constant 6 : index
    %720 = memref.load %arg2[%c14_325, %c6_326] : memref<25x8xf32, #tpu.memory_space<smem>>
    %721 = vector.broadcast %720 : f32 to vector<12x12xf32>
    %722 = arith.mulf %721, %16 : vector<12x12xf32>
    %723 = arith.addf %719, %722 : vector<12x12xf32>
    %c15_327 = arith.constant 15 : index
    %c6_328 = arith.constant 6 : index
    %724 = memref.load %arg2[%c15_327, %c6_328] : memref<25x8xf32, #tpu.memory_space<smem>>
    %725 = vector.broadcast %724 : f32 to vector<12x12xf32>
    %726 = arith.mulf %725, %17 : vector<12x12xf32>
    %727 = arith.addf %723, %726 : vector<12x12xf32>
    %c16_329 = arith.constant 16 : index
    %c6_330 = arith.constant 6 : index
    %728 = memref.load %arg2[%c16_329, %c6_330] : memref<25x8xf32, #tpu.memory_space<smem>>
    %729 = vector.broadcast %728 : f32 to vector<12x12xf32>
    %730 = arith.mulf %729, %18 : vector<12x12xf32>
    %731 = arith.addf %727, %730 : vector<12x12xf32>
    %c17_331 = arith.constant 17 : index
    %c6_332 = arith.constant 6 : index
    %732 = memref.load %arg2[%c17_331, %c6_332] : memref<25x8xf32, #tpu.memory_space<smem>>
    %733 = vector.broadcast %732 : f32 to vector<12x12xf32>
    %734 = arith.mulf %733, %19 : vector<12x12xf32>
    %735 = arith.addf %731, %734 : vector<12x12xf32>
    %c18_333 = arith.constant 18 : index
    %c6_334 = arith.constant 6 : index
    %736 = memref.load %arg2[%c18_333, %c6_334] : memref<25x8xf32, #tpu.memory_space<smem>>
    %737 = vector.broadcast %736 : f32 to vector<12x12xf32>
    %738 = arith.mulf %737, %20 : vector<12x12xf32>
    %739 = arith.addf %735, %738 : vector<12x12xf32>
    %c19_335 = arith.constant 19 : index
    %c6_336 = arith.constant 6 : index
    %740 = memref.load %arg2[%c19_335, %c6_336] : memref<25x8xf32, #tpu.memory_space<smem>>
    %741 = vector.broadcast %740 : f32 to vector<12x12xf32>
    %742 = arith.mulf %741, %21 : vector<12x12xf32>
    %743 = arith.addf %739, %742 : vector<12x12xf32>
    %c20_337 = arith.constant 20 : index
    %c6_338 = arith.constant 6 : index
    %744 = memref.load %arg2[%c20_337, %c6_338] : memref<25x8xf32, #tpu.memory_space<smem>>
    %745 = vector.broadcast %744 : f32 to vector<12x12xf32>
    %746 = arith.mulf %745, %22 : vector<12x12xf32>
    %747 = arith.addf %743, %746 : vector<12x12xf32>
    %c21_339 = arith.constant 21 : index
    %c6_340 = arith.constant 6 : index
    %748 = memref.load %arg2[%c21_339, %c6_340] : memref<25x8xf32, #tpu.memory_space<smem>>
    %749 = vector.broadcast %748 : f32 to vector<12x12xf32>
    %750 = arith.mulf %749, %23 : vector<12x12xf32>
    %751 = arith.addf %747, %750 : vector<12x12xf32>
    %c22_341 = arith.constant 22 : index
    %c6_342 = arith.constant 6 : index
    %752 = memref.load %arg2[%c22_341, %c6_342] : memref<25x8xf32, #tpu.memory_space<smem>>
    %753 = vector.broadcast %752 : f32 to vector<12x12xf32>
    %754 = arith.mulf %753, %24 : vector<12x12xf32>
    %755 = arith.addf %751, %754 : vector<12x12xf32>
    %c23_343 = arith.constant 23 : index
    %c6_344 = arith.constant 6 : index
    %756 = memref.load %arg2[%c23_343, %c6_344] : memref<25x8xf32, #tpu.memory_space<smem>>
    %757 = vector.broadcast %756 : f32 to vector<12x12xf32>
    %758 = arith.mulf %757, %25 : vector<12x12xf32>
    %759 = arith.addf %755, %758 : vector<12x12xf32>
    %c24_345 = arith.constant 24 : index
    %c6_346 = arith.constant 6 : index
    %760 = memref.load %arg2[%c24_345, %c6_346] : memref<25x8xf32, #tpu.memory_space<smem>>
    %761 = vector.broadcast %760 : f32 to vector<12x12xf32>
    %762 = arith.mulf %761, %26 : vector<12x12xf32>
    %763 = arith.addf %759, %762 : vector<12x12xf32>
    %c6_347 = arith.constant 6 : index
    %764 = memref.load %arg3[%c6_347] : memref<8xf32, #tpu.memory_space<smem>>
    %765 = vector.broadcast %764 : f32 to vector<12x12xf32>
    %766 = arith.addf %763, %765 : vector<12x12xf32>
    %cst_348 = arith.constant 0.000000e+00 : f32
    %767 = vector.broadcast %cst_348 : f32 to vector<12x12xf32>
    %768 = arith.maximumf %766, %767 : vector<12x12xf32>
    %cst_349 = arith.constant 0.000000e+00 : f32
    %769 = vector.broadcast %cst_349 : f32 to vector<12x12xf32>
    %c0_350 = arith.constant 0 : index
    %c7_351 = arith.constant 7 : index
    %770 = memref.load %arg2[%c0_350, %c7_351] : memref<25x8xf32, #tpu.memory_space<smem>>
    %771 = vector.broadcast %770 : f32 to vector<12x12xf32>
    %772 = arith.mulf %771, %2 : vector<12x12xf32>
    %773 = arith.addf %769, %772 : vector<12x12xf32>
    %c1_352 = arith.constant 1 : index
    %c7_353 = arith.constant 7 : index
    %774 = memref.load %arg2[%c1_352, %c7_353] : memref<25x8xf32, #tpu.memory_space<smem>>
    %775 = vector.broadcast %774 : f32 to vector<12x12xf32>
    %776 = arith.mulf %775, %3 : vector<12x12xf32>
    %777 = arith.addf %773, %776 : vector<12x12xf32>
    %c2_354 = arith.constant 2 : index
    %c7_355 = arith.constant 7 : index
    %778 = memref.load %arg2[%c2_354, %c7_355] : memref<25x8xf32, #tpu.memory_space<smem>>
    %779 = vector.broadcast %778 : f32 to vector<12x12xf32>
    %780 = arith.mulf %779, %4 : vector<12x12xf32>
    %781 = arith.addf %777, %780 : vector<12x12xf32>
    %c3_356 = arith.constant 3 : index
    %c7_357 = arith.constant 7 : index
    %782 = memref.load %arg2[%c3_356, %c7_357] : memref<25x8xf32, #tpu.memory_space<smem>>
    %783 = vector.broadcast %782 : f32 to vector<12x12xf32>
    %784 = arith.mulf %783, %5 : vector<12x12xf32>
    %785 = arith.addf %781, %784 : vector<12x12xf32>
    %c4_358 = arith.constant 4 : index
    %c7_359 = arith.constant 7 : index
    %786 = memref.load %arg2[%c4_358, %c7_359] : memref<25x8xf32, #tpu.memory_space<smem>>
    %787 = vector.broadcast %786 : f32 to vector<12x12xf32>
    %788 = arith.mulf %787, %6 : vector<12x12xf32>
    %789 = arith.addf %785, %788 : vector<12x12xf32>
    %c5_360 = arith.constant 5 : index
    %c7_361 = arith.constant 7 : index
    %790 = memref.load %arg2[%c5_360, %c7_361] : memref<25x8xf32, #tpu.memory_space<smem>>
    %791 = vector.broadcast %790 : f32 to vector<12x12xf32>
    %792 = arith.mulf %791, %7 : vector<12x12xf32>
    %793 = arith.addf %789, %792 : vector<12x12xf32>
    %c6_362 = arith.constant 6 : index
    %c7_363 = arith.constant 7 : index
    %794 = memref.load %arg2[%c6_362, %c7_363] : memref<25x8xf32, #tpu.memory_space<smem>>
    %795 = vector.broadcast %794 : f32 to vector<12x12xf32>
    %796 = arith.mulf %795, %8 : vector<12x12xf32>
    %797 = arith.addf %793, %796 : vector<12x12xf32>
    %c7_364 = arith.constant 7 : index
    %c7_365 = arith.constant 7 : index
    %798 = memref.load %arg2[%c7_364, %c7_365] : memref<25x8xf32, #tpu.memory_space<smem>>
    %799 = vector.broadcast %798 : f32 to vector<12x12xf32>
    %800 = arith.mulf %799, %9 : vector<12x12xf32>
    %801 = arith.addf %797, %800 : vector<12x12xf32>
    %c8_366 = arith.constant 8 : index
    %c7_367 = arith.constant 7 : index
    %802 = memref.load %arg2[%c8_366, %c7_367] : memref<25x8xf32, #tpu.memory_space<smem>>
    %803 = vector.broadcast %802 : f32 to vector<12x12xf32>
    %804 = arith.mulf %803, %10 : vector<12x12xf32>
    %805 = arith.addf %801, %804 : vector<12x12xf32>
    %c9_368 = arith.constant 9 : index
    %c7_369 = arith.constant 7 : index
    %806 = memref.load %arg2[%c9_368, %c7_369] : memref<25x8xf32, #tpu.memory_space<smem>>
    %807 = vector.broadcast %806 : f32 to vector<12x12xf32>
    %808 = arith.mulf %807, %11 : vector<12x12xf32>
    %809 = arith.addf %805, %808 : vector<12x12xf32>
    %c10_370 = arith.constant 10 : index
    %c7_371 = arith.constant 7 : index
    %810 = memref.load %arg2[%c10_370, %c7_371] : memref<25x8xf32, #tpu.memory_space<smem>>
    %811 = vector.broadcast %810 : f32 to vector<12x12xf32>
    %812 = arith.mulf %811, %12 : vector<12x12xf32>
    %813 = arith.addf %809, %812 : vector<12x12xf32>
    %c11_372 = arith.constant 11 : index
    %c7_373 = arith.constant 7 : index
    %814 = memref.load %arg2[%c11_372, %c7_373] : memref<25x8xf32, #tpu.memory_space<smem>>
    %815 = vector.broadcast %814 : f32 to vector<12x12xf32>
    %816 = arith.mulf %815, %13 : vector<12x12xf32>
    %817 = arith.addf %813, %816 : vector<12x12xf32>
    %c12_374 = arith.constant 12 : index
    %c7_375 = arith.constant 7 : index
    %818 = memref.load %arg2[%c12_374, %c7_375] : memref<25x8xf32, #tpu.memory_space<smem>>
    %819 = vector.broadcast %818 : f32 to vector<12x12xf32>
    %820 = arith.mulf %819, %14 : vector<12x12xf32>
    %821 = arith.addf %817, %820 : vector<12x12xf32>
    %c13_376 = arith.constant 13 : index
    %c7_377 = arith.constant 7 : index
    %822 = memref.load %arg2[%c13_376, %c7_377] : memref<25x8xf32, #tpu.memory_space<smem>>
    %823 = vector.broadcast %822 : f32 to vector<12x12xf32>
    %824 = arith.mulf %823, %15 : vector<12x12xf32>
    %825 = arith.addf %821, %824 : vector<12x12xf32>
    %c14_378 = arith.constant 14 : index
    %c7_379 = arith.constant 7 : index
    %826 = memref.load %arg2[%c14_378, %c7_379] : memref<25x8xf32, #tpu.memory_space<smem>>
    %827 = vector.broadcast %826 : f32 to vector<12x12xf32>
    %828 = arith.mulf %827, %16 : vector<12x12xf32>
    %829 = arith.addf %825, %828 : vector<12x12xf32>
    %c15_380 = arith.constant 15 : index
    %c7_381 = arith.constant 7 : index
    %830 = memref.load %arg2[%c15_380, %c7_381] : memref<25x8xf32, #tpu.memory_space<smem>>
    %831 = vector.broadcast %830 : f32 to vector<12x12xf32>
    %832 = arith.mulf %831, %17 : vector<12x12xf32>
    %833 = arith.addf %829, %832 : vector<12x12xf32>
    %c16_382 = arith.constant 16 : index
    %c7_383 = arith.constant 7 : index
    %834 = memref.load %arg2[%c16_382, %c7_383] : memref<25x8xf32, #tpu.memory_space<smem>>
    %835 = vector.broadcast %834 : f32 to vector<12x12xf32>
    %836 = arith.mulf %835, %18 : vector<12x12xf32>
    %837 = arith.addf %833, %836 : vector<12x12xf32>
    %c17_384 = arith.constant 17 : index
    %c7_385 = arith.constant 7 : index
    %838 = memref.load %arg2[%c17_384, %c7_385] : memref<25x8xf32, #tpu.memory_space<smem>>
    %839 = vector.broadcast %838 : f32 to vector<12x12xf32>
    %840 = arith.mulf %839, %19 : vector<12x12xf32>
    %841 = arith.addf %837, %840 : vector<12x12xf32>
    %c18_386 = arith.constant 18 : index
    %c7_387 = arith.constant 7 : index
    %842 = memref.load %arg2[%c18_386, %c7_387] : memref<25x8xf32, #tpu.memory_space<smem>>
    %843 = vector.broadcast %842 : f32 to vector<12x12xf32>
    %844 = arith.mulf %843, %20 : vector<12x12xf32>
    %845 = arith.addf %841, %844 : vector<12x12xf32>
    %c19_388 = arith.constant 19 : index
    %c7_389 = arith.constant 7 : index
    %846 = memref.load %arg2[%c19_388, %c7_389] : memref<25x8xf32, #tpu.memory_space<smem>>
    %847 = vector.broadcast %846 : f32 to vector<12x12xf32>
    %848 = arith.mulf %847, %21 : vector<12x12xf32>
    %849 = arith.addf %845, %848 : vector<12x12xf32>
    %c20_390 = arith.constant 20 : index
    %c7_391 = arith.constant 7 : index
    %850 = memref.load %arg2[%c20_390, %c7_391] : memref<25x8xf32, #tpu.memory_space<smem>>
    %851 = vector.broadcast %850 : f32 to vector<12x12xf32>
    %852 = arith.mulf %851, %22 : vector<12x12xf32>
    %853 = arith.addf %849, %852 : vector<12x12xf32>
    %c21_392 = arith.constant 21 : index
    %c7_393 = arith.constant 7 : index
    %854 = memref.load %arg2[%c21_392, %c7_393] : memref<25x8xf32, #tpu.memory_space<smem>>
    %855 = vector.broadcast %854 : f32 to vector<12x12xf32>
    %856 = arith.mulf %855, %23 : vector<12x12xf32>
    %857 = arith.addf %853, %856 : vector<12x12xf32>
    %c22_394 = arith.constant 22 : index
    %c7_395 = arith.constant 7 : index
    %858 = memref.load %arg2[%c22_394, %c7_395] : memref<25x8xf32, #tpu.memory_space<smem>>
    %859 = vector.broadcast %858 : f32 to vector<12x12xf32>
    %860 = arith.mulf %859, %24 : vector<12x12xf32>
    %861 = arith.addf %857, %860 : vector<12x12xf32>
    %c23_396 = arith.constant 23 : index
    %c7_397 = arith.constant 7 : index
    %862 = memref.load %arg2[%c23_396, %c7_397] : memref<25x8xf32, #tpu.memory_space<smem>>
    %863 = vector.broadcast %862 : f32 to vector<12x12xf32>
    %864 = arith.mulf %863, %25 : vector<12x12xf32>
    %865 = arith.addf %861, %864 : vector<12x12xf32>
    %c24_398 = arith.constant 24 : index
    %c7_399 = arith.constant 7 : index
    %866 = memref.load %arg2[%c24_398, %c7_399] : memref<25x8xf32, #tpu.memory_space<smem>>
    %867 = vector.broadcast %866 : f32 to vector<12x12xf32>
    %868 = arith.mulf %867, %26 : vector<12x12xf32>
    %869 = arith.addf %865, %868 : vector<12x12xf32>
    %c7_400 = arith.constant 7 : index
    %870 = memref.load %arg3[%c7_400] : memref<8xf32, #tpu.memory_space<smem>>
    %871 = vector.broadcast %870 : f32 to vector<12x12xf32>
    %872 = arith.addf %869, %871 : vector<12x12xf32>
    %cst_401 = arith.constant 0.000000e+00 : f32
    %873 = vector.broadcast %cst_401 : f32 to vector<12x12xf32>
    %874 = arith.maximumf %872, %873 : vector<12x12xf32>
    %875 = vector.shape_cast %132 : vector<12x12xf32> to vector<1x12x12xf32>
    %876 = vector.shape_cast %238 : vector<12x12xf32> to vector<1x12x12xf32>
    %877 = vector.shape_cast %344 : vector<12x12xf32> to vector<1x12x12xf32>
    %878 = vector.shape_cast %450 : vector<12x12xf32> to vector<1x12x12xf32>
    %879 = vector.shape_cast %556 : vector<12x12xf32> to vector<1x12x12xf32>
    %880 = vector.shape_cast %662 : vector<12x12xf32> to vector<1x12x12xf32>
    %881 = vector.shape_cast %768 : vector<12x12xf32> to vector<1x12x12xf32>
    %882 = vector.shape_cast %874 : vector<12x12xf32> to vector<1x12x12xf32>
    %883 = tpu.concatenate %875, %876, %877, %878, %879, %880, %881, %882 in 0 : vector<1x12x12xf32>, vector<1x12x12xf32>, vector<1x12x12xf32>, vector<1x12x12xf32>, vector<1x12x12xf32>, vector<1x12x12xf32>, vector<1x12x12xf32>, vector<1x12x12xf32> -> vector<8x12x12xf32>
    %884 = vector.extract_strided_slice %883 {offsets = [0, 0, 0], sizes = [8, 1, 12], strides = [1, 1, 1]} : vector<8x12x12xf32> to vector<8x1x12xf32>
    %885 = vector.shape_cast %884 : vector<8x1x12xf32> to vector<8x12xf32>
    %886 = vector.extract_strided_slice %883 {offsets = [0, 1, 0], sizes = [8, 1, 12], strides = [1, 1, 1]} : vector<8x12x12xf32> to vector<8x1x12xf32>
    %887 = vector.shape_cast %886 : vector<8x1x12xf32> to vector<8x12xf32>
    %888 = arith.maximumf %885, %887 : vector<8x12xf32>
    %889 = vector.extract_strided_slice %883 {offsets = [0, 2, 0], sizes = [8, 1, 12], strides = [1, 1, 1]} : vector<8x12x12xf32> to vector<8x1x12xf32>
    %890 = vector.shape_cast %889 : vector<8x1x12xf32> to vector<8x12xf32>
    %891 = arith.maximumf %888, %890 : vector<8x12xf32>
    %892 = vector.extract_strided_slice %883 {offsets = [0, 2, 0], sizes = [8, 1, 12], strides = [1, 1, 1]} : vector<8x12x12xf32> to vector<8x1x12xf32>
    %893 = vector.shape_cast %892 : vector<8x1x12xf32> to vector<8x12xf32>
    %894 = vector.extract_strided_slice %883 {offsets = [0, 3, 0], sizes = [8, 1, 12], strides = [1, 1, 1]} : vector<8x12x12xf32> to vector<8x1x12xf32>
    %895 = vector.shape_cast %894 : vector<8x1x12xf32> to vector<8x12xf32>
    %896 = arith.maximumf %893, %895 : vector<8x12xf32>
    %897 = vector.extract_strided_slice %883 {offsets = [0, 4, 0], sizes = [8, 1, 12], strides = [1, 1, 1]} : vector<8x12x12xf32> to vector<8x1x12xf32>
    %898 = vector.shape_cast %897 : vector<8x1x12xf32> to vector<8x12xf32>
    %899 = arith.maximumf %896, %898 : vector<8x12xf32>
    %900 = vector.extract_strided_slice %883 {offsets = [0, 4, 0], sizes = [8, 1, 12], strides = [1, 1, 1]} : vector<8x12x12xf32> to vector<8x1x12xf32>
    %901 = vector.shape_cast %900 : vector<8x1x12xf32> to vector<8x12xf32>
    %902 = vector.extract_strided_slice %883 {offsets = [0, 5, 0], sizes = [8, 1, 12], strides = [1, 1, 1]} : vector<8x12x12xf32> to vector<8x1x12xf32>
    %903 = vector.shape_cast %902 : vector<8x1x12xf32> to vector<8x12xf32>
    %904 = arith.maximumf %901, %903 : vector<8x12xf32>
    %905 = vector.extract_strided_slice %883 {offsets = [0, 6, 0], sizes = [8, 1, 12], strides = [1, 1, 1]} : vector<8x12x12xf32> to vector<8x1x12xf32>
    %906 = vector.shape_cast %905 : vector<8x1x12xf32> to vector<8x12xf32>
    %907 = arith.maximumf %904, %906 : vector<8x12xf32>
    %908 = vector.extract_strided_slice %883 {offsets = [0, 6, 0], sizes = [8, 1, 12], strides = [1, 1, 1]} : vector<8x12x12xf32> to vector<8x1x12xf32>
    %909 = vector.shape_cast %908 : vector<8x1x12xf32> to vector<8x12xf32>
    %910 = vector.extract_strided_slice %883 {offsets = [0, 7, 0], sizes = [8, 1, 12], strides = [1, 1, 1]} : vector<8x12x12xf32> to vector<8x1x12xf32>
    %911 = vector.shape_cast %910 : vector<8x1x12xf32> to vector<8x12xf32>
    %912 = arith.maximumf %909, %911 : vector<8x12xf32>
    %913 = vector.extract_strided_slice %883 {offsets = [0, 8, 0], sizes = [8, 1, 12], strides = [1, 1, 1]} : vector<8x12x12xf32> to vector<8x1x12xf32>
    %914 = vector.shape_cast %913 : vector<8x1x12xf32> to vector<8x12xf32>
    %915 = arith.maximumf %912, %914 : vector<8x12xf32>
    %916 = vector.extract_strided_slice %883 {offsets = [0, 8, 0], sizes = [8, 1, 12], strides = [1, 1, 1]} : vector<8x12x12xf32> to vector<8x1x12xf32>
    %917 = vector.shape_cast %916 : vector<8x1x12xf32> to vector<8x12xf32>
    %918 = vector.extract_strided_slice %883 {offsets = [0, 9, 0], sizes = [8, 1, 12], strides = [1, 1, 1]} : vector<8x12x12xf32> to vector<8x1x12xf32>
    %919 = vector.shape_cast %918 : vector<8x1x12xf32> to vector<8x12xf32>
    %920 = arith.maximumf %917, %919 : vector<8x12xf32>
    %921 = vector.extract_strided_slice %883 {offsets = [0, 10, 0], sizes = [8, 1, 12], strides = [1, 1, 1]} : vector<8x12x12xf32> to vector<8x1x12xf32>
    %922 = vector.shape_cast %921 : vector<8x1x12xf32> to vector<8x12xf32>
    %923 = arith.maximumf %920, %922 : vector<8x12xf32>
    %924 = vector.shape_cast %891 : vector<8x12xf32> to vector<8x1x12xf32>
    %925 = vector.shape_cast %899 : vector<8x12xf32> to vector<8x1x12xf32>
    %926 = vector.shape_cast %907 : vector<8x12xf32> to vector<8x1x12xf32>
    %927 = vector.shape_cast %915 : vector<8x12xf32> to vector<8x1x12xf32>
    %928 = vector.shape_cast %923 : vector<8x12xf32> to vector<8x1x12xf32>
    %929 = tpu.concatenate %924, %925, %926, %927, %928 in 1 : vector<8x1x12xf32>, vector<8x1x12xf32>, vector<8x1x12xf32>, vector<8x1x12xf32>, vector<8x1x12xf32> -> vector<8x5x12xf32>
    %930 = vector.extract_strided_slice %929 {offsets = [0, 0, 0], sizes = [8, 5, 1], strides = [1, 1, 1]} : vector<8x5x12xf32> to vector<8x5x1xf32>
    %931 = vector.shape_cast %930 : vector<8x5x1xf32> to vector<8x5xf32>
    %932 = vector.extract_strided_slice %929 {offsets = [0, 0, 1], sizes = [8, 5, 1], strides = [1, 1, 1]} : vector<8x5x12xf32> to vector<8x5x1xf32>
    %933 = vector.shape_cast %932 : vector<8x5x1xf32> to vector<8x5xf32>
    %934 = arith.maximumf %931, %933 : vector<8x5xf32>
    %935 = vector.extract_strided_slice %929 {offsets = [0, 0, 2], sizes = [8, 5, 1], strides = [1, 1, 1]} : vector<8x5x12xf32> to vector<8x5x1xf32>
    %936 = vector.shape_cast %935 : vector<8x5x1xf32> to vector<8x5xf32>
    %937 = arith.maximumf %934, %936 : vector<8x5xf32>
    %938 = vector.extract_strided_slice %929 {offsets = [0, 0, 2], sizes = [8, 5, 1], strides = [1, 1, 1]} : vector<8x5x12xf32> to vector<8x5x1xf32>
    %939 = vector.shape_cast %938 : vector<8x5x1xf32> to vector<8x5xf32>
    %940 = vector.extract_strided_slice %929 {offsets = [0, 0, 3], sizes = [8, 5, 1], strides = [1, 1, 1]} : vector<8x5x12xf32> to vector<8x5x1xf32>
    %941 = vector.shape_cast %940 : vector<8x5x1xf32> to vector<8x5xf32>
    %942 = arith.maximumf %939, %941 : vector<8x5xf32>
    %943 = vector.extract_strided_slice %929 {offsets = [0, 0, 4], sizes = [8, 5, 1], strides = [1, 1, 1]} : vector<8x5x12xf32> to vector<8x5x1xf32>
    %944 = vector.shape_cast %943 : vector<8x5x1xf32> to vector<8x5xf32>
    %945 = arith.maximumf %942, %944 : vector<8x5xf32>
    %946 = vector.extract_strided_slice %929 {offsets = [0, 0, 4], sizes = [8, 5, 1], strides = [1, 1, 1]} : vector<8x5x12xf32> to vector<8x5x1xf32>
    %947 = vector.shape_cast %946 : vector<8x5x1xf32> to vector<8x5xf32>
    %948 = vector.extract_strided_slice %929 {offsets = [0, 0, 5], sizes = [8, 5, 1], strides = [1, 1, 1]} : vector<8x5x12xf32> to vector<8x5x1xf32>
    %949 = vector.shape_cast %948 : vector<8x5x1xf32> to vector<8x5xf32>
    %950 = arith.maximumf %947, %949 : vector<8x5xf32>
    %951 = vector.extract_strided_slice %929 {offsets = [0, 0, 6], sizes = [8, 5, 1], strides = [1, 1, 1]} : vector<8x5x12xf32> to vector<8x5x1xf32>
    %952 = vector.shape_cast %951 : vector<8x5x1xf32> to vector<8x5xf32>
    %953 = arith.maximumf %950, %952 : vector<8x5xf32>
    %954 = vector.extract_strided_slice %929 {offsets = [0, 0, 6], sizes = [8, 5, 1], strides = [1, 1, 1]} : vector<8x5x12xf32> to vector<8x5x1xf32>
    %955 = vector.shape_cast %954 : vector<8x5x1xf32> to vector<8x5xf32>
    %956 = vector.extract_strided_slice %929 {offsets = [0, 0, 7], sizes = [8, 5, 1], strides = [1, 1, 1]} : vector<8x5x12xf32> to vector<8x5x1xf32>
    %957 = vector.shape_cast %956 : vector<8x5x1xf32> to vector<8x5xf32>
    %958 = arith.maximumf %955, %957 : vector<8x5xf32>
    %959 = vector.extract_strided_slice %929 {offsets = [0, 0, 8], sizes = [8, 5, 1], strides = [1, 1, 1]} : vector<8x5x12xf32> to vector<8x5x1xf32>
    %960 = vector.shape_cast %959 : vector<8x5x1xf32> to vector<8x5xf32>
    %961 = arith.maximumf %958, %960 : vector<8x5xf32>
    %962 = vector.extract_strided_slice %929 {offsets = [0, 0, 8], sizes = [8, 5, 1], strides = [1, 1, 1]} : vector<8x5x12xf32> to vector<8x5x1xf32>
    %963 = vector.shape_cast %962 : vector<8x5x1xf32> to vector<8x5xf32>
    %964 = vector.extract_strided_slice %929 {offsets = [0, 0, 9], sizes = [8, 5, 1], strides = [1, 1, 1]} : vector<8x5x12xf32> to vector<8x5x1xf32>
    %965 = vector.shape_cast %964 : vector<8x5x1xf32> to vector<8x5xf32>
    %966 = arith.maximumf %963, %965 : vector<8x5xf32>
    %967 = vector.extract_strided_slice %929 {offsets = [0, 0, 10], sizes = [8, 5, 1], strides = [1, 1, 1]} : vector<8x5x12xf32> to vector<8x5x1xf32>
    %968 = vector.shape_cast %967 : vector<8x5x1xf32> to vector<8x5xf32>
    %969 = arith.maximumf %966, %968 : vector<8x5xf32>
    %970 = vector.shape_cast %937 : vector<8x5xf32> to vector<8x5x1xf32>
    %971 = vector.shape_cast %945 : vector<8x5xf32> to vector<8x5x1xf32>
    %972 = vector.shape_cast %953 : vector<8x5xf32> to vector<8x5x1xf32>
    %973 = vector.shape_cast %961 : vector<8x5xf32> to vector<8x5x1xf32>
    %974 = vector.shape_cast %969 : vector<8x5xf32> to vector<8x5x1xf32>
    %975 = tpu.concatenate %970, %971, %972, %973, %974 in 2 : vector<8x5x1xf32>, vector<8x5x1xf32>, vector<8x5x1xf32>, vector<8x5x1xf32>, vector<8x5x1xf32> -> vector<8x5x5xf32>
    %976 = vector.extract_strided_slice %975 {offsets = [0, 0, 0], sizes = [8, 3, 3], strides = [1, 1, 1]} : vector<8x5x5xf32> to vector<8x3x3xf32>
    %977 = vector.extract_strided_slice %976 {offsets = [0, 0, 0], sizes = [8, 1, 3], strides = [1, 1, 1]} : vector<8x3x3xf32> to vector<8x1x3xf32>
    %978 = vector.shape_cast %977 : vector<8x1x3xf32> to vector<8x3xf32>
    %979 = vector.extract_strided_slice %976 {offsets = [0, 1, 0], sizes = [8, 1, 3], strides = [1, 1, 1]} : vector<8x3x3xf32> to vector<8x1x3xf32>
    %980 = vector.shape_cast %979 : vector<8x1x3xf32> to vector<8x3xf32>
    %981 = vector.extract_strided_slice %976 {offsets = [0, 2, 0], sizes = [8, 1, 3], strides = [1, 1, 1]} : vector<8x3x3xf32> to vector<8x1x3xf32>
    %982 = vector.shape_cast %981 : vector<8x1x3xf32> to vector<8x3xf32>
    %983 = tpu.concatenate %978, %980, %982 in 1 : vector<8x3xf32>, vector<8x3xf32>, vector<8x3xf32> -> vector<8x9xf32>
    %984 = vector.extract_strided_slice %975 {offsets = [0, 0, 1], sizes = [8, 3, 3], strides = [1, 1, 1]} : vector<8x5x5xf32> to vector<8x3x3xf32>
    %985 = vector.extract_strided_slice %984 {offsets = [0, 0, 0], sizes = [8, 1, 3], strides = [1, 1, 1]} : vector<8x3x3xf32> to vector<8x1x3xf32>
    %986 = vector.shape_cast %985 : vector<8x1x3xf32> to vector<8x3xf32>
    %987 = vector.extract_strided_slice %984 {offsets = [0, 1, 0], sizes = [8, 1, 3], strides = [1, 1, 1]} : vector<8x3x3xf32> to vector<8x1x3xf32>
    %988 = vector.shape_cast %987 : vector<8x1x3xf32> to vector<8x3xf32>
    %989 = vector.extract_strided_slice %984 {offsets = [0, 2, 0], sizes = [8, 1, 3], strides = [1, 1, 1]} : vector<8x3x3xf32> to vector<8x1x3xf32>
    %990 = vector.shape_cast %989 : vector<8x1x3xf32> to vector<8x3xf32>
    %991 = tpu.concatenate %986, %988, %990 in 1 : vector<8x3xf32>, vector<8x3xf32>, vector<8x3xf32> -> vector<8x9xf32>
    %992 = vector.extract_strided_slice %975 {offsets = [0, 0, 2], sizes = [8, 3, 3], strides = [1, 1, 1]} : vector<8x5x5xf32> to vector<8x3x3xf32>
    %993 = vector.extract_strided_slice %992 {offsets = [0, 0, 0], sizes = [8, 1, 3], strides = [1, 1, 1]} : vector<8x3x3xf32> to vector<8x1x3xf32>
    %994 = vector.shape_cast %993 : vector<8x1x3xf32> to vector<8x3xf32>
    %995 = vector.extract_strided_slice %992 {offsets = [0, 1, 0], sizes = [8, 1, 3], strides = [1, 1, 1]} : vector<8x3x3xf32> to vector<8x1x3xf32>
    %996 = vector.shape_cast %995 : vector<8x1x3xf32> to vector<8x3xf32>
    %997 = vector.extract_strided_slice %992 {offsets = [0, 2, 0], sizes = [8, 1, 3], strides = [1, 1, 1]} : vector<8x3x3xf32> to vector<8x1x3xf32>
    %998 = vector.shape_cast %997 : vector<8x1x3xf32> to vector<8x3xf32>
    %999 = tpu.concatenate %994, %996, %998 in 1 : vector<8x3xf32>, vector<8x3xf32>, vector<8x3xf32> -> vector<8x9xf32>
    %1000 = vector.extract_strided_slice %975 {offsets = [0, 1, 0], sizes = [8, 3, 3], strides = [1, 1, 1]} : vector<8x5x5xf32> to vector<8x3x3xf32>
    %1001 = vector.extract_strided_slice %1000 {offsets = [0, 0, 0], sizes = [8, 1, 3], strides = [1, 1, 1]} : vector<8x3x3xf32> to vector<8x1x3xf32>
    %1002 = vector.shape_cast %1001 : vector<8x1x3xf32> to vector<8x3xf32>
    %1003 = vector.extract_strided_slice %1000 {offsets = [0, 1, 0], sizes = [8, 1, 3], strides = [1, 1, 1]} : vector<8x3x3xf32> to vector<8x1x3xf32>
    %1004 = vector.shape_cast %1003 : vector<8x1x3xf32> to vector<8x3xf32>
    %1005 = vector.extract_strided_slice %1000 {offsets = [0, 2, 0], sizes = [8, 1, 3], strides = [1, 1, 1]} : vector<8x3x3xf32> to vector<8x1x3xf32>
    %1006 = vector.shape_cast %1005 : vector<8x1x3xf32> to vector<8x3xf32>
    %1007 = tpu.concatenate %1002, %1004, %1006 in 1 : vector<8x3xf32>, vector<8x3xf32>, vector<8x3xf32> -> vector<8x9xf32>
    %1008 = vector.extract_strided_slice %975 {offsets = [0, 1, 1], sizes = [8, 3, 3], strides = [1, 1, 1]} : vector<8x5x5xf32> to vector<8x3x3xf32>
    %1009 = vector.extract_strided_slice %1008 {offsets = [0, 0, 0], sizes = [8, 1, 3], strides = [1, 1, 1]} : vector<8x3x3xf32> to vector<8x1x3xf32>
    %1010 = vector.shape_cast %1009 : vector<8x1x3xf32> to vector<8x3xf32>
    %1011 = vector.extract_strided_slice %1008 {offsets = [0, 1, 0], sizes = [8, 1, 3], strides = [1, 1, 1]} : vector<8x3x3xf32> to vector<8x1x3xf32>
    %1012 = vector.shape_cast %1011 : vector<8x1x3xf32> to vector<8x3xf32>
    %1013 = vector.extract_strided_slice %1008 {offsets = [0, 2, 0], sizes = [8, 1, 3], strides = [1, 1, 1]} : vector<8x3x3xf32> to vector<8x1x3xf32>
    %1014 = vector.shape_cast %1013 : vector<8x1x3xf32> to vector<8x3xf32>
    %1015 = tpu.concatenate %1010, %1012, %1014 in 1 : vector<8x3xf32>, vector<8x3xf32>, vector<8x3xf32> -> vector<8x9xf32>
    %1016 = vector.extract_strided_slice %975 {offsets = [0, 1, 2], sizes = [8, 3, 3], strides = [1, 1, 1]} : vector<8x5x5xf32> to vector<8x3x3xf32>
    %1017 = vector.extract_strided_slice %1016 {offsets = [0, 0, 0], sizes = [8, 1, 3], strides = [1, 1, 1]} : vector<8x3x3xf32> to vector<8x1x3xf32>
    %1018 = vector.shape_cast %1017 : vector<8x1x3xf32> to vector<8x3xf32>
    %1019 = vector.extract_strided_slice %1016 {offsets = [0, 1, 0], sizes = [8, 1, 3], strides = [1, 1, 1]} : vector<8x3x3xf32> to vector<8x1x3xf32>
    %1020 = vector.shape_cast %1019 : vector<8x1x3xf32> to vector<8x3xf32>
    %1021 = vector.extract_strided_slice %1016 {offsets = [0, 2, 0], sizes = [8, 1, 3], strides = [1, 1, 1]} : vector<8x3x3xf32> to vector<8x1x3xf32>
    %1022 = vector.shape_cast %1021 : vector<8x1x3xf32> to vector<8x3xf32>
    %1023 = tpu.concatenate %1018, %1020, %1022 in 1 : vector<8x3xf32>, vector<8x3xf32>, vector<8x3xf32> -> vector<8x9xf32>
    %1024 = vector.extract_strided_slice %975 {offsets = [0, 2, 0], sizes = [8, 3, 3], strides = [1, 1, 1]} : vector<8x5x5xf32> to vector<8x3x3xf32>
    %1025 = vector.extract_strided_slice %1024 {offsets = [0, 0, 0], sizes = [8, 1, 3], strides = [1, 1, 1]} : vector<8x3x3xf32> to vector<8x1x3xf32>
    %1026 = vector.shape_cast %1025 : vector<8x1x3xf32> to vector<8x3xf32>
    %1027 = vector.extract_strided_slice %1024 {offsets = [0, 1, 0], sizes = [8, 1, 3], strides = [1, 1, 1]} : vector<8x3x3xf32> to vector<8x1x3xf32>
    %1028 = vector.shape_cast %1027 : vector<8x1x3xf32> to vector<8x3xf32>
    %1029 = vector.extract_strided_slice %1024 {offsets = [0, 2, 0], sizes = [8, 1, 3], strides = [1, 1, 1]} : vector<8x3x3xf32> to vector<8x1x3xf32>
    %1030 = vector.shape_cast %1029 : vector<8x1x3xf32> to vector<8x3xf32>
    %1031 = tpu.concatenate %1026, %1028, %1030 in 1 : vector<8x3xf32>, vector<8x3xf32>, vector<8x3xf32> -> vector<8x9xf32>
    %1032 = vector.extract_strided_slice %975 {offsets = [0, 2, 1], sizes = [8, 3, 3], strides = [1, 1, 1]} : vector<8x5x5xf32> to vector<8x3x3xf32>
    %1033 = vector.extract_strided_slice %1032 {offsets = [0, 0, 0], sizes = [8, 1, 3], strides = [1, 1, 1]} : vector<8x3x3xf32> to vector<8x1x3xf32>
    %1034 = vector.shape_cast %1033 : vector<8x1x3xf32> to vector<8x3xf32>
    %1035 = vector.extract_strided_slice %1032 {offsets = [0, 1, 0], sizes = [8, 1, 3], strides = [1, 1, 1]} : vector<8x3x3xf32> to vector<8x1x3xf32>
    %1036 = vector.shape_cast %1035 : vector<8x1x3xf32> to vector<8x3xf32>
    %1037 = vector.extract_strided_slice %1032 {offsets = [0, 2, 0], sizes = [8, 1, 3], strides = [1, 1, 1]} : vector<8x3x3xf32> to vector<8x1x3xf32>
    %1038 = vector.shape_cast %1037 : vector<8x1x3xf32> to vector<8x3xf32>
    %1039 = tpu.concatenate %1034, %1036, %1038 in 1 : vector<8x3xf32>, vector<8x3xf32>, vector<8x3xf32> -> vector<8x9xf32>
    %1040 = vector.extract_strided_slice %975 {offsets = [0, 2, 2], sizes = [8, 3, 3], strides = [1, 1, 1]} : vector<8x5x5xf32> to vector<8x3x3xf32>
    %1041 = vector.extract_strided_slice %1040 {offsets = [0, 0, 0], sizes = [8, 1, 3], strides = [1, 1, 1]} : vector<8x3x3xf32> to vector<8x1x3xf32>
    %1042 = vector.shape_cast %1041 : vector<8x1x3xf32> to vector<8x3xf32>
    %1043 = vector.extract_strided_slice %1040 {offsets = [0, 1, 0], sizes = [8, 1, 3], strides = [1, 1, 1]} : vector<8x3x3xf32> to vector<8x1x3xf32>
    %1044 = vector.shape_cast %1043 : vector<8x1x3xf32> to vector<8x3xf32>
    %1045 = vector.extract_strided_slice %1040 {offsets = [0, 2, 0], sizes = [8, 1, 3], strides = [1, 1, 1]} : vector<8x3x3xf32> to vector<8x1x3xf32>
    %1046 = vector.shape_cast %1045 : vector<8x1x3xf32> to vector<8x3xf32>
    %1047 = tpu.concatenate %1042, %1044, %1046 in 1 : vector<8x3xf32>, vector<8x3xf32>, vector<8x3xf32> -> vector<8x9xf32>
    %1048 = tpu.concatenate %983, %991, %999, %1007, %1015, %1023, %1031, %1039, %1047 in 0 : vector<8x9xf32>, vector<8x9xf32>, vector<8x9xf32>, vector<8x9xf32>, vector<8x9xf32>, vector<8x9xf32>, vector<8x9xf32>, vector<8x9xf32>, vector<8x9xf32> -> vector<72x9xf32>
    %c0_402 = arith.constant 0 : index
    %c0_403 = arith.constant 0 : index
    %1049 = vector.load %arg4[%c0_402, %c0_403] : memref<16x72xf32, #tpu.memory_space<vmem>>, vector<16x72xf32>
    %cst_404 = arith.constant dense<0.000000e+00> : vector<16x9xf32>
    %1050 = tpu.matmul %1049, %1048, %cst_404 {dimension_numbers = #tpu.dot_dimension_numbers<[1], [0], [0], [1], [0, 0, 1, 1], [], []>} : vector<16x72xf32>, vector<72x9xf32>, vector<16x9xf32> -> vector<16x9xf32>
    %c0_405 = arith.constant 0 : index
    %c0_406 = arith.constant 0 : index
    %1051 = vector.load %arg5[%c0_405, %c0_406] : memref<16x1xf32, #tpu.memory_space<vmem>>, vector<16x1xf32>
    %1052 = vector.broadcast %1051 : vector<16x1xf32> to vector<16x9xf32>
    %1053 = arith.addf %1050, %1052 : vector<16x9xf32>
    %cst_407 = arith.constant 0.000000e+00 : f32
    %1054 = vector.broadcast %cst_407 : f32 to vector<16x9xf32>
    %1055 = arith.maximumf %1053, %1054 : vector<16x9xf32>
    %c0_408 = arith.constant 0 : index
    %c0_409 = arith.constant 0 : index
    %c0_410 = arith.constant 0 : index
    %1056 = vector.load %arg6[%c0_408, %c0_409, %c0_410] : memref<1x16x9xf32, #tpu.memory_space<vmem>>, vector<1x16x9xf32>
    %1057 = vector.shape_cast %1056 : vector<1x16x9xf32> to vector<16x9xf32>
    %1058 = vector.shape_cast %1055 : vector<16x9xf32> to vector<1x16x9xf32>
    tpu.vector_store %arg6[%c0_408, %c0_409, %c0_410], %1058 {strides = array<i32>} : memref<1x16x9xf32, #tpu.memory_space<vmem>>, vector<1x16x9xf32>,
    return
  }
  func.func @transform_0(%arg0: i32) -> (i32, i32, i32, i32) {
    %c0_i32 = arith.constant 0 : i32
    %c0_i32_0 = arith.constant 0 : i32
    %c0_i32_1 = arith.constant 0 : i32
    %c0_i32_2 = arith.constant 0 : i32
    return %arg0, %c0_i32, %c0_i32_0, %c0_i32_1 : i32, i32, i32, i32
  }
  func.func @transform_1(%arg0: i32) -> (i32, i32) {
    %c0_i32 = arith.constant 0 : i32
    %c0_i32_0 = arith.constant 0 : i32
    %c0_i32_1 = arith.constant 0 : i32
    return %c0_i32, %c0_i32_0 : i32, i32
  }
  func.func @transform_2(%arg0: i32) -> i32 {
    %c0_i32 = arith.constant 0 : i32
    %c0_i32_0 = arith.constant 0 : i32
    return %c0_i32 : i32
  }
  func.func @transform_3(%arg0: i32) -> (i32, i32) {
    %c0_i32 = arith.constant 0 : i32
    %c0_i32_0 = arith.constant 0 : i32
    %c0_i32_1 = arith.constant 0 : i32
    return %c0_i32, %c0_i32_0 : i32, i32
  }
  func.func @transform_4(%arg0: i32) -> (i32, i32) {
    %c0_i32 = arith.constant 0 : i32
    %c0_i32_0 = arith.constant 0 : i32
    %c0_i32_1 = arith.constant 0 : i32
    return %c0_i32, %c0_i32_0 : i32, i32
  }
  func.func @transform_5(%arg0: i32) -> (i32, i32, i32) {
    %c0_i32 = arith.constant 0 : i32
    %c0_i32_0 = arith.constant 0 : i32
    %c0_i32_1 = arith.constant 0 : i32
    return %arg0, %c0_i32, %c0_i32_0 : i32, i32, i32
  }
}

</mosaic_0001>

<llo_original>
// kernel: resnet_forward.1
$region0: #{resnet_forward.1}
  #allocation0 [shape = 'u32[]', space=smem, size = 0x4, offset = 0x4, fixed_abs, tag = 'smem constant byte address 0x4 - core index']
  #allocation1 [shape = 'u32[144,128]{1,0:T(1,128)}', space=vmem, size = 0x12000, scoped, tag = 'internal scratch']
  %s0 = inlined_call_operand.vmem [shape: f32[2,1,16,16], index: 0, kind: input, shape index: {}]
  %s1 = inlined_call_operand.vmem [shape: f32[25,8], index: 1, kind: input, shape index: {}]
  %s2 = inlined_call_operand.vmem [shape: f32[8], index: 2, kind: input, shape index: {}]
  %s3 = inlined_call_operand.vmem [shape: f32[16,72], index: 3, kind: input, shape index: {}]
  %s4 = inlined_call_operand.vmem [shape: f32[16,1], index: 4, kind: input, shape index: {}]
  %s5 = inlined_call_operand.vmem [shape: f32[2,16,9], index: 5, kind: output, shape index: {}]
  %s6 = sld [smem:[#allocation0]]
  $region61: #{resnet_forward.1} parent=0
    _
  %s8 = ssub.s32 1, %s6
  %s9 = scalar_select 0, %s8, %s6
  $region1: #{resnet_forward.1} parent=0
    #allocation2 [shape = 'u8[16384]{0}', space=smem, size = 0x4000, scoped, tag = 'input window, operand 1, single buffered']
    #allocation3 [shape = 's32[2]{0}', space=sflag, size = 0x8, scoped, tag = 'scoped memory for resnet_forward.1']
    #allocation4 [shape = 'u8[512]{0}', space=smem, size = 0x200, scoped, tag = 'input window, operand 2, single buffered']
    #allocation5 [shape = 's32[1]{0}', space=sflag, size = 0x4, scoped, tag = 'scoped memory for resnet_forward.1']
    %10 = vsyncpa [#allocation3], 0
    %11 = vsyncpa [#allocation5], 0
    loop: start=0, step=1, limit=4
    $region2: #{resnet_forward.1} parent=1 // loop_pre_header
      _
    $region3: #{resnet_forward.1} parent=1 // loop_header
      %s13 = sphi 0, %s17
      %p14 = scmp.ge.s32.totalorder %s13, 4
      %s23 = sphi 0, %s25
      %s26 = sphi 0, %s23
      %s27 = sphi 0, %s26
      %s43 = sphi 0, %s27
      %s47 = sphi 0, %s47
      %s49 = sphi 0, %s47
      %s50 = sphi 0, %s49
      %s64 = sphi 0, %s50
      %s68 = sphi 0, %s68
      %s70 = sphi 0, %s68
      %s71 = sphi 0, %s70
      %s85 = sphi 0, %s71
      %s89 = sphi 0, %s89
      %s91 = sphi 0, %s89
      %s92 = sphi 0, %s91
      %s106 = sphi 0, %s92
      %s110 = sphi 0, %s110
      %s112 = sphi 0, %s110
      %s113 = sphi 0, %s112
      %s127 = sphi 0, %s113
      %s133 = sphi 0, %s135
      %s136 = sphi 0, %s133
      %s137 = sphi 0, %s136
      %s153 = sphi 0, %s137
    $region4: #{resnet_forward.1} parent=1 // loop_header_branch
      %16 = sbr.rel (%p14) target = $region8
    $region5: #{resnet_forward.1} parent=1 // loop_body
      %s18 = ssub.s32 %s13, 1
      %s19 = ssub.s32 %s13, 2
      %s20 = sadd.s32 %s13, 1
      %s21 = ssub.s32 %s13, %s20
      %p22 = scmp.eq.s32.totalorder %s21, 0
      %s24 = sadd.s32 %s23, 1
      %s25 = scalar_select %p22, %s23, %s24
      %p28 = pneg %p22
      %p29 = scmp.eq.s32.totalorder %s13, 1
      %p30 = por %p28, %p29
      %p31 = scmp.ne.s32.totalorder %s23, %s26
      %p32 = scmp.eq.s32.totalorder %s13, 0
      %p33 = por %p31, %p32
      %p34 = scmp.ne.s32.totalorder %s23, %s26
      %p35 = scmp.eq.s32.totalorder %s18, 1
      %p36 = por %p34, %p35
      %p37 = scmp.ne.s32.totalorder %s26, %s27
      %p38 = scmp.eq.s32.totalorder %s18, 0
      %p39 = por %p37, %p38
      %p40 = scmp.ne.s32.totalorder %s26, %s27
      %p41 = scmp.eq.s32.totalorder %s19, 1
      %p42 = por %p40, %p41
      %p44 = scmp.ne.s32.totalorder %s27, %s43
      %p45 = scmp.eq.s32.totalorder %s19, 0
      %p46 = por %p44, %p45
      %s48 = sadd.s32 %s47, 1
      %p51 = scmp.eq.s32.totalorder %s13, 1
      %p52 = scmp.ne.s32.totalorder %s47, %s49
      %p53 = scmp.eq.s32.totalorder %s13, 0
      %p54 = por %p52, %p53
      %p55 = scmp.ne.s32.totalorder %s47, %s49
      %p56 = scmp.eq.s32.totalorder %s18, 1
      %p57 = por %p55, %p56
      %p58 = scmp.ne.s32.totalorder %s49, %s50
      %p59 = scmp.eq.s32.totalorder %s18, 0
      %p60 = por %p58, %p59
      %p61 = scmp.ne.s32.totalorder %s49, %s50
      %p62 = scmp.eq.s32.totalorder %s19, 1
      %p63 = por %p61, %p62
      %p65 = scmp.ne.s32.totalorder %s50, %s64
      %p66 = scmp.eq.s32.totalorder %s19, 0
      %p67 = por %p65, %p66
      %s69 = sadd.s32 %s68, 1
      %p72 = scmp.eq.s32.totalorder %s13, 1
      %p73 = scmp.ne.s32.totalorder %s68, %s70
      %p74 = scmp.eq.s32.totalorder %s13, 0
      %p75 = por %p73, %p74
      %p76 = scmp.ne.s32.totalorder %s68, %s70
      %p77 = scmp.eq.s32.totalorder %s18, 1
      %p78 = por %p76, %p77
      %p79 = scmp.ne.s32.totalorder %s70, %s71
      %p80 = scmp.eq.s32.totalorder %s18, 0
      %p81 = por %p79, %p80
      %p82 = scmp.ne.s32.totalorder %s70, %s71
      %p83 = scmp.eq.s32.totalorder %s19, 1
      %p84 = por %p82, %p83
      %p86 = scmp.ne.s32.totalorder %s71, %s85
      %p87 = scmp.eq.s32.totalorder %s19, 0
      %p88 = por %p86, %p87
      %s90 = sadd.s32 %s89, 1
      %p93 = scmp.eq.s32.totalorder %s13, 1
      %p94 = scmp.ne.s32.totalorder %s89, %s91
      %p95 = scmp.eq.s32.totalorder %s13, 0
      %p96 = por %p94, %p95
      %p97 = scmp.ne.s32.totalorder %s89, %s91
      %p98 = scmp.eq.s32.totalorder %s18, 1
      %p99 = por %p97, %p98
      %p100 = scmp.ne.s32.totalorder %s91, %s92
      %p101 = scmp.eq.s32.totalorder %s18, 0
      %p102 = por %p100, %p101
      %p103 = scmp.ne.s32.totalorder %s91, %s92
      %p104 = scmp.eq.s32.totalorder %s19, 1
      %p105 = por %p103, %p104
      %p107 = scmp.ne.s32.totalorder %s92, %s106
      %p108 = scmp.eq.s32.totalorder %s19, 0
      %p109 = por %p107, %p108
      %s111 = sadd.s32 %s110, 1
      %p114 = scmp.eq.s32.totalorder %s13, 1
      %p115 = scmp.ne.s32.totalorder %s110, %s112
      %p116 = scmp.eq.s32.totalorder %s13, 0
      %p117 = por %p115, %p116
      %p118 = scmp.ne.s32.totalorder %s110, %s112
      %p119 = scmp.eq.s32.totalorder %s18, 1
      %p120 = por %p118, %p119
      %p121 = scmp.ne.s32.totalorder %s112, %s113
      %p122 = scmp.eq.s32.totalorder %s18, 0
      %p123 = por %p121, %p122
      %p124 = scmp.ne.s32.totalorder %s112, %s113
      %p125 = scmp.eq.s32.totalorder %s19, 1
      %p126 = por %p124, %p125
      %p128 = scmp.ne.s32.totalorder %s113, %s127
      %p129 = scmp.eq.s32.totalorder %s19, 0
      %p130 = por %p128, %p129
      %s131 = ssub.s32 %s13, %s20
      %p132 = scmp.eq.s32.totalorder %s131, 0
      %s134 = sadd.s32 %s133, 1
      %s135 = scalar_select %p132, %s133, %s134
      %p138 = pneg %p132
      %p139 = scmp.eq.s32.totalorder %s13, 1
      %p140 = por %p138, %p139
      %p141 = scmp.ne.s32.totalorder %s133, %s136
      %p142 = scmp.eq.s32.totalorder %s13, 0
      %p143 = por %p141, %p142
      %p144 = scmp.ne.s32.totalorder %s133, %s136
      %p145 = scmp.eq.s32.totalorder %s18, 1
      %p146 = por %p144, %p145
      %p147 = scmp.ne.s32.totalorder %s136, %s137
      %p148 = scmp.eq.s32.totalorder %s18, 0
      %p149 = por %p147, %p148
      %p150 = scmp.ne.s32.totalorder %s136, %s137
      %p151 = scmp.eq.s32.totalorder %s19, 1
      %p152 = por %p150, %p151
      %p154 = scmp.ne.s32.totalorder %s137, %s153
      %p155 = scmp.eq.s32.totalorder %s19, 0
      %p156 = por %p154, %p155
      %p157 = scmp.le.s32.totalorder 1, %s13
      %p158 = scmp.lt.s32.totalorder %s13, 3
      %p159 = pnand %p157, %p158
      %p160 = pneg %p159
      // Predicated region
      $region9: #{resnet_forward.1} parent=5 // pred_check
        _
      $region10: #{resnet_forward.1} parent=5 // pred_check_branch
        %162 = sbr.rel (%p159) target = $region12
      $region11: #{resnet_forward.1} parent=5 // pred_region
        %s163 = ssub.s32 %s13, 1
        // Predicated region
        $region13: #{resnet_forward.1} parent=11 // pred_check
          %p164 = pneg %p60
        $region14: #{resnet_forward.1} parent=11 // pred_check_branch
          %166 = sbr.rel (%p164) target = $region16
        $region15: #{resnet_forward.1} parent=11 // pred_region
          %s168 = ssub.s32 512, 512
          %169 = vsyncadd [#allocation3], %s168
          %s170 = sshll.u32 %s1, 4
          %s171 = int_to_ptr.vmem [resolvable:$true] %s170
          %176 = dma.vmem_to_smem %s171, 512, [#allocation2], [#allocation3], 128, 128, 8
        $region16: #{resnet_forward.1} parent=11 // pred_fallthru
          _
        // Predicated region
        $region17: #{resnet_forward.1} parent=11 // pred_check
          %p177 = pneg %p81
        $region18: #{resnet_forward.1} parent=11 // pred_check_branch
          %179 = sbr.rel (%p177) target = $region20
        $region19: #{resnet_forward.1} parent=11 // pred_region
          %s181 = ssub.s32 16, 16
          %182 = vsyncadd [#allocation5], %s181
          %s184 = sshll.u32 %s2, 4
          %s185 = int_to_ptr.vmem [resolvable:$true] %s184
          %187 = dma.vmem_to_smem %s185, 16, [#allocation4], [#allocation5]
        $region20: #{resnet_forward.1} parent=11 // pred_fallthru
          _
        // Predicated region
        $region21: #{resnet_forward.1} parent=11 // pred_check
          %p188 = pneg %p102
        $region22: #{resnet_forward.1} parent=11 // pred_check_branch
          %190 = sbr.rel (%p188) target = $region24
        $region23: #{resnet_forward.1} parent=11 // pred_region
          _
        $region24: #{resnet_forward.1} parent=11 // pred_fallthru
          _
        // Predicated region
        $region25: #{resnet_forward.1} parent=11 // pred_check
          %p191 = pneg %p123
        $region26: #{resnet_forward.1} parent=11 // pred_check_branch
          %193 = sbr.rel (%p191) target = $region28
        $region27: #{resnet_forward.1} parent=11 // pred_region
          _
        $region28: #{resnet_forward.1} parent=11 // pred_fallthru
          _
      $region12: #{resnet_forward.1} parent=5 // pred_fallthru
        _
      %p194 = scmp.lt.s32.totalorder %s13, 2
      // Predicated region
      $region29: #{resnet_forward.1} parent=5 // pred_check
        %p195 = pneg %p194
      $region30: #{resnet_forward.1} parent=5 // pred_check_branch
        %197 = sbr.rel (%p195) target = $region32
      $region31: #{resnet_forward.1} parent=5 // pred_region
        // Predicated region
        $region33: #{resnet_forward.1} parent=31 // pred_check
          %p198 = pneg %p33
        $region34: #{resnet_forward.1} parent=31 // pred_check_branch
          %200 = sbr.rel (%p198) target = $region36
        $region35: #{resnet_forward.1} parent=31 // pred_region
          %p201 = scmp.lt.s32.totalorder %s13, 1
          %s202 = scalar_select %p201, %s13, 1
          %s203 = smul.addr %s202, 2
          %s204 = smul.addr %s203, 8
          %s205 = scalar_lea.vmem %s0, %s204
        $region36: #{resnet_forward.1} parent=31 // pred_fallthru
          _
      $region32: #{resnet_forward.1} parent=5 // pred_fallthru
        _
      %p206 = scmp.le.s32.totalorder 1, %s13
      %p207 = scmp.lt.s32.totalorder %s13, 3
      %p208 = pnand %p206, %p207
      %p209 = pneg %p208
      // Predicated region
      $region37: #{resnet_forward.1} parent=5 // pred_check
        _
      $region38: #{resnet_forward.1} parent=5 // pred_check_branch
        %211 = sbr.rel (%p208) target = $region40
      $region39: #{resnet_forward.1} parent=5 // pred_region
        %s212 = ssub.s32 %s13, 1
        // Predicated region
        $region41: #{resnet_forward.1} parent=39 // pred_check
          %p213 = pneg %p60
        $region42: #{resnet_forward.1} parent=39 // pred_check_branch
          %215 = sbr.rel (%p213) target = $region44
        $region43: #{resnet_forward.1} parent=39 // pred_region
          %216 = dma.done [#allocation3], 512
        $region44: #{resnet_forward.1} parent=39 // pred_fallthru
          _
        // Predicated region
        $region45: #{resnet_forward.1} parent=39 // pred_check
          %p217 = pneg %p81
        $region46: #{resnet_forward.1} parent=39 // pred_check_branch
          %219 = sbr.rel (%p217) target = $region48
        $region47: #{resnet_forward.1} parent=39 // pred_region
          %220 = dma.done [#allocation5], 16
        $region48: #{resnet_forward.1} parent=39 // pred_fallthru
          _
        %221 = sfence
        %p222 = scmp.lt.s32.totalorder %s18, 1
        %s223 = scalar_select %p222, %s18, 1
        %s224 = smul.addr %s223, 2
        %s225 = smul.addr %s224, 8
        %s226 = scalar_lea.vmem %s0, %s225
        %p227 = pneg %p39
        %p228 = pneg %p36
        %p229 = pneg %p60
        %p230 = pneg %p57
        %p231 = pneg %p81
        %p232 = pneg %p78
        %p233 = pneg %p102
        %p234 = pneg %p99
        %p235 = pneg %p123
        %p236 = pneg %p120
        %p237 = pneg %p149
        %p238 = pneg %p146
        %p239 = scmp.lt.s32.totalorder %s18, 1
        %s240 = scalar_select %p239, %s18, 1
        %s241 = smul.addr %s240, 2
        %s242 = smul.addr %s241, 8
        %s243 = scalar_lea.vmem %s5, %s242
        %p244 = scmp.lt.s32.totalorder %s18, 1
        %s245 = scalar_select %p244, %s18, 1
        %s246 = smul.addr %s245, 2
        %s247 = smul.addr %s246, 8
        %s248 = scalar_lea.vmem %s0, %s247
        %p249 = scmp.lt.s32.totalorder %s18, 1
        %s250 = scalar_select %p249, %s18, 1
        %s251 = smul.addr %s250, 2
        %s252 = smul.addr %s251, 8
        %s253 = scalar_lea.vmem %s5, %s252
        %v254 = vld [vmem:[%s248] sm:$0xff]
        %v255 = vld [vmem:[%s248 + $0x8] sm:$0xff]
        %s256 = sld [smem:[#allocation2]]
        %v257 = vstv %s256
        %v258 = vmul.f32 %v257, %v254
        %v259 = vmul.f32 %v257, %v255
        %v260 = vadd.f32 %v258, 0.0
        %v261 = vadd.f32 %v259, 0.0
        %s262 = sld [smem:[#allocation2 + $0x80]]
        %v263 = vstv %s262
        %v264 = vmul.f32 %v263, %v254
        %v265 = vmul.f32 %v263, %v255
        %268 = vrot.lane.b32.xlu0 %v264, 127
        %v269 = vpop.permute.xlu0 %268
        %270 = vrot.lane.b32.xlu0 %v265, 127
        %v271 = vpop.permute.xlu0 %270
        %v274 = vadd.f32 %v260, %v269
        %v275 = vadd.f32 %v261, %v271
        %s276 = sld [smem:[#allocation2 + $0x100]]
        %v277 = vstv %s276
        %v278 = vmul.f32 %v277, %v254
        %v279 = vmul.f32 %v277, %v255
        %282 = vrot.lane.b32.xlu0 %v278, 126
        %v283 = vpop.permute.xlu0 %282
        %284 = vrot.lane.b32.xlu0 %v279, 126
        %v285 = vpop.permute.xlu0 %284
        %v288 = vadd.f32 %v274, %v283
        %v289 = vadd.f32 %v275, %v285
        %s290 = sld [smem:[#allocation2 + $0x180]]
        %v291 = vstv %s290
        %v292 = vmul.f32 %v291, %v254
        %v293 = vmul.f32 %v291, %v255
        %296 = vrot.lane.b32.xlu0 %v292, 125
        %v297 = vpop.permute.xlu0 %296
        %298 = vrot.lane.b32.xlu0 %v293, 125
        %v299 = vpop.permute.xlu0 %298
        %v302 = vadd.f32 %v288, %v297
        %v303 = vadd.f32 %v289, %v299
        %s304 = sld [smem:[#allocation2 + $0x200]]
        %v305 = vstv %s304
        %v306 = vmul.f32 %v305, %v254
        %v307 = vmul.f32 %v305, %v255
        %310 = vrot.lane.b32.xlu0 %v306, 124
        %v311 = vpop.permute.xlu0 %310
        %312 = vrot.lane.b32.xlu0 %v307, 124
        %v313 = vpop.permute.xlu0 %312
        %v316 = vadd.f32 %v302, %v311
        %v317 = vadd.f32 %v303, %v313
        %s318 = sld [smem:[#allocation2 + $0x280]]
        %v319 = vstv %s318
        %v320 = vmul.f32 %v319, %v254
        %v321 = vmul.f32 %v319, %v255
        %vm324 = vcmask 1046528
        %v325 = vrot.slane %v320, 1
        %v326 = vrot.slane %v321, 1
        %v327 = vsel %vm324, %v325, %v326
        %v330 = vadd.f32 %v316, %v327
        %v331 = vadd.f32 %v317, %v326
        %s332 = sld [smem:[#allocation2 + $0x300]]
        %v333 = vstv %s332
        %v334 = vmul.f32 %v333, %v254
        %v335 = vmul.f32 %v333, %v255
        %v338 = vrot.slane %v334, 1
        %v339 = vrot.slane %v335, 1
        %v340 = vsel %vm324, %v338, %v339
        %341 = vrot.lane.b32.xlu0 %v340, 127
        %v342 = vpop.permute.xlu0 %341
        %343 = vrot.lane.b32.xlu0 %v339, 127
        %v344 = vpop.permute.xlu0 %343
        %v347 = vadd.f32 %v330, %v342
        %v348 = vadd.f32 %v331, %v344
        %s349 = sld [smem:[#allocation2 + $0x380]]
        %v350 = vstv %s349
        %v351 = vmul.f32 %v350, %v254
        %v352 = vmul.f32 %v350, %v255
        %v355 = vrot.slane %v351, 1
        %v356 = vrot.slane %v352, 1
        %v357 = vsel %vm324, %v355, %v356
        %358 = vrot.lane.b32.xlu0 %v357, 126
        %v359 = vpop.permute.xlu0 %358
        %360 = vrot.lane.b32.xlu0 %v356, 126
        %v361 = vpop.permute.xlu0 %360
        %v364 = vadd.f32 %v347, %v359
        %v365 = vadd.f32 %v348, %v361
        %s366 = sld [smem:[#allocation2 + $0x400]]
        %v367 = vstv %s366
        %v368 = vmul.f32 %v367, %v254
        %v369 = vmul.f32 %v367, %v255
        %v372 = vrot.slane %v368, 1
        %v373 = vrot.slane %v369, 1
        %v374 = vsel %vm324, %v372, %v373
        %375 = vrot.lane.b32.xlu0 %v374, 125
        %v376 = vpop.permute.xlu0 %375
        %377 = vrot.lane.b32.xlu0 %v373, 125
        %v378 = vpop.permute.xlu0 %377
        %v381 = vadd.f32 %v364, %v376
        %v382 = vadd.f32 %v365, %v378
        %s383 = sld [smem:[#allocation2 + $0x480]]
        %v384 = vstv %s383
        %v385 = vmul.f32 %v384, %v254
        %v386 = vmul.f32 %v384, %v255
        %v389 = vrot.slane %v385, 1
        %v390 = vrot.slane %v386, 1
        %v391 = vsel %vm324, %v389, %v390
        %392 = vrot.lane.b32.xlu0 %v391, 124
        %v393 = vpop.permute.xlu0 %392
        %394 = vrot.lane.b32.xlu0 %v390, 124
        %v395 = vpop.permute.xlu0 %394
        %v398 = vadd.f32 %v381, %v393
        %v399 = vadd.f32 %v382, %v395
        %s400 = sld [smem:[#allocation2 + $0x500]]
        %v401 = vstv %s400
        %v402 = vmul.f32 %v401, %v254
        %v403 = vmul.f32 %v401, %v255
        %vm406 = vcmask 1045504
        %v407 = vrot.slane %v402, 2
        %v408 = vrot.slane %v403, 2
        %v409 = vsel %vm406, %v407, %v408
        %v412 = vadd.f32 %v398, %v409
        %v413 = vadd.f32 %v399, %v408
        %s414 = sld [smem:[#allocation2 + $0x580]]
        %v415 = vstv %s414
        %v416 = vmul.f32 %v415, %v254
        %v417 = vmul.f32 %v415, %v255
        %v420 = vrot.slane %v416, 2
        %v421 = vrot.slane %v417, 2
        %v422 = vsel %vm406, %v420, %v421
        %423 = vrot.lane.b32.xlu0 %v422, 127
        %v424 = vpop.permute.xlu0 %423
        %425 = vrot.lane.b32.xlu0 %v421, 127
        %v426 = vpop.permute.xlu0 %425
        %v429 = vadd.f32 %v412, %v424
        %v430 = vadd.f32 %v413, %v426
        %s431 = sld [smem:[#allocation2 + $0x600]]
        %v432 = vstv %s431
        %v433 = vmul.f32 %v432, %v254
        %v434 = vmul.f32 %v432, %v255
        %v437 = vrot.slane %v433, 2
        %v438 = vrot.slane %v434, 2
        %v439 = vsel %vm406, %v437, %v438
        %440 = vrot.lane.b32.xlu0 %v439, 126
        %v441 = vpop.permute.xlu0 %440
        %442 = vrot.lane.b32.xlu0 %v438, 126
        %v443 = vpop.permute.xlu0 %442
        %v446 = vadd.f32 %v429, %v441
        %v447 = vadd.f32 %v430, %v443
        %s448 = sld [smem:[#allocation2 + $0x680]]
        %v449 = vstv %s448
        %v450 = vmul.f32 %v449, %v254
        %v451 = vmul.f32 %v449, %v255
        %v454 = vrot.slane %v450, 2
        %v455 = vrot.slane %v451, 2
        %v456 = vsel %vm406, %v454, %v455
        %457 = vrot.lane.b32.xlu0 %v456, 125
        %v458 = vpop.permute.xlu0 %457
        %459 = vrot.lane.b32.xlu0 %v455, 125
        %v460 = vpop.permute.xlu0 %459
        %v463 = vadd.f32 %v446, %v458
        %v464 = vadd.f32 %v447, %v460
        %s465 = sld [smem:[#allocation2 + $0x700]]
        %v466 = vstv %s465
        %v467 = vmul.f32 %v466, %v254
        %v468 = vmul.f32 %v466, %v255
        %v471 = vrot.slane %v467, 2
        %v472 = vrot.slane %v468, 2
        %v473 = vsel %vm406, %v471, %v472
        %474 = vrot.lane.b32.xlu0 %v473, 124
        %v475 = vpop.permute.xlu0 %474
        %476 = vrot.lane.b32.xlu0 %v472, 124
        %v477 = vpop.permute.xlu0 %476
        %v480 = vadd.f32 %v463, %v475
        %v481 = vadd.f32 %v464, %v477
        %s482 = sld [smem:[#allocation2 + $0x780]]
        %v483 = vstv %s482
        %v484 = vmul.f32 %v483, %v254
        %v485 = vmul.f32 %v483, %v255
        %vm488 = vcmask 1044480
        %v489 = vrot.slane %v484, 3
        %v490 = vrot.slane %v485, 3
        %v491 = vsel %vm488, %v489, %v490
        %v494 = vadd.f32 %v480, %v491
        %v495 = vadd.f32 %v481, %v490
        %s496 = sld [smem:[#allocation2 + $0x800]]
        %v497 = vstv %s496
        %v498 = vmul.f32 %v497, %v254
        %v499 = vmul.f32 %v497, %v255
        %v502 = vrot.slane %v498, 3
        %v503 = vrot.slane %v499, 3
        %v504 = vsel %vm488, %v502, %v503
        %505 = vrot.lane.b32.xlu0 %v504, 127
        %v506 = vpop.permute.xlu0 %505
        %507 = vrot.lane.b32.xlu0 %v503, 127
        %v508 = vpop.permute.xlu0 %507
        %v511 = vadd.f32 %v494, %v506
        %v512 = vadd.f32 %v495, %v508
        %s513 = sld [smem:[#allocation2 + $0x880]]
        %v514 = vstv %s513
        %v515 = vmul.f32 %v514, %v254
        %v516 = vmul.f32 %v514, %v255
        %v519 = vrot.slane %v515, 3
        %v520 = vrot.slane %v516, 3
        %v521 = vsel %vm488, %v519, %v520
        %522 = vrot.lane.b32.xlu0 %v521, 126
        %v523 = vpop.permute.xlu0 %522
        %524 = vrot.lane.b32.xlu0 %v520, 126
        %v525 = vpop.permute.xlu0 %524
        %v528 = vadd.f32 %v511, %v523
        %v529 = vadd.f32 %v512, %v525
        %s530 = sld [smem:[#allocation2 + $0x900]]
        %v531 = vstv %s530
        %v532 = vmul.f32 %v531, %v254
        %v533 = vmul.f32 %v531, %v255
        %v536 = vrot.slane %v532, 3
        %v537 = vrot.slane %v533, 3
        %v538 = vsel %vm488, %v536, %v537
        %539 = vrot.lane.b32.xlu0 %v538, 125
        %v540 = vpop.permute.xlu0 %539
        %541 = vrot.lane.b32.xlu0 %v537, 125
        %v542 = vpop.permute.xlu0 %541
        %v545 = vadd.f32 %v528, %v540
        %v546 = vadd.f32 %v529, %v542
        %s547 = sld [smem:[#allocation2 + $0x980]]
        %v548 = vstv %s547
        %v549 = vmul.f32 %v548, %v254
        %v550 = vmul.f32 %v548, %v255
        %v553 = vrot.slane %v549, 3
        %v554 = vrot.slane %v550, 3
        %v555 = vsel %vm488, %v553, %v554
        %556 = vrot.lane.b32.xlu0 %v555, 124
        %v557 = vpop.permute.xlu0 %556
        %558 = vrot.lane.b32.xlu0 %v554, 124
        %v559 = vpop.permute.xlu0 %558
        %v562 = vadd.f32 %v545, %v557
        %v563 = vadd.f32 %v546, %v559
        %s564 = sld [smem:[#allocation2 + $0xa00]]
        %v565 = vstv %s564
        %v566 = vmul.f32 %v565, %v254
        %v567 = vmul.f32 %v565, %v255
        %vm570 = vcmask 1043456
        %v571 = vrot.slane %v566, 4
        %v572 = vrot.slane %v567, 4
        %v573 = vsel %vm570, %v571, %v572
        %v576 = vadd.f32 %v562, %v573
        %v577 = vadd.f32 %v563, %v572
        %s578 = sld [smem:[#allocation2 + $0xa80]]
        %v579 = vstv %s578
        %v580 = vmul.f32 %v579, %v254
        %v581 = vmul.f32 %v579, %v255
        %v584 = vrot.slane %v580, 4
        %v585 = vrot.slane %v581, 4
        %v586 = vsel %vm570, %v584, %v585
        %587 = vrot.lane.b32.xlu0 %v586, 127
        %v588 = vpop.permute.xlu0 %587
        %589 = vrot.lane.b32.xlu0 %v585, 127
        %v590 = vpop.permute.xlu0 %589
        %v593 = vadd.f32 %v576, %v588
        %v594 = vadd.f32 %v577, %v590
        %s595 = sld [smem:[#allocation2 + $0xb00]]
        %v596 = vstv %s595
        %v597 = vmul.f32 %v596, %v254
        %v598 = vmul.f32 %v596, %v255
        %v601 = vrot.slane %v597, 4
        %v602 = vrot.slane %v598, 4
        %v603 = vsel %vm570, %v601, %v602
        %604 = vrot.lane.b32.xlu0 %v603, 126
        %v605 = vpop.permute.xlu0 %604
        %606 = vrot.lane.b32.xlu0 %v602, 126
        %v607 = vpop.permute.xlu0 %606
        %v610 = vadd.f32 %v593, %v605
        %v611 = vadd.f32 %v594, %v607
        %s612 = sld [smem:[#allocation2 + $0xb80]]
        %v613 = vstv %s612
        %v614 = vmul.f32 %v613, %v254
        %v615 = vmul.f32 %v613, %v255
        %v618 = vrot.slane %v614, 4
        %v619 = vrot.slane %v615, 4
        %v620 = vsel %vm570, %v618, %v619
        %621 = vrot.lane.b32.xlu0 %v620, 125
        %v622 = vpop.permute.xlu0 %621
        %623 = vrot.lane.b32.xlu0 %v619, 125
        %v624 = vpop.permute.xlu0 %623
        %v627 = vadd.f32 %v610, %v622
        %v628 = vadd.f32 %v611, %v624
        %s629 = sld [smem:[#allocation2 + $0xc00]]
        %v630 = vstv %s629
        %v631 = vmul.f32 %v630, %v254
        %v632 = vmul.f32 %v630, %v255
        %v635 = vrot.slane %v631, 4
        %v636 = vrot.slane %v632, 4
        %v637 = vsel %vm570, %v635, %v636
        %638 = vrot.lane.b32.xlu0 %v637, 124
        %v639 = vpop.permute.xlu0 %638
        %640 = vrot.lane.b32.xlu0 %v636, 124
        %v641 = vpop.permute.xlu0 %640
        %v644 = vadd.f32 %v627, %v639
        %v645 = vadd.f32 %v628, %v641
        %s646 = sld [smem:[#allocation4]]
        %v647 = vstv %s646
        %v648 = vadd.f32 %v644, %v647
        %v649 = vadd.f32 %v645, %v647
        %v650 = vmax.f32 %v648, 0.0
        %v651 = vmax.f32 %v649, 0.0
        %s652 = sld [smem:[#allocation2 + $0x1]]
        %v653 = vstv %s652
        %v654 = vmul.f32 %v653, %v254
        %v655 = vmul.f32 %v653, %v255
        %v656 = vadd.f32 %v654, 0.0
        %v657 = vadd.f32 %v655, 0.0
        %s658 = sld [smem:[#allocation2 + $0x81]]
        %v659 = vstv %s658
        %v660 = vmul.f32 %v659, %v254
        %v661 = vmul.f32 %v659, %v255
        %664 = vrot.lane.b32.xlu0 %v660, 127
        %v665 = vpop.permute.xlu0 %664
        %666 = vrot.lane.b32.xlu0 %v661, 127
        %v667 = vpop.permute.xlu0 %666
        %v670 = vadd.f32 %v656, %v665
        %v671 = vadd.f32 %v657, %v667
        %s672 = sld [smem:[#allocation2 + $0x101]]
        %v673 = vstv %s672
        %v674 = vmul.f32 %v673, %v254
        %v675 = vmul.f32 %v673, %v255
        %678 = vrot.lane.b32.xlu0 %v674, 126
        %v679 = vpop.permute.xlu0 %678
        %680 = vrot.lane.b32.xlu0 %v675, 126
        %v681 = vpop.permute.xlu0 %680
        %v684 = vadd.f32 %v670, %v679
        %v685 = vadd.f32 %v671, %v681
        %s686 = sld [smem:[#allocation2 + $0x181]]
        %v687 = vstv %s686
        %v688 = vmul.f32 %v687, %v254
        %v689 = vmul.f32 %v687, %v255
        %692 = vrot.lane.b32.xlu0 %v688, 125
        %v693 = vpop.permute.xlu0 %692
        %694 = vrot.lane.b32.xlu0 %v689, 125
        %v695 = vpop.permute.xlu0 %694
        %v698 = vadd.f32 %v684, %v693
        %v699 = vadd.f32 %v685, %v695
        %s700 = sld [smem:[#allocation2 + $0x201]]
        %v701 = vstv %s700
        %v702 = vmul.f32 %v701, %v254
        %v703 = vmul.f32 %v701, %v255
        %706 = vrot.lane.b32.xlu0 %v702, 124
        %v707 = vpop.permute.xlu0 %706
        %708 = vrot.lane.b32.xlu0 %v703, 124
        %v709 = vpop.permute.xlu0 %708
        %v712 = vadd.f32 %v698, %v707
        %v713 = vadd.f32 %v699, %v709
        %s714 = sld [smem:[#allocation2 + $0x281]]
        %v715 = vstv %s714
        %v716 = vmul.f32 %v715, %v254
        %v717 = vmul.f32 %v715, %v255
        %v720 = vrot.slane %v716, 1
        %v721 = vrot.slane %v717, 1
        %v722 = vsel %vm324, %v720, %v721
        %v725 = vadd.f32 %v712, %v722
        %v726 = vadd.f32 %v713, %v721
        %s727 = sld [smem:[#allocation2 + $0x301]]
        %v728 = vstv %s727
        %v729 = vmul.f32 %v728, %v254
        %v730 = vmul.f32 %v728, %v255
        %v733 = vrot.slane %v729, 1
        %v734 = vrot.slane %v730, 1
        %v735 = vsel %vm324, %v733, %v734
        %736 = vrot.lane.b32.xlu0 %v735, 127
        %v737 = vpop.permute.xlu0 %736
        %738 = vrot.lane.b32.xlu0 %v734, 127
        %v739 = vpop.permute.xlu0 %738
        %v742 = vadd.f32 %v725, %v737
        %v743 = vadd.f32 %v726, %v739
        %s744 = sld [smem:[#allocation2 + $0x381]]
        %v745 = vstv %s744
        %v746 = vmul.f32 %v745, %v254
        %v747 = vmul.f32 %v745, %v255
        %v750 = vrot.slane %v746, 1
        %v751 = vrot.slane %v747, 1
        %v752 = vsel %vm324, %v750, %v751
        %753 = vrot.lane.b32.xlu0 %v752, 126
        %v754 = vpop.permute.xlu0 %753
        %755 = vrot.lane.b32.xlu0 %v751, 126
        %v756 = vpop.permute.xlu0 %755
        %v759 = vadd.f32 %v742, %v754
        %v760 = vadd.f32 %v743, %v756
        %s761 = sld [smem:[#allocation2 + $0x401]]
        %v762 = vstv %s761
        %v763 = vmul.f32 %v762, %v254
        %v764 = vmul.f32 %v762, %v255
        %v767 = vrot.slane %v763, 1
        %v768 = vrot.slane %v764, 1
        %v769 = vsel %vm324, %v767, %v768
        %770 = vrot.lane.b32.xlu0 %v769, 125
        %v771 = vpop.permute.xlu0 %770
        %772 = vrot.lane.b32.xlu0 %v768, 125
        %v773 = vpop.permute.xlu0 %772
        %v776 = vadd.f32 %v759, %v771
        %v777 = vadd.f32 %v760, %v773
        %s778 = sld [smem:[#allocation2 + $0x481]]
        %v779 = vstv %s778
        %v780 = vmul.f32 %v779, %v254
        %v781 = vmul.f32 %v779, %v255
        %v784 = vrot.slane %v780, 1
        %v785 = vrot.slane %v781, 1
        %v786 = vsel %vm324, %v784, %v785
        %787 = vrot.lane.b32.xlu0 %v786, 124
        %v788 = vpop.permute.xlu0 %787
        %789 = vrot.lane.b32.xlu0 %v785, 124
        %v790 = vpop.permute.xlu0 %789
        %v793 = vadd.f32 %v776, %v788
        %v794 = vadd.f32 %v777, %v790
        %s795 = sld [smem:[#allocation2 + $0x501]]
        %v796 = vstv %s795
        %v797 = vmul.f32 %v796, %v254
        %v798 = vmul.f32 %v796, %v255
        %v801 = vrot.slane %v797, 2
        %v802 = vrot.slane %v798, 2
        %v803 = vsel %vm406, %v801, %v802
        %v806 = vadd.f32 %v793, %v803
        %v807 = vadd.f32 %v794, %v802
        %s808 = sld [smem:[#allocation2 + $0x581]]
        %v809 = vstv %s808
        %v810 = vmul.f32 %v809, %v254
        %v811 = vmul.f32 %v809, %v255
        %v814 = vrot.slane %v810, 2
        %v815 = vrot.slane %v811, 2
        %v816 = vsel %vm406, %v814, %v815
        %817 = vrot.lane.b32.xlu0 %v816, 127
        %v818 = vpop.permute.xlu0 %817
        %819 = vrot.lane.b32.xlu0 %v815, 127
        %v820 = vpop.permute.xlu0 %819
        %v823 = vadd.f32 %v806, %v818
        %v824 = vadd.f32 %v807, %v820
        %s825 = sld [smem:[#allocation2 + $0x601]]
        %v826 = vstv %s825
        %v827 = vmul.f32 %v826, %v254
        %v828 = vmul.f32 %v826, %v255
        %v831 = vrot.slane %v827, 2
        %v832 = vrot.slane %v828, 2
        %v833 = vsel %vm406, %v831, %v832
        %834 = vrot.lane.b32.xlu0 %v833, 126
        %v835 = vpop.permute.xlu0 %834
        %836 = vrot.lane.b32.xlu0 %v832, 126
        %v837 = vpop.permute.xlu0 %836
        %v840 = vadd.f32 %v823, %v835
        %v841 = vadd.f32 %v824, %v837
        %s842 = sld [smem:[#allocation2 + $0x681]]
        %v843 = vstv %s842
        %v844 = vmul.f32 %v843, %v254
        %v845 = vmul.f32 %v843, %v255
        %v848 = vrot.slane %v844, 2
        %v849 = vrot.slane %v845, 2
        %v850 = vsel %vm406, %v848, %v849
        %851 = vrot.lane.b32.xlu0 %v850, 125
        %v852 = vpop.permute.xlu0 %851
        %853 = vrot.lane.b32.xlu0 %v849, 125
        %v854 = vpop.permute.xlu0 %853
        %v857 = vadd.f32 %v840, %v852
        %v858 = vadd.f32 %v841, %v854
        %s859 = sld [smem:[#allocation2 + $0x701]]
        %v860 = vstv %s859
        %v861 = vmul.f32 %v860, %v254
        %v862 = vmul.f32 %v860, %v255
        %v865 = vrot.slane %v861, 2
        %v866 = vrot.slane %v862, 2
        %v867 = vsel %vm406, %v865, %v866
        %868 = vrot.lane.b32.xlu0 %v867, 124
        %v869 = vpop.permute.xlu0 %868
        %870 = vrot.lane.b32.xlu0 %v866, 124
        %v871 = vpop.permute.xlu0 %870
        %v874 = vadd.f32 %v857, %v869
        %v875 = vadd.f32 %v858, %v871
        %s876 = sld [smem:[#allocation2 + $0x781]]
        %v877 = vstv %s876
        %v878 = vmul.f32 %v877, %v254
        %v879 = vmul.f32 %v877, %v255
        %v882 = vrot.slane %v878, 3
        %v883 = vrot.slane %v879, 3
        %v884 = vsel %vm488, %v882, %v883
        %v887 = vadd.f32 %v874, %v884
        %v888 = vadd.f32 %v875, %v883
        %s889 = sld [smem:[#allocation2 + $0x801]]
        %v890 = vstv %s889
        %v891 = vmul.f32 %v890, %v254
        %v892 = vmul.f32 %v890, %v255
        %v895 = vrot.slane %v891, 3
        %v896 = vrot.slane %v892, 3
        %v897 = vsel %vm488, %v895, %v896
        %898 = vrot.lane.b32.xlu0 %v897, 127
        %v899 = vpop.permute.xlu0 %898
        %900 = vrot.lane.b32.xlu0 %v896, 127
        %v901 = vpop.permute.xlu0 %900
        %v904 = vadd.f32 %v887, %v899
        %v905 = vadd.f32 %v888, %v901
        %s906 = sld [smem:[#allocation2 + $0x881]]
        %v907 = vstv %s906
        %v908 = vmul.f32 %v907, %v254
        %v909 = vmul.f32 %v907, %v255
        %v912 = vrot.slane %v908, 3
        %v913 = vrot.slane %v909, 3
        %v914 = vsel %vm488, %v912, %v913
        %915 = vrot.lane.b32.xlu0 %v914, 126
        %v916 = vpop.permute.xlu0 %915
        %917 = vrot.lane.b32.xlu0 %v913, 126
        %v918 = vpop.permute.xlu0 %917
        %v921 = vadd.f32 %v904, %v916
        %v922 = vadd.f32 %v905, %v918
        %s923 = sld [smem:[#allocation2 + $0x901]]
        %v924 = vstv %s923
        %v925 = vmul.f32 %v924, %v254
        %v926 = vmul.f32 %v924, %v255
        %v929 = vrot.slane %v925, 3
        %v930 = vrot.slane %v926, 3
        %v931 = vsel %vm488, %v929, %v930
        %932 = vrot.lane.b32.xlu0 %v931, 125
        %v933 = vpop.permute.xlu0 %932
        %934 = vrot.lane.b32.xlu0 %v930, 125
        %v935 = vpop.permute.xlu0 %934
        %v938 = vadd.f32 %v921, %v933
        %v939 = vadd.f32 %v922, %v935
        %s940 = sld [smem:[#allocation2 + $0x981]]
        %v941 = vstv %s940
        %v942 = vmul.f32 %v941, %v254
        %v943 = vmul.f32 %v941, %v255
        %v946 = vrot.slane %v942, 3
        %v947 = vrot.slane %v943, 3
        %v948 = vsel %vm488, %v946, %v947
        %949 = vrot.lane.b32.xlu0 %v948, 124
        %v950 = vpop.permute.xlu0 %949
        %951 = vrot.lane.b32.xlu0 %v947, 124
        %v952 = vpop.permute.xlu0 %951
        %v955 = vadd.f32 %v938, %v950
        %v956 = vadd.f32 %v939, %v952
        %s957 = sld [smem:[#allocation2 + $0xa01]]
        %v958 = vstv %s957
        %v959 = vmul.f32 %v958, %v254
        %v960 = vmul.f32 %v958, %v255
        %v963 = vrot.slane %v959, 4
        %v964 = vrot.slane %v960, 4
        %v965 = vsel %vm570, %v963, %v964
        %v968 = vadd.f32 %v955, %v965
        %v969 = vadd.f32 %v956, %v964
        %s970 = sld [smem:[#allocation2 + $0xa81]]
        %v971 = vstv %s970
        %v972 = vmul.f32 %v971, %v254
        %v973 = vmul.f32 %v971, %v255
        %v976 = vrot.slane %v972, 4
        %v977 = vrot.slane %v973, 4
        %v978 = vsel %vm570, %v976, %v977
        %979 = vrot.lane.b32.xlu0 %v978, 127
        %v980 = vpop.permute.xlu0 %979
        %981 = vrot.lane.b32.xlu0 %v977, 127
        %v982 = vpop.permute.xlu0 %981
        %v985 = vadd.f32 %v968, %v980
        %v986 = vadd.f32 %v969, %v982
        %s987 = sld [smem:[#allocation2 + $0xb01]]
        %v988 = vstv %s987
        %v989 = vmul.f32 %v988, %v254
        %v990 = vmul.f32 %v988, %v255
        %v993 = vrot.slane %v989, 4
        %v994 = vrot.slane %v990, 4
        %v995 = vsel %vm570, %v993, %v994
        %996 = vrot.lane.b32.xlu0 %v995, 126
        %v997 = vpop.permute.xlu0 %996
        %998 = vrot.lane.b32.xlu0 %v994, 126
        %v999 = vpop.permute.xlu0 %998
        %v1002 = vadd.f32 %v985, %v997
        %v1003 = vadd.f32 %v986, %v999
        %s1004 = sld [smem:[#allocation2 + $0xb81]]
        %v1005 = vstv %s1004
        %v1006 = vmul.f32 %v1005, %v254
        %v1007 = vmul.f32 %v1005, %v255
        %v1010 = vrot.slane %v1006, 4
        %v1011 = vrot.slane %v1007, 4
        %v1012 = vsel %vm570, %v1010, %v1011
        %1013 = vrot.lane.b32.xlu0 %v1012, 125
        %v1014 = vpop.permute.xlu0 %1013
        %1015 = vrot.lane.b32.xlu0 %v1011, 125
        %v1016 = vpop.permute.xlu0 %1015
        %v1019 = vadd.f32 %v1002, %v1014
        %v1020 = vadd.f32 %v1003, %v1016
        %s1021 = sld [smem:[#allocation2 + $0xc01]]
        %v1022 = vstv %s1021
        %v1023 = vmul.f32 %v1022, %v254
        %v1024 = vmul.f32 %v1022, %v255
        %v1027 = vrot.slane %v1023, 4
        %v1028 = vrot.slane %v1024, 4
        %v1029 = vsel %vm570, %v1027, %v1028
        %1030 = vrot.lane.b32.xlu0 %v1029, 124
        %v1031 = vpop.permute.xlu0 %1030
        %1032 = vrot.lane.b32.xlu0 %v1028, 124
        %v1033 = vpop.permute.xlu0 %1032
        %v1036 = vadd.f32 %v1019, %v1031
        %v1037 = vadd.f32 %v1020, %v1033
        %s1038 = sld [smem:[#allocation4 + $0x1]]
        %v1039 = vstv %s1038
        %v1040 = vadd.f32 %v1036, %v1039
        %v1041 = vadd.f32 %v1037, %v1039
        %v1042 = vmax.f32 %v1040, 0.0
        %v1043 = vmax.f32 %v1041, 0.0
        %s1044 = sld [smem:[#allocation2 + $0x2]]
        %v1045 = vstv %s1044
        %v1046 = vmul.f32 %v1045, %v254
        %v1047 = vmul.f32 %v1045, %v255
        %v1048 = vadd.f32 %v1046, 0.0
        %v1049 = vadd.f32 %v1047, 0.0
        %s1050 = sld [smem:[#allocation2 + $0x82]]
        %v1051 = vstv %s1050
        %v1052 = vmul.f32 %v1051, %v254
        %v1053 = vmul.f32 %v1051, %v255
        %1056 = vrot.lane.b32.xlu0 %v1052, 127
        %v1057 = vpop.permute.xlu0 %1056
        %1058 = vrot.lane.b32.xlu0 %v1053, 127
        %v1059 = vpop.permute.xlu0 %1058
        %v1062 = vadd.f32 %v1048, %v1057
        %v1063 = vadd.f32 %v1049, %v1059
        %s1064 = sld [smem:[#allocation2 + $0x102]]
        %v1065 = vstv %s1064
        %v1066 = vmul.f32 %v1065, %v254
        %v1067 = vmul.f32 %v1065, %v255
        %1070 = vrot.lane.b32.xlu0 %v1066, 126
        %v1071 = vpop.permute.xlu0 %1070
        %1072 = vrot.lane.b32.xlu0 %v1067, 126
        %v1073 = vpop.permute.xlu0 %1072
        %v1076 = vadd.f32 %v1062, %v1071
        %v1077 = vadd.f32 %v1063, %v1073
        %s1078 = sld [smem:[#allocation2 + $0x182]]
        %v1079 = vstv %s1078
        %v1080 = vmul.f32 %v1079, %v254
        %v1081 = vmul.f32 %v1079, %v255
        %1084 = vrot.lane.b32.xlu0 %v1080, 125
        %v1085 = vpop.permute.xlu0 %1084
        %1086 = vrot.lane.b32.xlu0 %v1081, 125
        %v1087 = vpop.permute.xlu0 %1086
        %v1090 = vadd.f32 %v1076, %v1085
        %v1091 = vadd.f32 %v1077, %v1087
        %s1092 = sld [smem:[#allocation2 + $0x202]]
        %v1093 = vstv %s1092
        %v1094 = vmul.f32 %v1093, %v254
        %v1095 = vmul.f32 %v1093, %v255
        %1098 = vrot.lane.b32.xlu0 %v1094, 124
        %v1099 = vpop.permute.xlu0 %1098
        %1100 = vrot.lane.b32.xlu0 %v1095, 124
        %v1101 = vpop.permute.xlu0 %1100
        %v1104 = vadd.f32 %v1090, %v1099
        %v1105 = vadd.f32 %v1091, %v1101
        %s1106 = sld [smem:[#allocation2 + $0x282]]
        %v1107 = vstv %s1106
        %v1108 = vmul.f32 %v1107, %v254
        %v1109 = vmul.f32 %v1107, %v255
        %v1112 = vrot.slane %v1108, 1
        %v1113 = vrot.slane %v1109, 1
        %v1114 = vsel %vm324, %v1112, %v1113
        %v1117 = vadd.f32 %v1104, %v1114
        %v1118 = vadd.f32 %v1105, %v1113
        %s1119 = sld [smem:[#allocation2 + $0x302]]
        %v1120 = vstv %s1119
        %v1121 = vmul.f32 %v1120, %v254
        %v1122 = vmul.f32 %v1120, %v255
        %v1125 = vrot.slane %v1121, 1
        %v1126 = vrot.slane %v1122, 1
        %v1127 = vsel %vm324, %v1125, %v1126
        %1128 = vrot.lane.b32.xlu0 %v1127, 127
        %v1129 = vpop.permute.xlu0 %1128
        %1130 = vrot.lane.b32.xlu0 %v1126, 127
        %v1131 = vpop.permute.xlu0 %1130
        %v1134 = vadd.f32 %v1117, %v1129
        %v1135 = vadd.f32 %v1118, %v1131
        %s1136 = sld [smem:[#allocation2 + $0x382]]
        %v1137 = vstv %s1136
        %v1138 = vmul.f32 %v1137, %v254
        %v1139 = vmul.f32 %v1137, %v255
        %v1142 = vrot.slane %v1138, 1
        %v1143 = vrot.slane %v1139, 1
        %v1144 = vsel %vm324, %v1142, %v1143
        %1145 = vrot.lane.b32.xlu0 %v1144, 126
        %v1146 = vpop.permute.xlu0 %1145
        %1147 = vrot.lane.b32.xlu0 %v1143, 126
        %v1148 = vpop.permute.xlu0 %1147
        %v1151 = vadd.f32 %v1134, %v1146
        %v1152 = vadd.f32 %v1135, %v1148
        %s1153 = sld [smem:[#allocation2 + $0x402]]
        %v1154 = vstv %s1153
        %v1155 = vmul.f32 %v1154, %v254
        %v1156 = vmul.f32 %v1154, %v255
        %v1159 = vrot.slane %v1155, 1
        %v1160 = vrot.slane %v1156, 1
        %v1161 = vsel %vm324, %v1159, %v1160
        %1162 = vrot.lane.b32.xlu0 %v1161, 125
        %v1163 = vpop.permute.xlu0 %1162
        %1164 = vrot.lane.b32.xlu0 %v1160, 125
        %v1165 = vpop.permute.xlu0 %1164
        %v1168 = vadd.f32 %v1151, %v1163
        %v1169 = vadd.f32 %v1152, %v1165
        %s1170 = sld [smem:[#allocation2 + $0x482]]
        %v1171 = vstv %s1170
        %v1172 = vmul.f32 %v1171, %v254
        %v1173 = vmul.f32 %v1171, %v255
        %v1176 = vrot.slane %v1172, 1
        %v1177 = vrot.slane %v1173, 1
        %v1178 = vsel %vm324, %v1176, %v1177
        %1179 = vrot.lane.b32.xlu0 %v1178, 124
        %v1180 = vpop.permute.xlu0 %1179
        %1181 = vrot.lane.b32.xlu0 %v1177, 124
        %v1182 = vpop.permute.xlu0 %1181
        %v1185 = vadd.f32 %v1168, %v1180
        %v1186 = vadd.f32 %v1169, %v1182
        %s1187 = sld [smem:[#allocation2 + $0x502]]
        %v1188 = vstv %s1187
        %v1189 = vmul.f32 %v1188, %v254
        %v1190 = vmul.f32 %v1188, %v255
        %v1193 = vrot.slane %v1189, 2
        %v1194 = vrot.slane %v1190, 2
        %v1195 = vsel %vm406, %v1193, %v1194
        %v1198 = vadd.f32 %v1185, %v1195
        %v1199 = vadd.f32 %v1186, %v1194
        %s1200 = sld [smem:[#allocation2 + $0x582]]
        %v1201 = vstv %s1200
        %v1202 = vmul.f32 %v1201, %v254
        %v1203 = vmul.f32 %v1201, %v255
        %v1206 = vrot.slane %v1202, 2
        %v1207 = vrot.slane %v1203, 2
        %v1208 = vsel %vm406, %v1206, %v1207
        %1209 = vrot.lane.b32.xlu0 %v1208, 127
        %v1210 = vpop.permute.xlu0 %1209
        %1211 = vrot.lane.b32.xlu0 %v1207, 127
        %v1212 = vpop.permute.xlu0 %1211
        %v1215 = vadd.f32 %v1198, %v1210
        %v1216 = vadd.f32 %v1199, %v1212
        %s1217 = sld [smem:[#allocation2 + $0x602]]
        %v1218 = vstv %s1217
        %v1219 = vmul.f32 %v1218, %v254
        %v1220 = vmul.f32 %v1218, %v255
        %v1223 = vrot.slane %v1219, 2
        %v1224 = vrot.slane %v1220, 2
        %v1225 = vsel %vm406, %v1223, %v1224
        %1226 = vrot.lane.b32.xlu0 %v1225, 126
        %v1227 = vpop.permute.xlu0 %1226
        %1228 = vrot.lane.b32.xlu0 %v1224, 126
        %v1229 = vpop.permute.xlu0 %1228
        %v1232 = vadd.f32 %v1215, %v1227
        %v1233 = vadd.f32 %v1216, %v1229
        %s1234 = sld [smem:[#allocation2 + $0x682]]
        %v1235 = vstv %s1234
        %v1236 = vmul.f32 %v1235, %v254
        %v1237 = vmul.f32 %v1235, %v255
        %v1240 = vrot.slane %v1236, 2
        %v1241 = vrot.slane %v1237, 2
        %v1242 = vsel %vm406, %v1240, %v1241
        %1243 = vrot.lane.b32.xlu0 %v1242, 125
        %v1244 = vpop.permute.xlu0 %1243
        %1245 = vrot.lane.b32.xlu0 %v1241, 125
        %v1246 = vpop.permute.xlu0 %1245
        %v1249 = vadd.f32 %v1232, %v1244
        %v1250 = vadd.f32 %v1233, %v1246
        %s1251 = sld [smem:[#allocation2 + $0x702]]
        %v1252 = vstv %s1251
        %v1253 = vmul.f32 %v1252, %v254
        %v1254 = vmul.f32 %v1252, %v255
        %v1257 = vrot.slane %v1253, 2
        %v1258 = vrot.slane %v1254, 2
        %v1259 = vsel %vm406, %v1257, %v1258
        %1260 = vrot.lane.b32.xlu0 %v1259, 124
        %v1261 = vpop.permute.xlu0 %1260
        %1262 = vrot.lane.b32.xlu0 %v1258, 124
        %v1263 = vpop.permute.xlu0 %1262
        %v1266 = vadd.f32 %v1249, %v1261
        %v1267 = vadd.f32 %v1250, %v1263
        %s1268 = sld [smem:[#allocation2 + $0x782]]
        %v1269 = vstv %s1268
        %v1270 = vmul.f32 %v1269, %v254
        %v1271 = vmul.f32 %v1269, %v255
        %v1274 = vrot.slane %v1270, 3
        %v1275 = vrot.slane %v1271, 3
        %v1276 = vsel %vm488, %v1274, %v1275
        %v1279 = vadd.f32 %v1266, %v1276
        %v1280 = vadd.f32 %v1267, %v1275
        %s1281 = sld [smem:[#allocation2 + $0x802]]
        %v1282 = vstv %s1281
        %v1283 = vmul.f32 %v1282, %v254
        %v1284 = vmul.f32 %v1282, %v255
        %v1287 = vrot.slane %v1283, 3
        %v1288 = vrot.slane %v1284, 3
        %v1289 = vsel %vm488, %v1287, %v1288
        %1290 = vrot.lane.b32.xlu0 %v1289, 127
        %v1291 = vpop.permute.xlu0 %1290
        %1292 = vrot.lane.b32.xlu0 %v1288, 127
        %v1293 = vpop.permute.xlu0 %1292
        %v1296 = vadd.f32 %v1279, %v1291
        %v1297 = vadd.f32 %v1280, %v1293
        %s1298 = sld [smem:[#allocation2 + $0x882]]
        %v1299 = vstv %s1298
        %v1300 = vmul.f32 %v1299, %v254
        %v1301 = vmul.f32 %v1299, %v255
        %v1304 = vrot.slane %v1300, 3
        %v1305 = vrot.slane %v1301, 3
        %v1306 = vsel %vm488, %v1304, %v1305
        %1307 = vrot.lane.b32.xlu0 %v1306, 126
        %v1308 = vpop.permute.xlu0 %1307
        %1309 = vrot.lane.b32.xlu0 %v1305, 126
        %v1310 = vpop.permute.xlu0 %1309
        %v1313 = vadd.f32 %v1296, %v1308
        %v1314 = vadd.f32 %v1297, %v1310
        %s1315 = sld [smem:[#allocation2 + $0x902]]
        %v1316 = vstv %s1315
        %v1317 = vmul.f32 %v1316, %v254
        %v1318 = vmul.f32 %v1316, %v255
        %v1321 = vrot.slane %v1317, 3
        %v1322 = vrot.slane %v1318, 3
        %v1323 = vsel %vm488, %v1321, %v1322
        %1324 = vrot.lane.b32.xlu0 %v1323, 125
        %v1325 = vpop.permute.xlu0 %1324
        %1326 = vrot.lane.b32.xlu0 %v1322, 125
        %v1327 = vpop.permute.xlu0 %1326
        %v1330 = vadd.f32 %v1313, %v1325
        %v1331 = vadd.f32 %v1314, %v1327
        %s1332 = sld [smem:[#allocation2 + $0x982]]
        %v1333 = vstv %s1332
        %v1334 = vmul.f32 %v1333, %v254
        %v1335 = vmul.f32 %v1333, %v255
        %v1338 = vrot.slane %v1334, 3
        %v1339 = vrot.slane %v1335, 3
        %v1340 = vsel %vm488, %v1338, %v1339
        %1341 = vrot.lane.b32.xlu0 %v1340, 124
        %v1342 = vpop.permute.xlu0 %1341
        %1343 = vrot.lane.b32.xlu0 %v1339, 124
        %v1344 = vpop.permute.xlu0 %1343
        %v1347 = vadd.f32 %v1330, %v1342
        %v1348 = vadd.f32 %v1331, %v1344
        %s1349 = sld [smem:[#allocation2 + $0xa02]]
        %v1350 = vstv %s1349
        %v1351 = vmul.f32 %v1350, %v254
        %v1352 = vmul.f32 %v1350, %v255
        %v1355 = vrot.slane %v1351, 4
        %v1356 = vrot.slane %v1352, 4
        %v1357 = vsel %vm570, %v1355, %v1356
        %v1360 = vadd.f32 %v1347, %v1357
        %v1361 = vadd.f32 %v1348, %v1356
        %s1362 = sld [smem:[#allocation2 + $0xa82]]
        %v1363 = vstv %s1362
        %v1364 = vmul.f32 %v1363, %v254
        %v1365 = vmul.f32 %v1363, %v255
        %v1368 = vrot.slane %v1364, 4
        %v1369 = vrot.slane %v1365, 4
        %v1370 = vsel %vm570, %v1368, %v1369
        %1371 = vrot.lane.b32.xlu0 %v1370, 127
        %v1372 = vpop.permute.xlu0 %1371
        %1373 = vrot.lane.b32.xlu0 %v1369, 127
        %v1374 = vpop.permute.xlu0 %1373
        %v1377 = vadd.f32 %v1360, %v1372
        %v1378 = vadd.f32 %v1361, %v1374
        %s1379 = sld [smem:[#allocation2 + $0xb02]]
        %v1380 = vstv %s1379
        %v1381 = vmul.f32 %v1380, %v254
        %v1382 = vmul.f32 %v1380, %v255
        %v1385 = vrot.slane %v1381, 4
        %v1386 = vrot.slane %v1382, 4
        %v1387 = vsel %vm570, %v1385, %v1386
        %1388 = vrot.lane.b32.xlu0 %v1387, 126
        %v1389 = vpop.permute.xlu0 %1388
        %1390 = vrot.lane.b32.xlu0 %v1386, 126
        %v1391 = vpop.permute.xlu0 %1390
        %v1394 = vadd.f32 %v1377, %v1389
        %v1395 = vadd.f32 %v1378, %v1391
        %s1396 = sld [smem:[#allocation2 + $0xb82]]
        %v1397 = vstv %s1396
        %v1398 = vmul.f32 %v1397, %v254
        %v1399 = vmul.f32 %v1397, %v255
        %v1402 = vrot.slane %v1398, 4
        %v1403 = vrot.slane %v1399, 4
        %v1404 = vsel %vm570, %v1402, %v1403
        %1405 = vrot.lane.b32.xlu0 %v1404, 125
        %v1406 = vpop.permute.xlu0 %1405
        %1407 = vrot.lane.b32.xlu0 %v1403, 125
        %v1408 = vpop.permute.xlu0 %1407
        %v1411 = vadd.f32 %v1394, %v1406
        %v1412 = vadd.f32 %v1395, %v1408
        %s1413 = sld [smem:[#allocation2 + $0xc02]]
        %v1414 = vstv %s1413
        %v1415 = vmul.f32 %v1414, %v254
        %v1416 = vmul.f32 %v1414, %v255
        %v1419 = vrot.slane %v1415, 4
        %v1420 = vrot.slane %v1416, 4
        %v1421 = vsel %vm570, %v1419, %v1420
        %1422 = vrot.lane.b32.xlu0 %v1421, 124
        %v1423 = vpop.permute.xlu0 %1422
        %1424 = vrot.lane.b32.xlu0 %v1420, 124
        %v1425 = vpop.permute.xlu0 %1424
        %v1428 = vadd.f32 %v1411, %v1423
        %v1429 = vadd.f32 %v1412, %v1425
        %s1430 = sld [smem:[#allocation4 + $0x2]]
        %v1431 = vstv %s1430
        %v1432 = vadd.f32 %v1428, %v1431
        %v1433 = vadd.f32 %v1429, %v1431
        %v1434 = vmax.f32 %v1432, 0.0
        %v1435 = vmax.f32 %v1433, 0.0
        %s1436 = sld [smem:[#allocation2 + $0x3]]
        %v1437 = vstv %s1436
        %v1438 = vmul.f32 %v1437, %v254
        %v1439 = vmul.f32 %v1437, %v255
        %v1440 = vadd.f32 %v1438, 0.0
        %v1441 = vadd.f32 %v1439, 0.0
        %s1442 = sld [smem:[#allocation2 + $0x83]]
        %v1443 = vstv %s1442
        %v1444 = vmul.f32 %v1443, %v254
        %v1445 = vmul.f32 %v1443, %v255
        %1448 = vrot.lane.b32.xlu0 %v1444, 127
        %v1449 = vpop.permute.xlu0 %1448
        %1450 = vrot.lane.b32.xlu0 %v1445, 127
        %v1451 = vpop.permute.xlu0 %1450
        %v1454 = vadd.f32 %v1440, %v1449
        %v1455 = vadd.f32 %v1441, %v1451
        %s1456 = sld [smem:[#allocation2 + $0x103]]
        %v1457 = vstv %s1456
        %v1458 = vmul.f32 %v1457, %v254
        %v1459 = vmul.f32 %v1457, %v255
        %1462 = vrot.lane.b32.xlu0 %v1458, 126
        %v1463 = vpop.permute.xlu0 %1462
        %1464 = vrot.lane.b32.xlu0 %v1459, 126
        %v1465 = vpop.permute.xlu0 %1464
        %v1468 = vadd.f32 %v1454, %v1463
        %v1469 = vadd.f32 %v1455, %v1465
        %s1470 = sld [smem:[#allocation2 + $0x183]]
        %v1471 = vstv %s1470
        %v1472 = vmul.f32 %v1471, %v254
        %v1473 = vmul.f32 %v1471, %v255
        %1476 = vrot.lane.b32.xlu0 %v1472, 125
        %v1477 = vpop.permute.xlu0 %1476
        %1478 = vrot.lane.b32.xlu0 %v1473, 125
        %v1479 = vpop.permute.xlu0 %1478
        %v1482 = vadd.f32 %v1468, %v1477
        %v1483 = vadd.f32 %v1469, %v1479
        %s1484 = sld [smem:[#allocation2 + $0x203]]
        %v1485 = vstv %s1484
        %v1486 = vmul.f32 %v1485, %v254
        %v1487 = vmul.f32 %v1485, %v255
        %1490 = vrot.lane.b32.xlu0 %v1486, 124
        %v1491 = vpop.permute.xlu0 %1490
        %1492 = vrot.lane.b32.xlu0 %v1487, 124
        %v1493 = vpop.permute.xlu0 %1492
        %v1496 = vadd.f32 %v1482, %v1491
        %v1497 = vadd.f32 %v1483, %v1493
        %s1498 = sld [smem:[#allocation2 + $0x283]]
        %v1499 = vstv %s1498
        %v1500 = vmul.f32 %v1499, %v254
        %v1501 = vmul.f32 %v1499, %v255
        %v1504 = vrot.slane %v1500, 1
        %v1505 = vrot.slane %v1501, 1
        %v1506 = vsel %vm324, %v1504, %v1505
        %v1509 = vadd.f32 %v1496, %v1506
        %v1510 = vadd.f32 %v1497, %v1505
        %s1511 = sld [smem:[#allocation2 + $0x303]]
        %v1512 = vstv %s1511
        %v1513 = vmul.f32 %v1512, %v254
        %v1514 = vmul.f32 %v1512, %v255
        %v1517 = vrot.slane %v1513, 1
        %v1518 = vrot.slane %v1514, 1
        %v1519 = vsel %vm324, %v1517, %v1518
        %1520 = vrot.lane.b32.xlu0 %v1519, 127
        %v1521 = vpop.permute.xlu0 %1520
        %1522 = vrot.lane.b32.xlu0 %v1518, 127
        %v1523 = vpop.permute.xlu0 %1522
        %v1526 = vadd.f32 %v1509, %v1521
        %v1527 = vadd.f32 %v1510, %v1523
        %s1528 = sld [smem:[#allocation2 + $0x383]]
        %v1529 = vstv %s1528
        %v1530 = vmul.f32 %v1529, %v254
        %v1531 = vmul.f32 %v1529, %v255
        %v1534 = vrot.slane %v1530, 1
        %v1535 = vrot.slane %v1531, 1
        %v1536 = vsel %vm324, %v1534, %v1535
        %1537 = vrot.lane.b32.xlu0 %v1536, 126
        %v1538 = vpop.permute.xlu0 %1537
        %1539 = vrot.lane.b32.xlu0 %v1535, 126
        %v1540 = vpop.permute.xlu0 %1539
        %v1543 = vadd.f32 %v1526, %v1538
        %v1544 = vadd.f32 %v1527, %v1540
        %s1545 = sld [smem:[#allocation2 + $0x403]]
        %v1546 = vstv %s1545
        %v1547 = vmul.f32 %v1546, %v254
        %v1548 = vmul.f32 %v1546, %v255
        %v1551 = vrot.slane %v1547, 1
        %v1552 = vrot.slane %v1548, 1
        %v1553 = vsel %vm324, %v1551, %v1552
        %1554 = vrot.lane.b32.xlu0 %v1553, 125
        %v1555 = vpop.permute.xlu0 %1554
        %1556 = vrot.lane.b32.xlu0 %v1552, 125
        %v1557 = vpop.permute.xlu0 %1556
        %v1560 = vadd.f32 %v1543, %v1555
        %v1561 = vadd.f32 %v1544, %v1557
        %s1562 = sld [smem:[#allocation2 + $0x483]]
        %v1563 = vstv %s1562
        %v1564 = vmul.f32 %v1563, %v254
        %v1565 = vmul.f32 %v1563, %v255
        %v1568 = vrot.slane %v1564, 1
        %v1569 = vrot.slane %v1565, 1
        %v1570 = vsel %vm324, %v1568, %v1569
        %1571 = vrot.lane.b32.xlu0 %v1570, 124
        %v1572 = vpop.permute.xlu0 %1571
        %1573 = vrot.lane.b32.xlu0 %v1569, 124
        %v1574 = vpop.permute.xlu0 %1573
        %v1577 = vadd.f32 %v1560, %v1572
        %v1578 = vadd.f32 %v1561, %v1574
        %s1579 = sld [smem:[#allocation2 + $0x503]]
        %v1580 = vstv %s1579
        %v1581 = vmul.f32 %v1580, %v254
        %v1582 = vmul.f32 %v1580, %v255
        %v1585 = vrot.slane %v1581, 2
        %v1586 = vrot.slane %v1582, 2
        %v1587 = vsel %vm406, %v1585, %v1586
        %v1590 = vadd.f32 %v1577, %v1587
        %v1591 = vadd.f32 %v1578, %v1586
        %s1592 = sld [smem:[#allocation2 + $0x583]]
        %v1593 = vstv %s1592
        %v1594 = vmul.f32 %v1593, %v254
        %v1595 = vmul.f32 %v1593, %v255
        %v1598 = vrot.slane %v1594, 2
        %v1599 = vrot.slane %v1595, 2
        %v1600 = vsel %vm406, %v1598, %v1599
        %1601 = vrot.lane.b32.xlu0 %v1600, 127
        %v1602 = vpop.permute.xlu0 %1601
        %1603 = vrot.lane.b32.xlu0 %v1599, 127
        %v1604 = vpop.permute.xlu0 %1603
        %v1607 = vadd.f32 %v1590, %v1602
        %v1608 = vadd.f32 %v1591, %v1604
        %s1609 = sld [smem:[#allocation2 + $0x603]]
        %v1610 = vstv %s1609
        %v1611 = vmul.f32 %v1610, %v254
        %v1612 = vmul.f32 %v1610, %v255
        %v1615 = vrot.slane %v1611, 2
        %v1616 = vrot.slane %v1612, 2
        %v1617 = vsel %vm406, %v1615, %v1616
        %1618 = vrot.lane.b32.xlu0 %v1617, 126
        %v1619 = vpop.permute.xlu0 %1618
        %1620 = vrot.lane.b32.xlu0 %v1616, 126
        %v1621 = vpop.permute.xlu0 %1620
        %v1624 = vadd.f32 %v1607, %v1619
        %v1625 = vadd.f32 %v1608, %v1621
        %s1626 = sld [smem:[#allocation2 + $0x683]]
        %v1627 = vstv %s1626
        %v1628 = vmul.f32 %v1627, %v254
        %v1629 = vmul.f32 %v1627, %v255
        %v1632 = vrot.slane %v1628, 2
        %v1633 = vrot.slane %v1629, 2
        %v1634 = vsel %vm406, %v1632, %v1633
        %1635 = vrot.lane.b32.xlu0 %v1634, 125
        %v1636 = vpop.permute.xlu0 %1635
        %1637 = vrot.lane.b32.xlu0 %v1633, 125
        %v1638 = vpop.permute.xlu0 %1637
        %v1641 = vadd.f32 %v1624, %v1636
        %v1642 = vadd.f32 %v1625, %v1638
        %s1643 = sld [smem:[#allocation2 + $0x703]]
        %v1644 = vstv %s1643
        %v1645 = vmul.f32 %v1644, %v254
        %v1646 = vmul.f32 %v1644, %v255
        %v1649 = vrot.slane %v1645, 2
        %v1650 = vrot.slane %v1646, 2
        %v1651 = vsel %vm406, %v1649, %v1650
        %1652 = vrot.lane.b32.xlu0 %v1651, 124
        %v1653 = vpop.permute.xlu0 %1652
        %1654 = vrot.lane.b32.xlu0 %v1650, 124
        %v1655 = vpop.permute.xlu0 %1654
        %v1658 = vadd.f32 %v1641, %v1653
        %v1659 = vadd.f32 %v1642, %v1655
        %s1660 = sld [smem:[#allocation2 + $0x783]]
        %v1661 = vstv %s1660
        %v1662 = vmul.f32 %v1661, %v254
        %v1663 = vmul.f32 %v1661, %v255
        %v1666 = vrot.slane %v1662, 3
        %v1667 = vrot.slane %v1663, 3
        %v1668 = vsel %vm488, %v1666, %v1667
        %v1671 = vadd.f32 %v1658, %v1668
        %v1672 = vadd.f32 %v1659, %v1667
        %s1673 = sld [smem:[#allocation2 + $0x803]]
        %v1674 = vstv %s1673
        %v1675 = vmul.f32 %v1674, %v254
        %v1676 = vmul.f32 %v1674, %v255
        %v1679 = vrot.slane %v1675, 3
        %v1680 = vrot.slane %v1676, 3
        %v1681 = vsel %vm488, %v1679, %v1680
        %1682 = vrot.lane.b32.xlu0 %v1681, 127
        %v1683 = vpop.permute.xlu0 %1682
        %1684 = vrot.lane.b32.xlu0 %v1680, 127
        %v1685 = vpop.permute.xlu0 %1684
        %v1688 = vadd.f32 %v1671, %v1683
        %v1689 = vadd.f32 %v1672, %v1685
        %s1690 = sld [smem:[#allocation2 + $0x883]]
        %v1691 = vstv %s1690
        %v1692 = vmul.f32 %v1691, %v254
        %v1693 = vmul.f32 %v1691, %v255
        %v1696 = vrot.slane %v1692, 3
        %v1697 = vrot.slane %v1693, 3
        %v1698 = vsel %vm488, %v1696, %v1697
        %1699 = vrot.lane.b32.xlu0 %v1698, 126
        %v1700 = vpop.permute.xlu0 %1699
        %1701 = vrot.lane.b32.xlu0 %v1697, 126
        %v1702 = vpop.permute.xlu0 %1701
        %v1705 = vadd.f32 %v1688, %v1700
        %v1706 = vadd.f32 %v1689, %v1702
        %s1707 = sld [smem:[#allocation2 + $0x903]]
        %v1708 = vstv %s1707
        %v1709 = vmul.f32 %v1708, %v254
        %v1710 = vmul.f32 %v1708, %v255
        %v1713 = vrot.slane %v1709, 3
        %v1714 = vrot.slane %v1710, 3
        %v1715 = vsel %vm488, %v1713, %v1714
        %1716 = vrot.lane.b32.xlu0 %v1715, 125
        %v1717 = vpop.permute.xlu0 %1716
        %1718 = vrot.lane.b32.xlu0 %v1714, 125
        %v1719 = vpop.permute.xlu0 %1718
        %v1722 = vadd.f32 %v1705, %v1717
        %v1723 = vadd.f32 %v1706, %v1719
        %s1724 = sld [smem:[#allocation2 + $0x983]]
        %v1725 = vstv %s1724
        %v1726 = vmul.f32 %v1725, %v254
        %v1727 = vmul.f32 %v1725, %v255
        %v1730 = vrot.slane %v1726, 3
        %v1731 = vrot.slane %v1727, 3
        %v1732 = vsel %vm488, %v1730, %v1731
        %1733 = vrot.lane.b32.xlu0 %v1732, 124
        %v1734 = vpop.permute.xlu0 %1733
        %1735 = vrot.lane.b32.xlu0 %v1731, 124
        %v1736 = vpop.permute.xlu0 %1735
        %v1739 = vadd.f32 %v1722, %v1734
        %v1740 = vadd.f32 %v1723, %v1736
        %s1741 = sld [smem:[#allocation2 + $0xa03]]
        %v1742 = vstv %s1741
        %v1743 = vmul.f32 %v1742, %v254
        %v1744 = vmul.f32 %v1742, %v255
        %v1747 = vrot.slane %v1743, 4
        %v1748 = vrot.slane %v1744, 4
        %v1749 = vsel %vm570, %v1747, %v1748
        %v1752 = vadd.f32 %v1739, %v1749
        %v1753 = vadd.f32 %v1740, %v1748
        %s1754 = sld [smem:[#allocation2 + $0xa83]]
        %v1755 = vstv %s1754
        %v1756 = vmul.f32 %v1755, %v254
        %v1757 = vmul.f32 %v1755, %v255
        %v1760 = vrot.slane %v1756, 4
        %v1761 = vrot.slane %v1757, 4
        %v1762 = vsel %vm570, %v1760, %v1761
        %1763 = vrot.lane.b32.xlu0 %v1762, 127
        %v1764 = vpop.permute.xlu0 %1763
        %1765 = vrot.lane.b32.xlu0 %v1761, 127
        %v1766 = vpop.permute.xlu0 %1765
        %v1769 = vadd.f32 %v1752, %v1764
        %v1770 = vadd.f32 %v1753, %v1766
        %s1771 = sld [smem:[#allocation2 + $0xb03]]
        %v1772 = vstv %s1771
        %v1773 = vmul.f32 %v1772, %v254
        %v1774 = vmul.f32 %v1772, %v255
        %v1777 = vrot.slane %v1773, 4
        %v1778 = vrot.slane %v1774, 4
        %v1779 = vsel %vm570, %v1777, %v1778
        %1780 = vrot.lane.b32.xlu0 %v1779, 126
        %v1781 = vpop.permute.xlu0 %1780
        %1782 = vrot.lane.b32.xlu0 %v1778, 126
        %v1783 = vpop.permute.xlu0 %1782
        %v1786 = vadd.f32 %v1769, %v1781
        %v1787 = vadd.f32 %v1770, %v1783
        %s1788 = sld [smem:[#allocation2 + $0xb83]]
        %v1789 = vstv %s1788
        %v1790 = vmul.f32 %v1789, %v254
        %v1791 = vmul.f32 %v1789, %v255
        %v1794 = vrot.slane %v1790, 4
        %v1795 = vrot.slane %v1791, 4
        %v1796 = vsel %vm570, %v1794, %v1795
        %1797 = vrot.lane.b32.xlu0 %v1796, 125
        %v1798 = vpop.permute.xlu0 %1797
        %1799 = vrot.lane.b32.xlu0 %v1795, 125
        %v1800 = vpop.permute.xlu0 %1799
        %v1803 = vadd.f32 %v1786, %v1798
        %v1804 = vadd.f32 %v1787, %v1800
        %s1805 = sld [smem:[#allocation2 + $0xc03]]
        %v1806 = vstv %s1805
        %v1807 = vmul.f32 %v1806, %v254
        %v1808 = vmul.f32 %v1806, %v255
        %v1811 = vrot.slane %v1807, 4
        %v1812 = vrot.slane %v1808, 4
        %v1813 = vsel %vm570, %v1811, %v1812
        %1814 = vrot.lane.b32.xlu0 %v1813, 124
        %v1815 = vpop.permute.xlu0 %1814
        %1816 = vrot.lane.b32.xlu0 %v1812, 124
        %v1817 = vpop.permute.xlu0 %1816
        %v1820 = vadd.f32 %v1803, %v1815
        %v1821 = vadd.f32 %v1804, %v1817
        %s1822 = sld [smem:[#allocation4 + $0x3]]
        %v1823 = vstv %s1822
        %v1824 = vadd.f32 %v1820, %v1823
        %v1825 = vadd.f32 %v1821, %v1823
        %v1826 = vmax.f32 %v1824, 0.0
        %v1827 = vmax.f32 %v1825, 0.0
        %s1828 = sld [smem:[#allocation2 + $0x4]]
        %v1829 = vstv %s1828
        %v1830 = vmul.f32 %v1829, %v254
        %v1831 = vmul.f32 %v1829, %v255
        %v1832 = vadd.f32 %v1830, 0.0
        %v1833 = vadd.f32 %v1831, 0.0
        %s1834 = sld [smem:[#allocation2 + $0x84]]
        %v1835 = vstv %s1834
        %v1836 = vmul.f32 %v1835, %v254
        %v1837 = vmul.f32 %v1835, %v255
        %1840 = vrot.lane.b32.xlu0 %v1836, 127
        %v1841 = vpop.permute.xlu0 %1840
        %1842 = vrot.lane.b32.xlu0 %v1837, 127
        %v1843 = vpop.permute.xlu0 %1842
        %v1846 = vadd.f32 %v1832, %v1841
        %v1847 = vadd.f32 %v1833, %v1843
        %s1848 = sld [smem:[#allocation2 + $0x104]]
        %v1849 = vstv %s1848
        %v1850 = vmul.f32 %v1849, %v254
        %v1851 = vmul.f32 %v1849, %v255
        %1854 = vrot.lane.b32.xlu0 %v1850, 126
        %v1855 = vpop.permute.xlu0 %1854
        %1856 = vrot.lane.b32.xlu0 %v1851, 126
        %v1857 = vpop.permute.xlu0 %1856
        %v1860 = vadd.f32 %v1846, %v1855
        %v1861 = vadd.f32 %v1847, %v1857
        %s1862 = sld [smem:[#allocation2 + $0x184]]
        %v1863 = vstv %s1862
        %v1864 = vmul.f32 %v1863, %v254
        %v1865 = vmul.f32 %v1863, %v255
        %1868 = vrot.lane.b32.xlu0 %v1864, 125
        %v1869 = vpop.permute.xlu0 %1868
        %1870 = vrot.lane.b32.xlu0 %v1865, 125
        %v1871 = vpop.permute.xlu0 %1870
        %v1874 = vadd.f32 %v1860, %v1869
        %v1875 = vadd.f32 %v1861, %v1871
        %s1876 = sld [smem:[#allocation2 + $0x204]]
        %v1877 = vstv %s1876
        %v1878 = vmul.f32 %v1877, %v254
        %v1879 = vmul.f32 %v1877, %v255
        %1882 = vrot.lane.b32.xlu0 %v1878, 124
        %v1883 = vpop.permute.xlu0 %1882
        %1884 = vrot.lane.b32.xlu0 %v1879, 124
        %v1885 = vpop.permute.xlu0 %1884
        %v1888 = vadd.f32 %v1874, %v1883
        %v1889 = vadd.f32 %v1875, %v1885
        %s1890 = sld [smem:[#allocation2 + $0x284]]
        %v1891 = vstv %s1890
        %v1892 = vmul.f32 %v1891, %v254
        %v1893 = vmul.f32 %v1891, %v255
        %v1896 = vrot.slane %v1892, 1
        %v1897 = vrot.slane %v1893, 1
        %v1898 = vsel %vm324, %v1896, %v1897
        %v1901 = vadd.f32 %v1888, %v1898
        %v1902 = vadd.f32 %v1889, %v1897
        %s1903 = sld [smem:[#allocation2 + $0x304]]
        %v1904 = vstv %s1903
        %v1905 = vmul.f32 %v1904, %v254
        %v1906 = vmul.f32 %v1904, %v255
        %v1909 = vrot.slane %v1905, 1
        %v1910 = vrot.slane %v1906, 1
        %v1911 = vsel %vm324, %v1909, %v1910
        %1912 = vrot.lane.b32.xlu0 %v1911, 127
        %v1913 = vpop.permute.xlu0 %1912
        %1914 = vrot.lane.b32.xlu0 %v1910, 127
        %v1915 = vpop.permute.xlu0 %1914
        %v1918 = vadd.f32 %v1901, %v1913
        %v1919 = vadd.f32 %v1902, %v1915
        %s1920 = sld [smem:[#allocation2 + $0x384]]
        %v1921 = vstv %s1920
        %v1922 = vmul.f32 %v1921, %v254
        %v1923 = vmul.f32 %v1921, %v255
        %v1926 = vrot.slane %v1922, 1
        %v1927 = vrot.slane %v1923, 1
        %v1928 = vsel %vm324, %v1926, %v1927
        %1929 = vrot.lane.b32.xlu0 %v1928, 126
        %v1930 = vpop.permute.xlu0 %1929
        %1931 = vrot.lane.b32.xlu0 %v1927, 126
        %v1932 = vpop.permute.xlu0 %1931
        %v1935 = vadd.f32 %v1918, %v1930
        %v1936 = vadd.f32 %v1919, %v1932
        %s1937 = sld [smem:[#allocation2 + $0x404]]
        %v1938 = vstv %s1937
        %v1939 = vmul.f32 %v1938, %v254
        %v1940 = vmul.f32 %v1938, %v255
        %v1943 = vrot.slane %v1939, 1
        %v1944 = vrot.slane %v1940, 1
        %v1945 = vsel %vm324, %v1943, %v1944
        %1946 = vrot.lane.b32.xlu0 %v1945, 125
        %v1947 = vpop.permute.xlu0 %1946
        %1948 = vrot.lane.b32.xlu0 %v1944, 125
        %v1949 = vpop.permute.xlu0 %1948
        %v1952 = vadd.f32 %v1935, %v1947
        %v1953 = vadd.f32 %v1936, %v1949
        %s1954 = sld [smem:[#allocation2 + $0x484]]
        %v1955 = vstv %s1954
        %v1956 = vmul.f32 %v1955, %v254
        %v1957 = vmul.f32 %v1955, %v255
        %v1960 = vrot.slane %v1956, 1
        %v1961 = vrot.slane %v1957, 1
        %v1962 = vsel %vm324, %v1960, %v1961
        %1963 = vrot.lane.b32.xlu0 %v1962, 124
        %v1964 = vpop.permute.xlu0 %1963
        %1965 = vrot.lane.b32.xlu0 %v1961, 124
        %v1966 = vpop.permute.xlu0 %1965
        %v1969 = vadd.f32 %v1952, %v1964
        %v1970 = vadd.f32 %v1953, %v1966
        %s1971 = sld [smem:[#allocation2 + $0x504]]
        %v1972 = vstv %s1971
        %v1973 = vmul.f32 %v1972, %v254
        %v1974 = vmul.f32 %v1972, %v255
        %v1977 = vrot.slane %v1973, 2
        %v1978 = vrot.slane %v1974, 2
        %v1979 = vsel %vm406, %v1977, %v1978
        %v1982 = vadd.f32 %v1969, %v1979
        %v1983 = vadd.f32 %v1970, %v1978
        %s1984 = sld [smem:[#allocation2 + $0x584]]
        %v1985 = vstv %s1984
        %v1986 = vmul.f32 %v1985, %v254
        %v1987 = vmul.f32 %v1985, %v255
        %v1990 = vrot.slane %v1986, 2
        %v1991 = vrot.slane %v1987, 2
        %v1992 = vsel %vm406, %v1990, %v1991
        %1993 = vrot.lane.b32.xlu0 %v1992, 127
        %v1994 = vpop.permute.xlu0 %1993
        %1995 = vrot.lane.b32.xlu0 %v1991, 127
        %v1996 = vpop.permute.xlu0 %1995
        %v1999 = vadd.f32 %v1982, %v1994
        %v2000 = vadd.f32 %v1983, %v1996
        %s2001 = sld [smem:[#allocation2 + $0x604]]
        %v2002 = vstv %s2001
        %v2003 = vmul.f32 %v2002, %v254
        %v2004 = vmul.f32 %v2002, %v255
        %v2007 = vrot.slane %v2003, 2
        %v2008 = vrot.slane %v2004, 2
        %v2009 = vsel %vm406, %v2007, %v2008
        %2010 = vrot.lane.b32.xlu0 %v2009, 126
        %v2011 = vpop.permute.xlu0 %2010
        %2012 = vrot.lane.b32.xlu0 %v2008, 126
        %v2013 = vpop.permute.xlu0 %2012
        %v2016 = vadd.f32 %v1999, %v2011
        %v2017 = vadd.f32 %v2000, %v2013
        %s2018 = sld [smem:[#allocation2 + $0x684]]
        %v2019 = vstv %s2018
        %v2020 = vmul.f32 %v2019, %v254
        %v2021 = vmul.f32 %v2019, %v255
        %v2024 = vrot.slane %v2020, 2
        %v2025 = vrot.slane %v2021, 2
        %v2026 = vsel %vm406, %v2024, %v2025
        %2027 = vrot.lane.b32.xlu0 %v2026, 125
        %v2028 = vpop.permute.xlu0 %2027
        %2029 = vrot.lane.b32.xlu0 %v2025, 125
        %v2030 = vpop.permute.xlu0 %2029
        %v2033 = vadd.f32 %v2016, %v2028
        %v2034 = vadd.f32 %v2017, %v2030
        %s2035 = sld [smem:[#allocation2 + $0x704]]
        %v2036 = vstv %s2035
        %v2037 = vmul.f32 %v2036, %v254
        %v2038 = vmul.f32 %v2036, %v255
        %v2041 = vrot.slane %v2037, 2
        %v2042 = vrot.slane %v2038, 2
        %v2043 = vsel %vm406, %v2041, %v2042
        %2044 = vrot.lane.b32.xlu0 %v2043, 124
        %v2045 = vpop.permute.xlu0 %2044
        %2046 = vrot.lane.b32.xlu0 %v2042, 124
        %v2047 = vpop.permute.xlu0 %2046
        %v2050 = vadd.f32 %v2033, %v2045
        %v2051 = vadd.f32 %v2034, %v2047
        %s2052 = sld [smem:[#allocation2 + $0x784]]
        %v2053 = vstv %s2052
        %v2054 = vmul.f32 %v2053, %v254
        %v2055 = vmul.f32 %v2053, %v255
        %v2058 = vrot.slane %v2054, 3
        %v2059 = vrot.slane %v2055, 3
        %v2060 = vsel %vm488, %v2058, %v2059
        %v2063 = vadd.f32 %v2050, %v2060
        %v2064 = vadd.f32 %v2051, %v2059
        %s2065 = sld [smem:[#allocation2 + $0x804]]
        %v2066 = vstv %s2065
        %v2067 = vmul.f32 %v2066, %v254
        %v2068 = vmul.f32 %v2066, %v255
        %v2071 = vrot.slane %v2067, 3
        %v2072 = vrot.slane %v2068, 3
        %v2073 = vsel %vm488, %v2071, %v2072
        %2074 = vrot.lane.b32.xlu0 %v2073, 127
        %v2075 = vpop.permute.xlu0 %2074
        %2076 = vrot.lane.b32.xlu0 %v2072, 127
        %v2077 = vpop.permute.xlu0 %2076
        %v2080 = vadd.f32 %v2063, %v2075
        %v2081 = vadd.f32 %v2064, %v2077
        %s2082 = sld [smem:[#allocation2 + $0x884]]
        %v2083 = vstv %s2082
        %v2084 = vmul.f32 %v2083, %v254
        %v2085 = vmul.f32 %v2083, %v255
        %v2088 = vrot.slane %v2084, 3
        %v2089 = vrot.slane %v2085, 3
        %v2090 = vsel %vm488, %v2088, %v2089
        %2091 = vrot.lane.b32.xlu0 %v2090, 126
        %v2092 = vpop.permute.xlu0 %2091
        %2093 = vrot.lane.b32.xlu0 %v2089, 126
        %v2094 = vpop.permute.xlu0 %2093
        %v2097 = vadd.f32 %v2080, %v2092
        %v2098 = vadd.f32 %v2081, %v2094
        %s2099 = sld [smem:[#allocation2 + $0x904]]
        %v2100 = vstv %s2099
        %v2101 = vmul.f32 %v2100, %v254
        %v2102 = vmul.f32 %v2100, %v255
        %v2105 = vrot.slane %v2101, 3
        %v2106 = vrot.slane %v2102, 3
        %v2107 = vsel %vm488, %v2105, %v2106
        %2108 = vrot.lane.b32.xlu0 %v2107, 125
        %v2109 = vpop.permute.xlu0 %2108
        %2110 = vrot.lane.b32.xlu0 %v2106, 125
        %v2111 = vpop.permute.xlu0 %2110
        %v2114 = vadd.f32 %v2097, %v2109
        %v2115 = vadd.f32 %v2098, %v2111
        %s2116 = sld [smem:[#allocation2 + $0x984]]
        %v2117 = vstv %s2116
        %v2118 = vmul.f32 %v2117, %v254
        %v2119 = vmul.f32 %v2117, %v255
        %v2122 = vrot.slane %v2118, 3
        %v2123 = vrot.slane %v2119, 3
        %v2124 = vsel %vm488, %v2122, %v2123
        %2125 = vrot.lane.b32.xlu0 %v2124, 124
        %v2126 = vpop.permute.xlu0 %2125
        %2127 = vrot.lane.b32.xlu0 %v2123, 124
        %v2128 = vpop.permute.xlu0 %2127
        %v2131 = vadd.f32 %v2114, %v2126
        %v2132 = vadd.f32 %v2115, %v2128
        %s2133 = sld [smem:[#allocation2 + $0xa04]]
        %v2134 = vstv %s2133
        %v2135 = vmul.f32 %v2134, %v254
        %v2136 = vmul.f32 %v2134, %v255
        %v2139 = vrot.slane %v2135, 4
        %v2140 = vrot.slane %v2136, 4
        %v2141 = vsel %vm570, %v2139, %v2140
        %v2144 = vadd.f32 %v2131, %v2141
        %v2145 = vadd.f32 %v2132, %v2140
        %s2146 = sld [smem:[#allocation2 + $0xa84]]
        %v2147 = vstv %s2146
        %v2148 = vmul.f32 %v2147, %v254
        %v2149 = vmul.f32 %v2147, %v255
        %v2152 = vrot.slane %v2148, 4
        %v2153 = vrot.slane %v2149, 4
        %v2154 = vsel %vm570, %v2152, %v2153
        %2155 = vrot.lane.b32.xlu0 %v2154, 127
        %v2156 = vpop.permute.xlu0 %2155
        %2157 = vrot.lane.b32.xlu0 %v2153, 127
        %v2158 = vpop.permute.xlu0 %2157
        %v2161 = vadd.f32 %v2144, %v2156
        %v2162 = vadd.f32 %v2145, %v2158
        %s2163 = sld [smem:[#allocation2 + $0xb04]]
        %v2164 = vstv %s2163
        %v2165 = vmul.f32 %v2164, %v254
        %v2166 = vmul.f32 %v2164, %v255
        %v2169 = vrot.slane %v2165, 4
        %v2170 = vrot.slane %v2166, 4
        %v2171 = vsel %vm570, %v2169, %v2170
        %2172 = vrot.lane.b32.xlu0 %v2171, 126
        %v2173 = vpop.permute.xlu0 %2172
        %2174 = vrot.lane.b32.xlu0 %v2170, 126
        %v2175 = vpop.permute.xlu0 %2174
        %v2178 = vadd.f32 %v2161, %v2173
        %v2179 = vadd.f32 %v2162, %v2175
        %s2180 = sld [smem:[#allocation2 + $0xb84]]
        %v2181 = vstv %s2180
        %v2182 = vmul.f32 %v2181, %v254
        %v2183 = vmul.f32 %v2181, %v255
        %v2186 = vrot.slane %v2182, 4
        %v2187 = vrot.slane %v2183, 4
        %v2188 = vsel %vm570, %v2186, %v2187
        %2189 = vrot.lane.b32.xlu0 %v2188, 125
        %v2190 = vpop.permute.xlu0 %2189
        %2191 = vrot.lane.b32.xlu0 %v2187, 125
        %v2192 = vpop.permute.xlu0 %2191
        %v2195 = vadd.f32 %v2178, %v2190
        %v2196 = vadd.f32 %v2179, %v2192
        %s2197 = sld [smem:[#allocation2 + $0xc04]]
        %v2198 = vstv %s2197
        %v2199 = vmul.f32 %v2198, %v254
        %v2200 = vmul.f32 %v2198, %v255
        %v2203 = vrot.slane %v2199, 4
        %v2204 = vrot.slane %v2200, 4
        %v2205 = vsel %vm570, %v2203, %v2204
        %2206 = vrot.lane.b32.xlu0 %v2205, 124
        %v2207 = vpop.permute.xlu0 %2206
        %2208 = vrot.lane.b32.xlu0 %v2204, 124
        %v2209 = vpop.permute.xlu0 %2208
        %v2212 = vadd.f32 %v2195, %v2207
        %v2213 = vadd.f32 %v2196, %v2209
        %s2214 = sld [smem:[#allocation4 + $0x4]]
        %v2215 = vstv %s2214
        %v2216 = vadd.f32 %v2212, %v2215
        %v2217 = vadd.f32 %v2213, %v2215
        %v2218 = vmax.f32 %v2216, 0.0
        %v2219 = vmax.f32 %v2217, 0.0
        %s2220 = sld [smem:[#allocation2 + $0x5]]
        %v2221 = vstv %s2220
        %v2222 = vmul.f32 %v2221, %v254
        %v2223 = vmul.f32 %v2221, %v255
        %v2224 = vadd.f32 %v2222, 0.0
        %v2225 = vadd.f32 %v2223, 0.0
        %s2226 = sld [smem:[#allocation2 + $0x85]]
        %v2227 = vstv %s2226
        %v2228 = vmul.f32 %v2227, %v254
        %v2229 = vmul.f32 %v2227, %v255
        %2232 = vrot.lane.b32.xlu0 %v2228, 127
        %v2233 = vpop.permute.xlu0 %2232
        %2234 = vrot.lane.b32.xlu0 %v2229, 127
        %v2235 = vpop.permute.xlu0 %2234
        %v2238 = vadd.f32 %v2224, %v2233
        %v2239 = vadd.f32 %v2225, %v2235
        %s2240 = sld [smem:[#allocation2 + $0x105]]
        %v2241 = vstv %s2240
        %v2242 = vmul.f32 %v2241, %v254
        %v2243 = vmul.f32 %v2241, %v255
        %2246 = vrot.lane.b32.xlu0 %v2242, 126
        %v2247 = vpop.permute.xlu0 %2246
        %2248 = vrot.lane.b32.xlu0 %v2243, 126
        %v2249 = vpop.permute.xlu0 %2248
        %v2252 = vadd.f32 %v2238, %v2247
        %v2253 = vadd.f32 %v2239, %v2249
        %s2254 = sld [smem:[#allocation2 + $0x185]]
        %v2255 = vstv %s2254
        %v2256 = vmul.f32 %v2255, %v254
        %v2257 = vmul.f32 %v2255, %v255
        %2260 = vrot.lane.b32.xlu0 %v2256, 125
        %v2261 = vpop.permute.xlu0 %2260
        %2262 = vrot.lane.b32.xlu0 %v2257, 125
        %v2263 = vpop.permute.xlu0 %2262
        %v2266 = vadd.f32 %v2252, %v2261
        %v2267 = vadd.f32 %v2253, %v2263
        %s2268 = sld [smem:[#allocation2 + $0x205]]
        %v2269 = vstv %s2268
        %v2270 = vmul.f32 %v2269, %v254
        %v2271 = vmul.f32 %v2269, %v255
        %2274 = vrot.lane.b32.xlu0 %v2270, 124
        %v2275 = vpop.permute.xlu0 %2274
        %2276 = vrot.lane.b32.xlu0 %v2271, 124
        %v2277 = vpop.permute.xlu0 %2276
        %v2280 = vadd.f32 %v2266, %v2275
        %v2281 = vadd.f32 %v2267, %v2277
        %s2282 = sld [smem:[#allocation2 + $0x285]]
        %v2283 = vstv %s2282
        %v2284 = vmul.f32 %v2283, %v254
        %v2285 = vmul.f32 %v2283, %v255
        %v2288 = vrot.slane %v2284, 1
        %v2289 = vrot.slane %v2285, 1
        %v2290 = vsel %vm324, %v2288, %v2289
        %v2293 = vadd.f32 %v2280, %v2290
        %v2294 = vadd.f32 %v2281, %v2289
        %s2295 = sld [smem:[#allocation2 + $0x305]]
        %v2296 = vstv %s2295
        %v2297 = vmul.f32 %v2296, %v254
        %v2298 = vmul.f32 %v2296, %v255
        %v2301 = vrot.slane %v2297, 1
        %v2302 = vrot.slane %v2298, 1
        %v2303 = vsel %vm324, %v2301, %v2302
        %2304 = vrot.lane.b32.xlu0 %v2303, 127
        %v2305 = vpop.permute.xlu0 %2304
        %2306 = vrot.lane.b32.xlu0 %v2302, 127
        %v2307 = vpop.permute.xlu0 %2306
        %v2310 = vadd.f32 %v2293, %v2305
        %v2311 = vadd.f32 %v2294, %v2307
        %s2312 = sld [smem:[#allocation2 + $0x385]]
        %v2313 = vstv %s2312
        %v2314 = vmul.f32 %v2313, %v254
        %v2315 = vmul.f32 %v2313, %v255
        %v2318 = vrot.slane %v2314, 1
        %v2319 = vrot.slane %v2315, 1
        %v2320 = vsel %vm324, %v2318, %v2319
        %2321 = vrot.lane.b32.xlu0 %v2320, 126
        %v2322 = vpop.permute.xlu0 %2321
        %2323 = vrot.lane.b32.xlu0 %v2319, 126
        %v2324 = vpop.permute.xlu0 %2323
        %v2327 = vadd.f32 %v2310, %v2322
        %v2328 = vadd.f32 %v2311, %v2324
        %s2329 = sld [smem:[#allocation2 + $0x405]]
        %v2330 = vstv %s2329
        %v2331 = vmul.f32 %v2330, %v254
        %v2332 = vmul.f32 %v2330, %v255
        %v2335 = vrot.slane %v2331, 1
        %v2336 = vrot.slane %v2332, 1
        %v2337 = vsel %vm324, %v2335, %v2336
        %2338 = vrot.lane.b32.xlu0 %v2337, 125
        %v2339 = vpop.permute.xlu0 %2338
        %2340 = vrot.lane.b32.xlu0 %v2336, 125
        %v2341 = vpop.permute.xlu0 %2340
        %v2344 = vadd.f32 %v2327, %v2339
        %v2345 = vadd.f32 %v2328, %v2341
        %s2346 = sld [smem:[#allocation2 + $0x485]]
        %v2347 = vstv %s2346
        %v2348 = vmul.f32 %v2347, %v254
        %v2349 = vmul.f32 %v2347, %v255
        %v2352 = vrot.slane %v2348, 1
        %v2353 = vrot.slane %v2349, 1
        %v2354 = vsel %vm324, %v2352, %v2353
        %2355 = vrot.lane.b32.xlu0 %v2354, 124
        %v2356 = vpop.permute.xlu0 %2355
        %2357 = vrot.lane.b32.xlu0 %v2353, 124
        %v2358 = vpop.permute.xlu0 %2357
        %v2361 = vadd.f32 %v2344, %v2356
        %v2362 = vadd.f32 %v2345, %v2358
        %s2363 = sld [smem:[#allocation2 + $0x505]]
        %v2364 = vstv %s2363
        %v2365 = vmul.f32 %v2364, %v254
        %v2366 = vmul.f32 %v2364, %v255
        %v2369 = vrot.slane %v2365, 2
        %v2370 = vrot.slane %v2366, 2
        %v2371 = vsel %vm406, %v2369, %v2370
        %v2374 = vadd.f32 %v2361, %v2371
        %v2375 = vadd.f32 %v2362, %v2370
        %s2376 = sld [smem:[#allocation2 + $0x585]]
        %v2377 = vstv %s2376
        %v2378 = vmul.f32 %v2377, %v254
        %v2379 = vmul.f32 %v2377, %v255
        %v2382 = vrot.slane %v2378, 2
        %v2383 = vrot.slane %v2379, 2
        %v2384 = vsel %vm406, %v2382, %v2383
        %2385 = vrot.lane.b32.xlu0 %v2384, 127
        %v2386 = vpop.permute.xlu0 %2385
        %2387 = vrot.lane.b32.xlu0 %v2383, 127
        %v2388 = vpop.permute.xlu0 %2387
        %v2391 = vadd.f32 %v2374, %v2386
        %v2392 = vadd.f32 %v2375, %v2388
        %s2393 = sld [smem:[#allocation2 + $0x605]]
        %v2394 = vstv %s2393
        %v2395 = vmul.f32 %v2394, %v254
        %v2396 = vmul.f32 %v2394, %v255
        %v2399 = vrot.slane %v2395, 2
        %v2400 = vrot.slane %v2396, 2
        %v2401 = vsel %vm406, %v2399, %v2400
        %2402 = vrot.lane.b32.xlu0 %v2401, 126
        %v2403 = vpop.permute.xlu0 %2402
        %2404 = vrot.lane.b32.xlu0 %v2400, 126
        %v2405 = vpop.permute.xlu0 %2404
        %v2408 = vadd.f32 %v2391, %v2403
        %v2409 = vadd.f32 %v2392, %v2405
        %s2410 = sld [smem:[#allocation2 + $0x685]]
        %v2411 = vstv %s2410
        %v2412 = vmul.f32 %v2411, %v254
        %v2413 = vmul.f32 %v2411, %v255
        %v2416 = vrot.slane %v2412, 2
        %v2417 = vrot.slane %v2413, 2
        %v2418 = vsel %vm406, %v2416, %v2417
        %2419 = vrot.lane.b32.xlu0 %v2418, 125
        %v2420 = vpop.permute.xlu0 %2419
        %2421 = vrot.lane.b32.xlu0 %v2417, 125
        %v2422 = vpop.permute.xlu0 %2421
        %v2425 = vadd.f32 %v2408, %v2420
        %v2426 = vadd.f32 %v2409, %v2422
        %s2427 = sld [smem:[#allocation2 + $0x705]]
        %v2428 = vstv %s2427
        %v2429 = vmul.f32 %v2428, %v254
        %v2430 = vmul.f32 %v2428, %v255
        %v2433 = vrot.slane %v2429, 2
        %v2434 = vrot.slane %v2430, 2
        %v2435 = vsel %vm406, %v2433, %v2434
        %2436 = vrot.lane.b32.xlu0 %v2435, 124
        %v2437 = vpop.permute.xlu0 %2436
        %2438 = vrot.lane.b32.xlu0 %v2434, 124
        %v2439 = vpop.permute.xlu0 %2438
        %v2442 = vadd.f32 %v2425, %v2437
        %v2443 = vadd.f32 %v2426, %v2439
        %s2444 = sld [smem:[#allocation2 + $0x785]]
        %v2445 = vstv %s2444
        %v2446 = vmul.f32 %v2445, %v254
        %v2447 = vmul.f32 %v2445, %v255
        %v2450 = vrot.slane %v2446, 3
        %v2451 = vrot.slane %v2447, 3
        %v2452 = vsel %vm488, %v2450, %v2451
        %v2455 = vadd.f32 %v2442, %v2452
        %v2456 = vadd.f32 %v2443, %v2451
        %s2457 = sld [smem:[#allocation2 + $0x805]]
        %v2458 = vstv %s2457
        %v2459 = vmul.f32 %v2458, %v254
        %v2460 = vmul.f32 %v2458, %v255
        %v2463 = vrot.slane %v2459, 3
        %v2464 = vrot.slane %v2460, 3
        %v2465 = vsel %vm488, %v2463, %v2464
        %2466 = vrot.lane.b32.xlu0 %v2465, 127
        %v2467 = vpop.permute.xlu0 %2466
        %2468 = vrot.lane.b32.xlu0 %v2464, 127
        %v2469 = vpop.permute.xlu0 %2468
        %v2472 = vadd.f32 %v2455, %v2467
        %v2473 = vadd.f32 %v2456, %v2469
        %s2474 = sld [smem:[#allocation2 + $0x885]]
        %v2475 = vstv %s2474
        %v2476 = vmul.f32 %v2475, %v254
        %v2477 = vmul.f32 %v2475, %v255
        %v2480 = vrot.slane %v2476, 3
        %v2481 = vrot.slane %v2477, 3
        %v2482 = vsel %vm488, %v2480, %v2481
        %2483 = vrot.lane.b32.xlu0 %v2482, 126
        %v2484 = vpop.permute.xlu0 %2483
        %2485 = vrot.lane.b32.xlu0 %v2481, 126
        %v2486 = vpop.permute.xlu0 %2485
        %v2489 = vadd.f32 %v2472, %v2484
        %v2490 = vadd.f32 %v2473, %v2486
        %s2491 = sld [smem:[#allocation2 + $0x905]]
        %v2492 = vstv %s2491
        %v2493 = vmul.f32 %v2492, %v254
        %v2494 = vmul.f32 %v2492, %v255
        %v2497 = vrot.slane %v2493, 3
        %v2498 = vrot.slane %v2494, 3
        %v2499 = vsel %vm488, %v2497, %v2498
        %2500 = vrot.lane.b32.xlu0 %v2499, 125
        %v2501 = vpop.permute.xlu0 %2500
        %2502 = vrot.lane.b32.xlu0 %v2498, 125
        %v2503 = vpop.permute.xlu0 %2502
        %v2506 = vadd.f32 %v2489, %v2501
        %v2507 = vadd.f32 %v2490, %v2503
        %s2508 = sld [smem:[#allocation2 + $0x985]]
        %v2509 = vstv %s2508
        %v2510 = vmul.f32 %v2509, %v254
        %v2511 = vmul.f32 %v2509, %v255
        %v2514 = vrot.slane %v2510, 3
        %v2515 = vrot.slane %v2511, 3
        %v2516 = vsel %vm488, %v2514, %v2515
        %2517 = vrot.lane.b32.xlu0 %v2516, 124
        %v2518 = vpop.permute.xlu0 %2517
        %2519 = vrot.lane.b32.xlu0 %v2515, 124
        %v2520 = vpop.permute.xlu0 %2519
        %v2523 = vadd.f32 %v2506, %v2518
        %v2524 = vadd.f32 %v2507, %v2520
        %s2525 = sld [smem:[#allocation2 + $0xa05]]
        %v2526 = vstv %s2525
        %v2527 = vmul.f32 %v2526, %v254
        %v2528 = vmul.f32 %v2526, %v255
        %v2531 = vrot.slane %v2527, 4
        %v2532 = vrot.slane %v2528, 4
        %v2533 = vsel %vm570, %v2531, %v2532
        %v2536 = vadd.f32 %v2523, %v2533
        %v2537 = vadd.f32 %v2524, %v2532
        %s2538 = sld [smem:[#allocation2 + $0xa85]]
        %v2539 = vstv %s2538
        %v2540 = vmul.f32 %v2539, %v254
        %v2541 = vmul.f32 %v2539, %v255
        %v2544 = vrot.slane %v2540, 4
        %v2545 = vrot.slane %v2541, 4
        %v2546 = vsel %vm570, %v2544, %v2545
        %2547 = vrot.lane.b32.xlu0 %v2546, 127
        %v2548 = vpop.permute.xlu0 %2547
        %2549 = vrot.lane.b32.xlu0 %v2545, 127
        %v2550 = vpop.permute.xlu0 %2549
        %v2553 = vadd.f32 %v2536, %v2548
        %v2554 = vadd.f32 %v2537, %v2550
        %s2555 = sld [smem:[#allocation2 + $0xb05]]
        %v2556 = vstv %s2555
        %v2557 = vmul.f32 %v2556, %v254
        %v2558 = vmul.f32 %v2556, %v255
        %v2561 = vrot.slane %v2557, 4
        %v2562 = vrot.slane %v2558, 4
        %v2563 = vsel %vm570, %v2561, %v2562
        %2564 = vrot.lane.b32.xlu0 %v2563, 126
        %v2565 = vpop.permute.xlu0 %2564
        %2566 = vrot.lane.b32.xlu0 %v2562, 126
        %v2567 = vpop.permute.xlu0 %2566
        %v2570 = vadd.f32 %v2553, %v2565
        %v2571 = vadd.f32 %v2554, %v2567
        %s2572 = sld [smem:[#allocation2 + $0xb85]]
        %v2573 = vstv %s2572
        %v2574 = vmul.f32 %v2573, %v254
        %v2575 = vmul.f32 %v2573, %v255
        %v2578 = vrot.slane %v2574, 4
        %v2579 = vrot.slane %v2575, 4
        %v2580 = vsel %vm570, %v2578, %v2579
        %2581 = vrot.lane.b32.xlu0 %v2580, 125
        %v2582 = vpop.permute.xlu0 %2581
        %2583 = vrot.lane.b32.xlu0 %v2579, 125
        %v2584 = vpop.permute.xlu0 %2583
        %v2587 = vadd.f32 %v2570, %v2582
        %v2588 = vadd.f32 %v2571, %v2584
        %s2589 = sld [smem:[#allocation2 + $0xc05]]
        %v2590 = vstv %s2589
        %v2591 = vmul.f32 %v2590, %v254
        %v2592 = vmul.f32 %v2590, %v255
        %v2595 = vrot.slane %v2591, 4
        %v2596 = vrot.slane %v2592, 4
        %v2597 = vsel %vm570, %v2595, %v2596
        %2598 = vrot.lane.b32.xlu0 %v2597, 124
        %v2599 = vpop.permute.xlu0 %2598
        %2600 = vrot.lane.b32.xlu0 %v2596, 124
        %v2601 = vpop.permute.xlu0 %2600
        %v2604 = vadd.f32 %v2587, %v2599
        %v2605 = vadd.f32 %v2588, %v2601
        %s2606 = sld [smem:[#allocation4 + $0x5]]
        %v2607 = vstv %s2606
        %v2608 = vadd.f32 %v2604, %v2607
        %v2609 = vadd.f32 %v2605, %v2607
        %v2610 = vmax.f32 %v2608, 0.0
        %v2611 = vmax.f32 %v2609, 0.0
        %s2612 = sld [smem:[#allocation2 + $0x6]]
        %v2613 = vstv %s2612
        %v2614 = vmul.f32 %v2613, %v254
        %v2615 = vmul.f32 %v2613, %v255
        %v2616 = vadd.f32 %v2614, 0.0
        %v2617 = vadd.f32 %v2615, 0.0
        %s2618 = sld [smem:[#allocation2 + $0x86]]
        %v2619 = vstv %s2618
        %v2620 = vmul.f32 %v2619, %v254
        %v2621 = vmul.f32 %v2619, %v255
        %2624 = vrot.lane.b32.xlu0 %v2620, 127
        %v2625 = vpop.permute.xlu0 %2624
        %2626 = vrot.lane.b32.xlu0 %v2621, 127
        %v2627 = vpop.permute.xlu0 %2626
        %v2630 = vadd.f32 %v2616, %v2625
        %v2631 = vadd.f32 %v2617, %v2627
        %s2632 = sld [smem:[#allocation2 + $0x106]]
        %v2633 = vstv %s2632
        %v2634 = vmul.f32 %v2633, %v254
        %v2635 = vmul.f32 %v2633, %v255
        %2638 = vrot.lane.b32.xlu0 %v2634, 126
        %v2639 = vpop.permute.xlu0 %2638
        %2640 = vrot.lane.b32.xlu0 %v2635, 126
        %v2641 = vpop.permute.xlu0 %2640
        %v2644 = vadd.f32 %v2630, %v2639
        %v2645 = vadd.f32 %v2631, %v2641
        %s2646 = sld [smem:[#allocation2 + $0x186]]
        %v2647 = vstv %s2646
        %v2648 = vmul.f32 %v2647, %v254
        %v2649 = vmul.f32 %v2647, %v255
        %2652 = vrot.lane.b32.xlu0 %v2648, 125
        %v2653 = vpop.permute.xlu0 %2652
        %2654 = vrot.lane.b32.xlu0 %v2649, 125
        %v2655 = vpop.permute.xlu0 %2654
        %v2658 = vadd.f32 %v2644, %v2653
        %v2659 = vadd.f32 %v2645, %v2655
        %s2660 = sld [smem:[#allocation2 + $0x206]]
        %v2661 = vstv %s2660
        %v2662 = vmul.f32 %v2661, %v254
        %v2663 = vmul.f32 %v2661, %v255
        %2666 = vrot.lane.b32.xlu0 %v2662, 124
        %v2667 = vpop.permute.xlu0 %2666
        %2668 = vrot.lane.b32.xlu0 %v2663, 124
        %v2669 = vpop.permute.xlu0 %2668
        %v2672 = vadd.f32 %v2658, %v2667
        %v2673 = vadd.f32 %v2659, %v2669
        %s2674 = sld [smem:[#allocation2 + $0x286]]
        %v2675 = vstv %s2674
        %v2676 = vmul.f32 %v2675, %v254
        %v2677 = vmul.f32 %v2675, %v255
        %v2680 = vrot.slane %v2676, 1
        %v2681 = vrot.slane %v2677, 1
        %v2682 = vsel %vm324, %v2680, %v2681
        %v2685 = vadd.f32 %v2672, %v2682
        %v2686 = vadd.f32 %v2673, %v2681
        %s2687 = sld [smem:[#allocation2 + $0x306]]
        %v2688 = vstv %s2687
        %v2689 = vmul.f32 %v2688, %v254
        %v2690 = vmul.f32 %v2688, %v255
        %v2693 = vrot.slane %v2689, 1
        %v2694 = vrot.slane %v2690, 1
        %v2695 = vsel %vm324, %v2693, %v2694
        %2696 = vrot.lane.b32.xlu0 %v2695, 127
        %v2697 = vpop.permute.xlu0 %2696
        %2698 = vrot.lane.b32.xlu0 %v2694, 127
        %v2699 = vpop.permute.xlu0 %2698
        %v2702 = vadd.f32 %v2685, %v2697
        %v2703 = vadd.f32 %v2686, %v2699
        %s2704 = sld [smem:[#allocation2 + $0x386]]
        %v2705 = vstv %s2704
        %v2706 = vmul.f32 %v2705, %v254
        %v2707 = vmul.f32 %v2705, %v255
        %v2710 = vrot.slane %v2706, 1
        %v2711 = vrot.slane %v2707, 1
        %v2712 = vsel %vm324, %v2710, %v2711
        %2713 = vrot.lane.b32.xlu0 %v2712, 126
        %v2714 = vpop.permute.xlu0 %2713
        %2715 = vrot.lane.b32.xlu0 %v2711, 126
        %v2716 = vpop.permute.xlu0 %2715
        %v2719 = vadd.f32 %v2702, %v2714
        %v2720 = vadd.f32 %v2703, %v2716
        %s2721 = sld [smem:[#allocation2 + $0x406]]
        %v2722 = vstv %s2721
        %v2723 = vmul.f32 %v2722, %v254
        %v2724 = vmul.f32 %v2722, %v255
        %v2727 = vrot.slane %v2723, 1
        %v2728 = vrot.slane %v2724, 1
        %v2729 = vsel %vm324, %v2727, %v2728
        %2730 = vrot.lane.b32.xlu0 %v2729, 125
        %v2731 = vpop.permute.xlu0 %2730
        %2732 = vrot.lane.b32.xlu0 %v2728, 125
        %v2733 = vpop.permute.xlu0 %2732
        %v2736 = vadd.f32 %v2719, %v2731
        %v2737 = vadd.f32 %v2720, %v2733
        %s2738 = sld [smem:[#allocation2 + $0x486]]
        %v2739 = vstv %s2738
        %v2740 = vmul.f32 %v2739, %v254
        %v2741 = vmul.f32 %v2739, %v255
        %v2744 = vrot.slane %v2740, 1
        %v2745 = vrot.slane %v2741, 1
        %v2746 = vsel %vm324, %v2744, %v2745
        %2747 = vrot.lane.b32.xlu0 %v2746, 124
        %v2748 = vpop.permute.xlu0 %2747
        %2749 = vrot.lane.b32.xlu0 %v2745, 124
        %v2750 = vpop.permute.xlu0 %2749
        %v2753 = vadd.f32 %v2736, %v2748
        %v2754 = vadd.f32 %v2737, %v2750
        %s2755 = sld [smem:[#allocation2 + $0x506]]
        %v2756 = vstv %s2755
        %v2757 = vmul.f32 %v2756, %v254
        %v2758 = vmul.f32 %v2756, %v255
        %v2761 = vrot.slane %v2757, 2
        %v2762 = vrot.slane %v2758, 2
        %v2763 = vsel %vm406, %v2761, %v2762
        %v2766 = vadd.f32 %v2753, %v2763
        %v2767 = vadd.f32 %v2754, %v2762
        %s2768 = sld [smem:[#allocation2 + $0x586]]
        %v2769 = vstv %s2768
        %v2770 = vmul.f32 %v2769, %v254
        %v2771 = vmul.f32 %v2769, %v255
        %v2774 = vrot.slane %v2770, 2
        %v2775 = vrot.slane %v2771, 2
        %v2776 = vsel %vm406, %v2774, %v2775
        %2777 = vrot.lane.b32.xlu0 %v2776, 127
        %v2778 = vpop.permute.xlu0 %2777
        %2779 = vrot.lane.b32.xlu0 %v2775, 127
        %v2780 = vpop.permute.xlu0 %2779
        %v2783 = vadd.f32 %v2766, %v2778
        %v2784 = vadd.f32 %v2767, %v2780
        %s2785 = sld [smem:[#allocation2 + $0x606]]
        %v2786 = vstv %s2785
        %v2787 = vmul.f32 %v2786, %v254
        %v2788 = vmul.f32 %v2786, %v255
        %v2791 = vrot.slane %v2787, 2
        %v2792 = vrot.slane %v2788, 2
        %v2793 = vsel %vm406, %v2791, %v2792
        %2794 = vrot.lane.b32.xlu0 %v2793, 126
        %v2795 = vpop.permute.xlu0 %2794
        %2796 = vrot.lane.b32.xlu0 %v2792, 126
        %v2797 = vpop.permute.xlu0 %2796
        %v2800 = vadd.f32 %v2783, %v2795
        %v2801 = vadd.f32 %v2784, %v2797
        %s2802 = sld [smem:[#allocation2 + $0x686]]
        %v2803 = vstv %s2802
        %v2804 = vmul.f32 %v2803, %v254
        %v2805 = vmul.f32 %v2803, %v255
        %v2808 = vrot.slane %v2804, 2
        %v2809 = vrot.slane %v2805, 2
        %v2810 = vsel %vm406, %v2808, %v2809
        %2811 = vrot.lane.b32.xlu0 %v2810, 125
        %v2812 = vpop.permute.xlu0 %2811
        %2813 = vrot.lane.b32.xlu0 %v2809, 125
        %v2814 = vpop.permute.xlu0 %2813
        %v2817 = vadd.f32 %v2800, %v2812
        %v2818 = vadd.f32 %v2801, %v2814
        %s2819 = sld [smem:[#allocation2 + $0x706]]
        %v2820 = vstv %s2819
        %v2821 = vmul.f32 %v2820, %v254
        %v2822 = vmul.f32 %v2820, %v255
        %v2825 = vrot.slane %v2821, 2
        %v2826 = vrot.slane %v2822, 2
        %v2827 = vsel %vm406, %v2825, %v2826
        %2828 = vrot.lane.b32.xlu0 %v2827, 124
        %v2829 = vpop.permute.xlu0 %2828
        %2830 = vrot.lane.b32.xlu0 %v2826, 124
        %v2831 = vpop.permute.xlu0 %2830
        %v2834 = vadd.f32 %v2817, %v2829
        %v2835 = vadd.f32 %v2818, %v2831
        %s2836 = sld [smem:[#allocation2 + $0x786]]
        %v2837 = vstv %s2836
        %v2838 = vmul.f32 %v2837, %v254
        %v2839 = vmul.f32 %v2837, %v255
        %v2842 = vrot.slane %v2838, 3
        %v2843 = vrot.slane %v2839, 3
        %v2844 = vsel %vm488, %v2842, %v2843
        %v2847 = vadd.f32 %v2834, %v2844
        %v2848 = vadd.f32 %v2835, %v2843
        %s2849 = sld [smem:[#allocation2 + $0x806]]
        %v2850 = vstv %s2849
        %v2851 = vmul.f32 %v2850, %v254
        %v2852 = vmul.f32 %v2850, %v255
        %v2855 = vrot.slane %v2851, 3
        %v2856 = vrot.slane %v2852, 3
        %v2857 = vsel %vm488, %v2855, %v2856
        %2858 = vrot.lane.b32.xlu0 %v2857, 127
        %v2859 = vpop.permute.xlu0 %2858
        %2860 = vrot.lane.b32.xlu0 %v2856, 127
        %v2861 = vpop.permute.xlu0 %2860
        %v2864 = vadd.f32 %v2847, %v2859
        %v2865 = vadd.f32 %v2848, %v2861
        %s2866 = sld [smem:[#allocation2 + $0x886]]
        %v2867 = vstv %s2866
        %v2868 = vmul.f32 %v2867, %v254
        %v2869 = vmul.f32 %v2867, %v255
        %v2872 = vrot.slane %v2868, 3
        %v2873 = vrot.slane %v2869, 3
        %v2874 = vsel %vm488, %v2872, %v2873
        %2875 = vrot.lane.b32.xlu0 %v2874, 126
        %v2876 = vpop.permute.xlu0 %2875
        %2877 = vrot.lane.b32.xlu0 %v2873, 126
        %v2878 = vpop.permute.xlu0 %2877
        %v2881 = vadd.f32 %v2864, %v2876
        %v2882 = vadd.f32 %v2865, %v2878
        %s2883 = sld [smem:[#allocation2 + $0x906]]
        %v2884 = vstv %s2883
        %v2885 = vmul.f32 %v2884, %v254
        %v2886 = vmul.f32 %v2884, %v255
        %v2889 = vrot.slane %v2885, 3
        %v2890 = vrot.slane %v2886, 3
        %v2891 = vsel %vm488, %v2889, %v2890
        %2892 = vrot.lane.b32.xlu0 %v2891, 125
        %v2893 = vpop.permute.xlu0 %2892
        %2894 = vrot.lane.b32.xlu0 %v2890, 125
        %v2895 = vpop.permute.xlu0 %2894
        %v2898 = vadd.f32 %v2881, %v2893
        %v2899 = vadd.f32 %v2882, %v2895
        %s2900 = sld [smem:[#allocation2 + $0x986]]
        %v2901 = vstv %s2900
        %v2902 = vmul.f32 %v2901, %v254
        %v2903 = vmul.f32 %v2901, %v255
        %v2906 = vrot.slane %v2902, 3
        %v2907 = vrot.slane %v2903, 3
        %v2908 = vsel %vm488, %v2906, %v2907
        %2909 = vrot.lane.b32.xlu0 %v2908, 124
        %v2910 = vpop.permute.xlu0 %2909
        %2911 = vrot.lane.b32.xlu0 %v2907, 124
        %v2912 = vpop.permute.xlu0 %2911
        %v2915 = vadd.f32 %v2898, %v2910
        %v2916 = vadd.f32 %v2899, %v2912
        %s2917 = sld [smem:[#allocation2 + $0xa06]]
        %v2918 = vstv %s2917
        %v2919 = vmul.f32 %v2918, %v254
        %v2920 = vmul.f32 %v2918, %v255
        %v2923 = vrot.slane %v2919, 4
        %v2924 = vrot.slane %v2920, 4
        %v2925 = vsel %vm570, %v2923, %v2924
        %v2928 = vadd.f32 %v2915, %v2925
        %v2929 = vadd.f32 %v2916, %v2924
        %s2930 = sld [smem:[#allocation2 + $0xa86]]
        %v2931 = vstv %s2930
        %v2932 = vmul.f32 %v2931, %v254
        %v2933 = vmul.f32 %v2931, %v255
        %v2936 = vrot.slane %v2932, 4
        %v2937 = vrot.slane %v2933, 4
        %v2938 = vsel %vm570, %v2936, %v2937
        %2939 = vrot.lane.b32.xlu0 %v2938, 127
        %v2940 = vpop.permute.xlu0 %2939
        %2941 = vrot.lane.b32.xlu0 %v2937, 127
        %v2942 = vpop.permute.xlu0 %2941
        %v2945 = vadd.f32 %v2928, %v2940
        %v2946 = vadd.f32 %v2929, %v2942
        %s2947 = sld [smem:[#allocation2 + $0xb06]]
        %v2948 = vstv %s2947
        %v2949 = vmul.f32 %v2948, %v254
        %v2950 = vmul.f32 %v2948, %v255
        %v2953 = vrot.slane %v2949, 4
        %v2954 = vrot.slane %v2950, 4
        %v2955 = vsel %vm570, %v2953, %v2954
        %2956 = vrot.lane.b32.xlu0 %v2955, 126
        %v2957 = vpop.permute.xlu0 %2956
        %2958 = vrot.lane.b32.xlu0 %v2954, 126
        %v2959 = vpop.permute.xlu0 %2958
        %v2962 = vadd.f32 %v2945, %v2957
        %v2963 = vadd.f32 %v2946, %v2959
        %s2964 = sld [smem:[#allocation2 + $0xb86]]
        %v2965 = vstv %s2964
        %v2966 = vmul.f32 %v2965, %v254
        %v2967 = vmul.f32 %v2965, %v255
        %v2970 = vrot.slane %v2966, 4
        %v2971 = vrot.slane %v2967, 4
        %v2972 = vsel %vm570, %v2970, %v2971
        %2973 = vrot.lane.b32.xlu0 %v2972, 125
        %v2974 = vpop.permute.xlu0 %2973
        %2975 = vrot.lane.b32.xlu0 %v2971, 125
        %v2976 = vpop.permute.xlu0 %2975
        %v2979 = vadd.f32 %v2962, %v2974
        %v2980 = vadd.f32 %v2963, %v2976
        %s2981 = sld [smem:[#allocation2 + $0xc06]]
        %v2982 = vstv %s2981
        %v2983 = vmul.f32 %v2982, %v254
        %v2984 = vmul.f32 %v2982, %v255
        %v2987 = vrot.slane %v2983, 4
        %v2988 = vrot.slane %v2984, 4
        %v2989 = vsel %vm570, %v2987, %v2988
        %2990 = vrot.lane.b32.xlu0 %v2989, 124
        %v2991 = vpop.permute.xlu0 %2990
        %2992 = vrot.lane.b32.xlu0 %v2988, 124
        %v2993 = vpop.permute.xlu0 %2992
        %v2996 = vadd.f32 %v2979, %v2991
        %v2997 = vadd.f32 %v2980, %v2993
        %s2998 = sld [smem:[#allocation4 + $0x6]]
        %v2999 = vstv %s2998
        %v3000 = vadd.f32 %v2996, %v2999
        %v3001 = vadd.f32 %v2997, %v2999
        %v3002 = vmax.f32 %v3000, 0.0
        %v3003 = vmax.f32 %v3001, 0.0
        %s3004 = sld [smem:[#allocation2 + $0x7]]
        %v3005 = vstv %s3004
        %v3006 = vmul.f32 %v3005, %v254
        %v3007 = vmul.f32 %v3005, %v255
        %v3008 = vadd.f32 %v3006, 0.0
        %v3009 = vadd.f32 %v3007, 0.0
        %s3010 = sld [smem:[#allocation2 + $0x87]]
        %v3011 = vstv %s3010
        %v3012 = vmul.f32 %v3011, %v254
        %v3013 = vmul.f32 %v3011, %v255
        %3016 = vrot.lane.b32.xlu0 %v3012, 127
        %v3017 = vpop.permute.xlu0 %3016
        %3018 = vrot.lane.b32.xlu0 %v3013, 127
        %v3019 = vpop.permute.xlu0 %3018
        %v3022 = vadd.f32 %v3008, %v3017
        %v3023 = vadd.f32 %v3009, %v3019
        %s3024 = sld [smem:[#allocation2 + $0x107]]
        %v3025 = vstv %s3024
        %v3026 = vmul.f32 %v3025, %v254
        %v3027 = vmul.f32 %v3025, %v255
        %3030 = vrot.lane.b32.xlu0 %v3026, 126
        %v3031 = vpop.permute.xlu0 %3030
        %3032 = vrot.lane.b32.xlu0 %v3027, 126
        %v3033 = vpop.permute.xlu0 %3032
        %v3036 = vadd.f32 %v3022, %v3031
        %v3037 = vadd.f32 %v3023, %v3033
        %s3038 = sld [smem:[#allocation2 + $0x187]]
        %v3039 = vstv %s3038
        %v3040 = vmul.f32 %v3039, %v254
        %v3041 = vmul.f32 %v3039, %v255
        %3044 = vrot.lane.b32.xlu0 %v3040, 125
        %v3045 = vpop.permute.xlu0 %3044
        %3046 = vrot.lane.b32.xlu0 %v3041, 125
        %v3047 = vpop.permute.xlu0 %3046
        %v3050 = vadd.f32 %v3036, %v3045
        %v3051 = vadd.f32 %v3037, %v3047
        %s3052 = sld [smem:[#allocation2 + $0x207]]
        %v3053 = vstv %s3052
        %v3054 = vmul.f32 %v3053, %v254
        %v3055 = vmul.f32 %v3053, %v255
        %3058 = vrot.lane.b32.xlu0 %v3054, 124
        %v3059 = vpop.permute.xlu0 %3058
        %3060 = vrot.lane.b32.xlu0 %v3055, 124
        %v3061 = vpop.permute.xlu0 %3060
        %v3064 = vadd.f32 %v3050, %v3059
        %v3065 = vadd.f32 %v3051, %v3061
        %s3066 = sld [smem:[#allocation2 + $0x287]]
        %v3067 = vstv %s3066
        %v3068 = vmul.f32 %v3067, %v254
        %v3069 = vmul.f32 %v3067, %v255
        %v3072 = vrot.slane %v3068, 1
        %v3073 = vrot.slane %v3069, 1
        %v3074 = vsel %vm324, %v3072, %v3073
        %v3077 = vadd.f32 %v3064, %v3074
        %v3078 = vadd.f32 %v3065, %v3073
        %s3079 = sld [smem:[#allocation2 + $0x307]]
        %v3080 = vstv %s3079
        %v3081 = vmul.f32 %v3080, %v254
        %v3082 = vmul.f32 %v3080, %v255
        %v3085 = vrot.slane %v3081, 1
        %v3086 = vrot.slane %v3082, 1
        %v3087 = vsel %vm324, %v3085, %v3086
        %3088 = vrot.lane.b32.xlu0 %v3087, 127
        %v3089 = vpop.permute.xlu0 %3088
        %3090 = vrot.lane.b32.xlu0 %v3086, 127
        %v3091 = vpop.permute.xlu0 %3090
        %v3094 = vadd.f32 %v3077, %v3089
        %v3095 = vadd.f32 %v3078, %v3091
        %s3096 = sld [smem:[#allocation2 + $0x387]]
        %v3097 = vstv %s3096
        %v3098 = vmul.f32 %v3097, %v254
        %v3099 = vmul.f32 %v3097, %v255
        %v3102 = vrot.slane %v3098, 1
        %v3103 = vrot.slane %v3099, 1
        %v3104 = vsel %vm324, %v3102, %v3103
        %3105 = vrot.lane.b32.xlu0 %v3104, 126
        %v3106 = vpop.permute.xlu0 %3105
        %3107 = vrot.lane.b32.xlu0 %v3103, 126
        %v3108 = vpop.permute.xlu0 %3107
        %v3111 = vadd.f32 %v3094, %v3106
        %v3112 = vadd.f32 %v3095, %v3108
        %s3113 = sld [smem:[#allocation2 + $0x407]]
        %v3114 = vstv %s3113
        %v3115 = vmul.f32 %v3114, %v254
        %v3116 = vmul.f32 %v3114, %v255
        %v3119 = vrot.slane %v3115, 1
        %v3120 = vrot.slane %v3116, 1
        %v3121 = vsel %vm324, %v3119, %v3120
        %3122 = vrot.lane.b32.xlu0 %v3121, 125
        %v3123 = vpop.permute.xlu0 %3122
        %3124 = vrot.lane.b32.xlu0 %v3120, 125
        %v3125 = vpop.permute.xlu0 %3124
        %v3128 = vadd.f32 %v3111, %v3123
        %v3129 = vadd.f32 %v3112, %v3125
        %s3130 = sld [smem:[#allocation2 + $0x487]]
        %v3131 = vstv %s3130
        %v3132 = vmul.f32 %v3131, %v254
        %v3133 = vmul.f32 %v3131, %v255
        %v3136 = vrot.slane %v3132, 1
        %v3137 = vrot.slane %v3133, 1
        %v3138 = vsel %vm324, %v3136, %v3137
        %3139 = vrot.lane.b32.xlu0 %v3138, 124
        %v3140 = vpop.permute.xlu0 %3139
        %3141 = vrot.lane.b32.xlu0 %v3137, 124
        %v3142 = vpop.permute.xlu0 %3141
        %v3145 = vadd.f32 %v3128, %v3140
        %v3146 = vadd.f32 %v3129, %v3142
        %s3147 = sld [smem:[#allocation2 + $0x507]]
        %v3148 = vstv %s3147
        %v3149 = vmul.f32 %v3148, %v254
        %v3150 = vmul.f32 %v3148, %v255
        %v3153 = vrot.slane %v3149, 2
        %v3154 = vrot.slane %v3150, 2
        %v3155 = vsel %vm406, %v3153, %v3154
        %v3158 = vadd.f32 %v3145, %v3155
        %v3159 = vadd.f32 %v3146, %v3154
        %s3160 = sld [smem:[#allocation2 + $0x587]]
        %v3161 = vstv %s3160
        %v3162 = vmul.f32 %v3161, %v254
        %v3163 = vmul.f32 %v3161, %v255
        %v3166 = vrot.slane %v3162, 2
        %v3167 = vrot.slane %v3163, 2
        %v3168 = vsel %vm406, %v3166, %v3167
        %3169 = vrot.lane.b32.xlu0 %v3168, 127
        %v3170 = vpop.permute.xlu0 %3169
        %3171 = vrot.lane.b32.xlu0 %v3167, 127
        %v3172 = vpop.permute.xlu0 %3171
        %v3175 = vadd.f32 %v3158, %v3170
        %v3176 = vadd.f32 %v3159, %v3172
        %s3177 = sld [smem:[#allocation2 + $0x607]]
        %v3178 = vstv %s3177
        %v3179 = vmul.f32 %v3178, %v254
        %v3180 = vmul.f32 %v3178, %v255
        %v3183 = vrot.slane %v3179, 2
        %v3184 = vrot.slane %v3180, 2
        %v3185 = vsel %vm406, %v3183, %v3184
        %3186 = vrot.lane.b32.xlu0 %v3185, 126
        %v3187 = vpop.permute.xlu0 %3186
        %3188 = vrot.lane.b32.xlu0 %v3184, 126
        %v3189 = vpop.permute.xlu0 %3188
        %v3192 = vadd.f32 %v3175, %v3187
        %v3193 = vadd.f32 %v3176, %v3189
        %s3194 = sld [smem:[#allocation2 + $0x687]]
        %v3195 = vstv %s3194
        %v3196 = vmul.f32 %v3195, %v254
        %v3197 = vmul.f32 %v3195, %v255
        %v3200 = vrot.slane %v3196, 2
        %v3201 = vrot.slane %v3197, 2
        %v3202 = vsel %vm406, %v3200, %v3201
        %3203 = vrot.lane.b32.xlu0 %v3202, 125
        %v3204 = vpop.permute.xlu0 %3203
        %3205 = vrot.lane.b32.xlu0 %v3201, 125
        %v3206 = vpop.permute.xlu0 %3205
        %v3209 = vadd.f32 %v3192, %v3204
        %v3210 = vadd.f32 %v3193, %v3206
        %s3211 = sld [smem:[#allocation2 + $0x707]]
        %v3212 = vstv %s3211
        %v3213 = vmul.f32 %v3212, %v254
        %v3214 = vmul.f32 %v3212, %v255
        %v3217 = vrot.slane %v3213, 2
        %v3218 = vrot.slane %v3214, 2
        %v3219 = vsel %vm406, %v3217, %v3218
        %3220 = vrot.lane.b32.xlu0 %v3219, 124
        %v3221 = vpop.permute.xlu0 %3220
        %3222 = vrot.lane.b32.xlu0 %v3218, 124
        %v3223 = vpop.permute.xlu0 %3222
        %v3226 = vadd.f32 %v3209, %v3221
        %v3227 = vadd.f32 %v3210, %v3223
        %s3228 = sld [smem:[#allocation2 + $0x787]]
        %v3229 = vstv %s3228
        %v3230 = vmul.f32 %v3229, %v254
        %v3231 = vmul.f32 %v3229, %v255
        %v3234 = vrot.slane %v3230, 3
        %v3235 = vrot.slane %v3231, 3
        %v3236 = vsel %vm488, %v3234, %v3235
        %v3239 = vadd.f32 %v3226, %v3236
        %v3240 = vadd.f32 %v3227, %v3235
        %s3241 = sld [smem:[#allocation2 + $0x807]]
        %v3242 = vstv %s3241
        %v3243 = vmul.f32 %v3242, %v254
        %v3244 = vmul.f32 %v3242, %v255
        %v3247 = vrot.slane %v3243, 3
        %v3248 = vrot.slane %v3244, 3
        %v3249 = vsel %vm488, %v3247, %v3248
        %3250 = vrot.lane.b32.xlu0 %v3249, 127
        %v3251 = vpop.permute.xlu0 %3250
        %3252 = vrot.lane.b32.xlu0 %v3248, 127
        %v3253 = vpop.permute.xlu0 %3252
        %v3256 = vadd.f32 %v3239, %v3251
        %v3257 = vadd.f32 %v3240, %v3253
        %s3258 = sld [smem:[#allocation2 + $0x887]]
        %v3259 = vstv %s3258
        %v3260 = vmul.f32 %v3259, %v254
        %v3261 = vmul.f32 %v3259, %v255
        %v3264 = vrot.slane %v3260, 3
        %v3265 = vrot.slane %v3261, 3
        %v3266 = vsel %vm488, %v3264, %v3265
        %3267 = vrot.lane.b32.xlu0 %v3266, 126
        %v3268 = vpop.permute.xlu0 %3267
        %3269 = vrot.lane.b32.xlu0 %v3265, 126
        %v3270 = vpop.permute.xlu0 %3269
        %v3273 = vadd.f32 %v3256, %v3268
        %v3274 = vadd.f32 %v3257, %v3270
        %s3275 = sld [smem:[#allocation2 + $0x907]]
        %v3276 = vstv %s3275
        %v3277 = vmul.f32 %v3276, %v254
        %v3278 = vmul.f32 %v3276, %v255
        %v3281 = vrot.slane %v3277, 3
        %v3282 = vrot.slane %v3278, 3
        %v3283 = vsel %vm488, %v3281, %v3282
        %3284 = vrot.lane.b32.xlu0 %v3283, 125
        %v3285 = vpop.permute.xlu0 %3284
        %3286 = vrot.lane.b32.xlu0 %v3282, 125
        %v3287 = vpop.permute.xlu0 %3286
        %v3290 = vadd.f32 %v3273, %v3285
        %v3291 = vadd.f32 %v3274, %v3287
        %s3292 = sld [smem:[#allocation2 + $0x987]]
        %v3293 = vstv %s3292
        %v3294 = vmul.f32 %v3293, %v254
        %v3295 = vmul.f32 %v3293, %v255
        %v3298 = vrot.slane %v3294, 3
        %v3299 = vrot.slane %v3295, 3
        %v3300 = vsel %vm488, %v3298, %v3299
        %3301 = vrot.lane.b32.xlu0 %v3300, 124
        %v3302 = vpop.permute.xlu0 %3301
        %3303 = vrot.lane.b32.xlu0 %v3299, 124
        %v3304 = vpop.permute.xlu0 %3303
        %v3307 = vadd.f32 %v3290, %v3302
        %v3308 = vadd.f32 %v3291, %v3304
        %s3309 = sld [smem:[#allocation2 + $0xa07]]
        %v3310 = vstv %s3309
        %v3311 = vmul.f32 %v3310, %v254
        %v3312 = vmul.f32 %v3310, %v255
        %v3315 = vrot.slane %v3311, 4
        %v3316 = vrot.slane %v3312, 4
        %v3317 = vsel %vm570, %v3315, %v3316
        %v3320 = vadd.f32 %v3307, %v3317
        %v3321 = vadd.f32 %v3308, %v3316
        %s3322 = sld [smem:[#allocation2 + $0xa87]]
        %v3323 = vstv %s3322
        %v3324 = vmul.f32 %v3323, %v254
        %v3325 = vmul.f32 %v3323, %v255
        %v3328 = vrot.slane %v3324, 4
        %v3329 = vrot.slane %v3325, 4
        %v3330 = vsel %vm570, %v3328, %v3329
        %3331 = vrot.lane.b32.xlu0 %v3330, 127
        %v3332 = vpop.permute.xlu0 %3331
        %3333 = vrot.lane.b32.xlu0 %v3329, 127
        %v3334 = vpop.permute.xlu0 %3333
        %v3337 = vadd.f32 %v3320, %v3332
        %v3338 = vadd.f32 %v3321, %v3334
        %s3339 = sld [smem:[#allocation2 + $0xb07]]
        %v3340 = vstv %s3339
        %v3341 = vmul.f32 %v3340, %v254
        %v3342 = vmul.f32 %v3340, %v255
        %v3345 = vrot.slane %v3341, 4
        %v3346 = vrot.slane %v3342, 4
        %v3347 = vsel %vm570, %v3345, %v3346
        %3348 = vrot.lane.b32.xlu0 %v3347, 126
        %v3349 = vpop.permute.xlu0 %3348
        %3350 = vrot.lane.b32.xlu0 %v3346, 126
        %v3351 = vpop.permute.xlu0 %3350
        %v3354 = vadd.f32 %v3337, %v3349
        %v3355 = vadd.f32 %v3338, %v3351
        %s3356 = sld [smem:[#allocation2 + $0xb87]]
        %v3357 = vstv %s3356
        %v3358 = vmul.f32 %v3357, %v254
        %v3359 = vmul.f32 %v3357, %v255
        %v3362 = vrot.slane %v3358, 4
        %v3363 = vrot.slane %v3359, 4
        %v3364 = vsel %vm570, %v3362, %v3363
        %3365 = vrot.lane.b32.xlu0 %v3364, 125
        %v3366 = vpop.permute.xlu0 %3365
        %3367 = vrot.lane.b32.xlu0 %v3363, 125
        %v3368 = vpop.permute.xlu0 %3367
        %v3371 = vadd.f32 %v3354, %v3366
        %v3372 = vadd.f32 %v3355, %v3368
        %s3373 = sld [smem:[#allocation2 + $0xc07]]
        %v3374 = vstv %s3373
        %v3375 = vmul.f32 %v3374, %v254
        %v3376 = vmul.f32 %v3374, %v255
        %v3379 = vrot.slane %v3375, 4
        %v3380 = vrot.slane %v3376, 4
        %v3381 = vsel %vm570, %v3379, %v3380
        %3382 = vrot.lane.b32.xlu0 %v3381, 124
        %v3383 = vpop.permute.xlu0 %3382
        %3384 = vrot.lane.b32.xlu0 %v3380, 124
        %v3385 = vpop.permute.xlu0 %3384
        %v3388 = vadd.f32 %v3371, %v3383
        %v3389 = vadd.f32 %v3372, %v3385
        %s3390 = sld [smem:[#allocation4 + $0x7]]
        %v3391 = vstv %s3390
        %v3392 = vadd.f32 %v3388, %v3391
        %v3393 = vadd.f32 %v3389, %v3391
        %v3394 = vmax.f32 %v3392, 0.0
        %v3395 = vmax.f32 %v3393, 0.0
        %v3404 = vrot.slane %v650, 1
        %v3405 = vrot.slane %v1042, 1
        %v3406 = vrot.slane %v1434, 1
        %v3407 = vrot.slane %v1826, 1
        %v3408 = vrot.slane %v2218, 1
        %v3409 = vrot.slane %v2610, 1
        %v3410 = vrot.slane %v3002, 1
        %v3411 = vrot.slane %v3394, 1
        %v3420 = vmax.f32 %v650, %v3404
        %v3421 = vmax.f32 %v1042, %v3405
        %v3422 = vmax.f32 %v1434, %v3406
        %v3423 = vmax.f32 %v1826, %v3407
        %v3424 = vmax.f32 %v2218, %v3408
        %v3425 = vmax.f32 %v2610, %v3409
        %v3426 = vmax.f32 %v3002, %v3410
        %v3427 = vmax.f32 %v3394, %v3411
        %v3428 = vrot.slane %v650, 2
        %v3429 = vrot.slane %v1042, 2
        %v3430 = vrot.slane %v1434, 2
        %v3431 = vrot.slane %v1826, 2
        %v3432 = vrot.slane %v2218, 2
        %v3433 = vrot.slane %v2610, 2
        %v3434 = vrot.slane %v3002, 2
        %v3435 = vrot.slane %v3394, 2
        %v3444 = vmax.f32 %v3420, %v3428
        %v3445 = vmax.f32 %v3421, %v3429
        %v3446 = vmax.f32 %v3422, %v3430
        %v3447 = vmax.f32 %v3423, %v3431
        %v3448 = vmax.f32 %v3424, %v3432
        %v3449 = vmax.f32 %v3425, %v3433
        %v3450 = vmax.f32 %v3426, %v3434
        %v3451 = vmax.f32 %v3427, %v3435
        %v3460 = vrot.slane %v651, 2
        %v3461 = vrot.slane %v1043, 2
        %v3462 = vrot.slane %v1435, 2
        %v3463 = vrot.slane %v1827, 2
        %v3464 = vrot.slane %v2219, 2
        %v3465 = vrot.slane %v2611, 2
        %v3466 = vrot.slane %v3003, 2
        %v3467 = vrot.slane %v3395, 2
        %v3476 = vmax.f32 %v3420, %v3460
        %v3477 = vmax.f32 %v3421, %v3461
        %v3478 = vmax.f32 %v3422, %v3462
        %v3479 = vmax.f32 %v3423, %v3463
        %v3480 = vmax.f32 %v3424, %v3464
        %v3481 = vmax.f32 %v3425, %v3465
        %v3482 = vmax.f32 %v3426, %v3466
        %v3483 = vmax.f32 %v3427, %v3467
        %v3484 = vrot.slane %v651, 1
        %v3485 = vrot.slane %v1043, 1
        %v3486 = vrot.slane %v1435, 1
        %v3487 = vrot.slane %v1827, 1
        %v3488 = vrot.slane %v2219, 1
        %v3489 = vrot.slane %v2611, 1
        %v3490 = vrot.slane %v3003, 1
        %v3491 = vrot.slane %v3395, 1
        %v3500 = vmax.f32 %v651, %v3484
        %v3501 = vmax.f32 %v1043, %v3485
        %v3502 = vmax.f32 %v1435, %v3486
        %v3503 = vmax.f32 %v1827, %v3487
        %v3504 = vmax.f32 %v2219, %v3488
        %v3505 = vmax.f32 %v2611, %v3489
        %v3506 = vmax.f32 %v3003, %v3490
        %v3507 = vmax.f32 %v3395, %v3491
        %v3508 = vmax.f32 %v3500, %v3460
        %v3509 = vmax.f32 %v3501, %v3461
        %v3510 = vmax.f32 %v3502, %v3462
        %v3511 = vmax.f32 %v3503, %v3463
        %v3512 = vmax.f32 %v3504, %v3464
        %v3513 = vmax.f32 %v3505, %v3465
        %v3514 = vmax.f32 %v3506, %v3466
        %v3515 = vmax.f32 %v3507, %v3467
        %v3524 = vrot.slane %v3444, 1
        %v3525 = vrot.slane %v3445, 1
        %v3526 = vrot.slane %v3446, 1
        %v3527 = vrot.slane %v3447, 1
        %v3528 = vrot.slane %v3448, 1
        %v3529 = vrot.slane %v3449, 1
        %v3530 = vrot.slane %v3450, 1
        %v3531 = vrot.slane %v3451, 1
        %v3540 = vrot.slane %v3444, 2
        %v3541 = vrot.slane %v3445, 2
        %v3542 = vrot.slane %v3446, 2
        %v3543 = vrot.slane %v3447, 2
        %v3544 = vrot.slane %v3448, 2
        %v3545 = vrot.slane %v3449, 2
        %v3546 = vrot.slane %v3450, 2
        %v3547 = vrot.slane %v3451, 2
        %v3564 = vrot.slane %v3476, 3
        %v3565 = vrot.slane %v3477, 3
        %v3566 = vrot.slane %v3478, 3
        %v3567 = vrot.slane %v3479, 3
        %v3568 = vrot.slane %v3480, 3
        %v3569 = vrot.slane %v3481, 3
        %v3570 = vrot.slane %v3482, 3
        %v3571 = vrot.slane %v3483, 3
        %v3588 = vrot.slane %v3508, 4
        %v3589 = vrot.slane %v3509, 4
        %v3590 = vrot.slane %v3510, 4
        %v3591 = vrot.slane %v3511, 4
        %v3592 = vrot.slane %v3512, 4
        %v3593 = vrot.slane %v3513, 4
        %v3594 = vrot.slane %v3514, 4
        %v3595 = vrot.slane %v3515, 4
        %vm3604 = vcmask 1040384
        %v3605 = vsel %vm3604, %v3444, %v3524
        %v3606 = vsel %vm3604, %v3445, %v3525
        %v3607 = vsel %vm3604, %v3446, %v3526
        %v3608 = vsel %vm3604, %v3447, %v3527
        %v3609 = vsel %vm3604, %v3448, %v3528
        %v3610 = vsel %vm3604, %v3449, %v3529
        %v3611 = vsel %vm3604, %v3450, %v3530
        %v3612 = vsel %vm3604, %v3451, %v3531
        %vm3613 = vcmask 1041408
        %v3614 = vsel %vm3613, %v3605, %v3540
        %v3615 = vsel %vm3613, %v3606, %v3541
        %v3616 = vsel %vm3613, %v3607, %v3542
        %v3617 = vsel %vm3613, %v3608, %v3543
        %v3618 = vsel %vm3613, %v3609, %v3544
        %v3619 = vsel %vm3613, %v3610, %v3545
        %v3620 = vsel %vm3613, %v3611, %v3546
        %v3621 = vsel %vm3613, %v3612, %v3547
        %vm3622 = vcmask 1042432
        %v3623 = vsel %vm3622, %v3614, %v3564
        %v3624 = vsel %vm3622, %v3615, %v3565
        %v3625 = vsel %vm3622, %v3616, %v3566
        %v3626 = vsel %vm3622, %v3617, %v3567
        %v3627 = vsel %vm3622, %v3618, %v3568
        %v3628 = vsel %vm3622, %v3619, %v3569
        %v3629 = vsel %vm3622, %v3620, %v3570
        %v3630 = vsel %vm3622, %v3621, %v3571
        %v3631 = vsel %vm570, %v3623, %v3588
        %v3632 = vsel %vm570, %v3624, %v3589
        %v3633 = vsel %vm570, %v3625, %v3590
        %v3634 = vsel %vm570, %v3626, %v3591
        %v3635 = vsel %vm570, %v3627, %v3592
        %v3636 = vsel %vm570, %v3628, %v3593
        %v3637 = vsel %vm570, %v3629, %v3594
        %v3638 = vsel %vm570, %v3630, %v3595
        %3647 = vrot.lane.b32.xlu0 %v3631, 127
        %v3648 = vpop.permute.xlu0 %3647
        %3649 = vrot.lane.b32.xlu0 %v3632, 127
        %v3650 = vpop.permute.xlu0 %3649
        %3651 = vrot.lane.b32.xlu0 %v3633, 127
        %v3652 = vpop.permute.xlu0 %3651
        %3653 = vrot.lane.b32.xlu0 %v3634, 127
        %v3654 = vpop.permute.xlu0 %3653
        %3655 = vrot.lane.b32.xlu0 %v3635, 127
        %v3656 = vpop.permute.xlu0 %3655
        %3657 = vrot.lane.b32.xlu0 %v3636, 127
        %v3658 = vpop.permute.xlu0 %3657
        %3659 = vrot.lane.b32.xlu0 %v3637, 127
        %v3660 = vpop.permute.xlu0 %3659
        %3661 = vrot.lane.b32.xlu0 %v3638, 127
        %v3662 = vpop.permute.xlu0 %3661
        %v3671 = vmax.f32 %v3631, %v3648
        %v3672 = vmax.f32 %v3632, %v3650
        %v3673 = vmax.f32 %v3633, %v3652
        %v3674 = vmax.f32 %v3634, %v3654
        %v3675 = vmax.f32 %v3635, %v3656
        %v3676 = vmax.f32 %v3636, %v3658
        %v3677 = vmax.f32 %v3637, %v3660
        %v3678 = vmax.f32 %v3638, %v3662
        %3679 = vrot.lane.b32.xlu0 %v3631, 126
        %v3680 = vpop.permute.xlu0 %3679
        %3681 = vrot.lane.b32.xlu0 %v3632, 126
        %v3682 = vpop.permute.xlu0 %3681
        %3683 = vrot.lane.b32.xlu0 %v3633, 126
        %v3684 = vpop.permute.xlu0 %3683
        %3685 = vrot.lane.b32.xlu0 %v3634, 126
        %v3686 = vpop.permute.xlu0 %3685
        %3687 = vrot.lane.b32.xlu0 %v3635, 126
        %v3688 = vpop.permute.xlu0 %3687
        %3689 = vrot.lane.b32.xlu0 %v3636, 126
        %v3690 = vpop.permute.xlu0 %3689
        %3691 = vrot.lane.b32.xlu0 %v3637, 126
        %v3692 = vpop.permute.xlu0 %3691
        %3693 = vrot.lane.b32.xlu0 %v3638, 126
        %v3694 = vpop.permute.xlu0 %3693
        %v3703 = vmax.f32 %v3671, %v3680
        %v3704 = vmax.f32 %v3672, %v3682
        %v3705 = vmax.f32 %v3673, %v3684
        %v3706 = vmax.f32 %v3674, %v3686
        %v3707 = vmax.f32 %v3675, %v3688
        %v3708 = vmax.f32 %v3676, %v3690
        %v3709 = vmax.f32 %v3677, %v3692
        %v3710 = vmax.f32 %v3678, %v3694
        %3719 = vrot.lane.b32.xlu0 %v3703, 127
        %v3720 = vpop.permute.xlu0 %3719
        %3721 = vrot.lane.b32.xlu0 %v3704, 127
        %v3722 = vpop.permute.xlu0 %3721
        %3723 = vrot.lane.b32.xlu0 %v3705, 127
        %v3724 = vpop.permute.xlu0 %3723
        %3725 = vrot.lane.b32.xlu0 %v3706, 127
        %v3726 = vpop.permute.xlu0 %3725
        %3727 = vrot.lane.b32.xlu0 %v3707, 127
        %v3728 = vpop.permute.xlu0 %3727
        %3729 = vrot.lane.b32.xlu0 %v3708, 127
        %v3730 = vpop.permute.xlu0 %3729
        %3731 = vrot.lane.b32.xlu0 %v3709, 127
        %v3732 = vpop.permute.xlu0 %3731
        %3733 = vrot.lane.b32.xlu0 %v3710, 127
        %v3734 = vpop.permute.xlu0 %3733
        %3743 = vrot.lane.b32.xlu0 %v3703, 126
        %v3744 = vpop.permute.xlu0 %3743
        %3745 = vrot.lane.b32.xlu0 %v3704, 126
        %v3746 = vpop.permute.xlu0 %3745
        %3747 = vrot.lane.b32.xlu0 %v3705, 126
        %v3748 = vpop.permute.xlu0 %3747
        %3749 = vrot.lane.b32.xlu0 %v3706, 126
        %v3750 = vpop.permute.xlu0 %3749
        %3751 = vrot.lane.b32.xlu0 %v3707, 126
        %v3752 = vpop.permute.xlu0 %3751
        %3753 = vrot.lane.b32.xlu0 %v3708, 126
        %v3754 = vpop.permute.xlu0 %3753
        %3755 = vrot.lane.b32.xlu0 %v3709, 126
        %v3756 = vpop.permute.xlu0 %3755
        %3757 = vrot.lane.b32.xlu0 %v3710, 126
        %v3758 = vpop.permute.xlu0 %3757
        %3767 = vrot.lane.b32.xlu0 %v3703, 125
        %v3768 = vpop.permute.xlu0 %3767
        %3769 = vrot.lane.b32.xlu0 %v3704, 125
        %v3770 = vpop.permute.xlu0 %3769
        %3771 = vrot.lane.b32.xlu0 %v3705, 125
        %v3772 = vpop.permute.xlu0 %3771
        %3773 = vrot.lane.b32.xlu0 %v3706, 125
        %v3774 = vpop.permute.xlu0 %3773
        %3775 = vrot.lane.b32.xlu0 %v3707, 125
        %v3776 = vpop.permute.xlu0 %3775
        %3777 = vrot.lane.b32.xlu0 %v3708, 125
        %v3778 = vpop.permute.xlu0 %3777
        %3779 = vrot.lane.b32.xlu0 %v3709, 125
        %v3780 = vpop.permute.xlu0 %3779
        %3781 = vrot.lane.b32.xlu0 %v3710, 125
        %v3782 = vpop.permute.xlu0 %3781
        %3791 = vrot.lane.b32.xlu0 %v3703, 124
        %v3792 = vpop.permute.xlu0 %3791
        %3793 = vrot.lane.b32.xlu0 %v3704, 124
        %v3794 = vpop.permute.xlu0 %3793
        %3795 = vrot.lane.b32.xlu0 %v3705, 124
        %v3796 = vpop.permute.xlu0 %3795
        %3797 = vrot.lane.b32.xlu0 %v3706, 124
        %v3798 = vpop.permute.xlu0 %3797
        %3799 = vrot.lane.b32.xlu0 %v3707, 124
        %v3800 = vpop.permute.xlu0 %3799
        %3801 = vrot.lane.b32.xlu0 %v3708, 124
        %v3802 = vpop.permute.xlu0 %3801
        %3803 = vrot.lane.b32.xlu0 %v3709, 124
        %v3804 = vpop.permute.xlu0 %3803
        %3805 = vrot.lane.b32.xlu0 %v3710, 124
        %v3806 = vpop.permute.xlu0 %3805
        %vm3815 = vcmask 7168
        %v3816 = vsel %vm3815, %v3703, %v3720
        %v3817 = vsel %vm3815, %v3704, %v3722
        %v3818 = vsel %vm3815, %v3705, %v3724
        %v3819 = vsel %vm3815, %v3706, %v3726
        %v3820 = vsel %vm3815, %v3707, %v3728
        %v3821 = vsel %vm3815, %v3708, %v3730
        %v3822 = vsel %vm3815, %v3709, %v3732
        %v3823 = vsel %vm3815, %v3710, %v3734
        %vm3824 = vcmask 15360
        %v3825 = vsel %vm3824, %v3816, %v3744
        %v3826 = vsel %vm3824, %v3817, %v3746
        %v3827 = vsel %vm3824, %v3818, %v3748
        %v3828 = vsel %vm3824, %v3819, %v3750
        %v3829 = vsel %vm3824, %v3820, %v3752
        %v3830 = vsel %vm3824, %v3821, %v3754
        %v3831 = vsel %vm3824, %v3822, %v3756
        %v3832 = vsel %vm3824, %v3823, %v3758
        %vm3833 = vcmask 23552
        %v3834 = vsel %vm3833, %v3825, %v3768
        %v3835 = vsel %vm3833, %v3826, %v3770
        %v3836 = vsel %vm3833, %v3827, %v3772
        %v3837 = vsel %vm3833, %v3828, %v3774
        %v3838 = vsel %vm3833, %v3829, %v3776
        %v3839 = vsel %vm3833, %v3830, %v3778
        %v3840 = vsel %vm3833, %v3831, %v3780
        %v3841 = vsel %vm3833, %v3832, %v3782
        %vm3842 = vcmask 31744
        %v3843 = vsel %vm3842, %v3834, %v3792
        %v3844 = vsel %vm3842, %v3835, %v3794
        %v3845 = vsel %vm3842, %v3836, %v3796
        %v3846 = vsel %vm3842, %v3837, %v3798
        %v3847 = vsel %vm3842, %v3838, %v3800
        %v3848 = vsel %vm3842, %v3839, %v3802
        %v3849 = vsel %vm3842, %v3840, %v3804
        %v3850 = vsel %vm3842, %v3841, %v3806
        %v3859 = vrot.slane %v3844, 7
        %vm3860 = vcmask 1041409
        %v3861 = vsel %vm3860, %v3859, %v3843
        %v3862 = vrot.slane %v3845, 6
        %vm3863 = vcmask 1042434
        %v3864 = vsel %vm3863, %v3862, %v3861
        %v3865 = vrot.slane %v3846, 5
        %vm3866 = vcmask 1043459
        %v3867 = vsel %vm3866, %v3865, %v3864
        %v3868 = vrot.slane %v3847, 4
        %vm3869 = vcmask 1044484
        %v3870 = vsel %vm3869, %v3868, %v3867
        %v3871 = vrot.slane %v3848, 3
        %vm3872 = vcmask 1045509
        %v3873 = vsel %vm3872, %v3871, %v3870
        %v3874 = vrot.slane %v3849, 2
        %vm3875 = vcmask 1046534
        %v3876 = vsel %vm3875, %v3874, %v3873
        %v3877 = vrot.slane %v3850, 1
        %vm3878 = vcmask 1047559
        %v3879 = vsel %vm3878, %v3877, %v3876
        %v3881 = vrot.slane %v3843, 1
        %v3882 = vsel %vm3860, %v3844, %v3881
        %v3883 = vrot.slane %v3845, 7
        %v3884 = vsel %vm3863, %v3883, %v3882
        %v3885 = vrot.slane %v3846, 6
        %v3886 = vsel %vm3866, %v3885, %v3884
        %v3887 = vrot.slane %v3847, 5
        %v3888 = vsel %vm3869, %v3887, %v3886
        %v3889 = vrot.slane %v3848, 4
        %v3890 = vsel %vm3872, %v3889, %v3888
        %v3891 = vrot.slane %v3849, 3
        %v3892 = vsel %vm3875, %v3891, %v3890
        %v3893 = vrot.slane %v3850, 2
        %v3894 = vsel %vm3878, %v3893, %v3892
        %3895 = vrot.lane.b32.xlu0 %v3894, 3
        %v3896 = vpop.permute.xlu0 %3895
        %v3898 = vrot.slane %v3843, 2
        %v3899 = vrot.slane %v3844, 1
        %v3900 = vsel %vm3860, %v3899, %v3898
        %v3901 = vsel %vm3863, %v3845, %v3900
        %v3902 = vrot.slane %v3846, 7
        %v3903 = vsel %vm3866, %v3902, %v3901
        %v3904 = vrot.slane %v3847, 6
        %v3905 = vsel %vm3869, %v3904, %v3903
        %v3906 = vrot.slane %v3848, 5
        %v3907 = vsel %vm3872, %v3906, %v3905
        %v3908 = vrot.slane %v3849, 4
        %v3909 = vsel %vm3875, %v3908, %v3907
        %v3910 = vrot.slane %v3850, 3
        %v3911 = vsel %vm3878, %v3910, %v3909
        %3912 = vrot.lane.b32.xlu0 %v3911, 6
        %v3913 = vpop.permute.xlu0 %3912
        %v3915 = vsel %vm3833, %v3879, %v3896
        %vm3916 = vcmask 48128
        %v3917 = vsel %vm3916, %v3915, %v3913
        %3918 = vrot.lane.b32.xlu0 %v3879, 127
        %v3919 = vpop.permute.xlu0 %3918
        %3921 = vrot.lane.b32.xlu0 %v3894, 2
        %v3922 = vpop.permute.xlu0 %3921
        %3924 = vrot.lane.b32.xlu0 %v3911, 5
        %v3925 = vpop.permute.xlu0 %3924
        %v3927 = vsel %vm3833, %v3919, %v3922
        %v3928 = vsel %vm3916, %v3927, %v3925
        %3929 = vrot.lane.b32.xlu0 %v3879, 126
        %v3930 = vpop.permute.xlu0 %3929
        %3932 = vrot.lane.b32.xlu0 %v3894, 1
        %v3933 = vpop.permute.xlu0 %3932
        %3935 = vrot.lane.b32.xlu0 %v3911, 4
        %v3936 = vpop.permute.xlu0 %3935
        %v3938 = vsel %vm3833, %v3930, %v3933
        %v3939 = vsel %vm3916, %v3938, %v3936
        %v3940 = vsel %vm3863, %v3859, %v3843
        %v3941 = vsel %vm3866, %v3862, %v3940
        %v3942 = vsel %vm3869, %v3865, %v3941
        %v3943 = vsel %vm3872, %v3868, %v3942
        %v3944 = vsel %vm3875, %v3871, %v3943
        %v3945 = vsel %vm3878, %v3874, %v3944
        %v3948 = vsel %vm3863, %v3844, %v3881
        %v3949 = vsel %vm3866, %v3883, %v3948
        %v3950 = vsel %vm3869, %v3885, %v3949
        %v3951 = vsel %vm3872, %v3887, %v3950
        %v3952 = vsel %vm3875, %v3889, %v3951
        %v3953 = vsel %vm3878, %v3891, %v3952
        %3954 = vrot.lane.b32.xlu0 %v3953, 3
        %v3955 = vpop.permute.xlu0 %3954
        %3956 = vrot.lane.b32.xlu0 %v3893, 3
        %v3957 = vpop.permute.xlu0 %3956
        %v3960 = vsel %vm3863, %v3899, %v3898
        %v3961 = vsel %vm3866, %v3845, %v3960
        %v3962 = vsel %vm3869, %v3902, %v3961
        %v3963 = vsel %vm3872, %v3904, %v3962
        %v3964 = vsel %vm3875, %v3906, %v3963
        %v3965 = vsel %vm3878, %v3908, %v3964
        %3966 = vrot.lane.b32.xlu0 %v3965, 6
        %v3967 = vpop.permute.xlu0 %3966
        %3968 = vrot.lane.b32.xlu0 %v3910, 6
        %v3969 = vpop.permute.xlu0 %3968
        %v3972 = vsel %vm3833, %v3945, %v3955
        %v3973 = vsel %vm3833, %v3877, %v3957
        %v3974 = vsel %vm3916, %v3972, %v3967
        %v3975 = vsel %vm3916, %v3973, %v3969
        %3976 = vrot.lane.b32.xlu0 %v3945, 127
        %v3977 = vpop.permute.xlu0 %3976
        %3978 = vrot.lane.b32.xlu0 %v3877, 127
        %v3979 = vpop.permute.xlu0 %3978
        %3982 = vrot.lane.b32.xlu0 %v3953, 2
        %v3983 = vpop.permute.xlu0 %3982
        %3984 = vrot.lane.b32.xlu0 %v3893, 2
        %v3985 = vpop.permute.xlu0 %3984
        %3988 = vrot.lane.b32.xlu0 %v3965, 5
        %v3989 = vpop.permute.xlu0 %3988
        %3990 = vrot.lane.b32.xlu0 %v3910, 5
        %v3991 = vpop.permute.xlu0 %3990
        %v3994 = vsel %vm3833, %v3977, %v3983
        %v3995 = vsel %vm3833, %v3979, %v3985
        %v3996 = vsel %vm3916, %v3994, %v3989
        %v3997 = vsel %vm3916, %v3995, %v3991
        %3998 = vrot.lane.b32.xlu0 %v3945, 126
        %v3999 = vpop.permute.xlu0 %3998
        %4000 = vrot.lane.b32.xlu0 %v3877, 126
        %v4001 = vpop.permute.xlu0 %4000
        %4004 = vrot.lane.b32.xlu0 %v3953, 1
        %v4005 = vpop.permute.xlu0 %4004
        %4006 = vrot.lane.b32.xlu0 %v3893, 1
        %v4007 = vpop.permute.xlu0 %4006
        %4010 = vrot.lane.b32.xlu0 %v3965, 4
        %v4011 = vpop.permute.xlu0 %4010
        %4012 = vrot.lane.b32.xlu0 %v3910, 4
        %v4013 = vpop.permute.xlu0 %4012
        %v4016 = vsel %vm3833, %v3999, %v4005
        %v4017 = vsel %vm3833, %v4001, %v4007
        %v4018 = vsel %vm3916, %v4016, %v4011
        %v4019 = vsel %vm3916, %v4017, %v4013
        %v4020 = vsel %vm3866, %v3859, %v3843
        %v4021 = vsel %vm3869, %v3862, %v4020
        %v4022 = vsel %vm3872, %v3865, %v4021
        %v4023 = vsel %vm3875, %v3868, %v4022
        %v4024 = vsel %vm3878, %v3871, %v4023
        %v4025 = vsel %vm3860, %v3877, %v3874
        %v4028 = vsel %vm3866, %v3844, %v3881
        %v4029 = vsel %vm3869, %v3883, %v4028
        %v4030 = vsel %vm3872, %v3885, %v4029
        %v4031 = vsel %vm3875, %v3887, %v4030
        %v4032 = vsel %vm3878, %v3889, %v4031
        %v4033 = vsel %vm3860, %v3893, %v3891
        %4034 = vrot.lane.b32.xlu0 %v4032, 3
        %v4035 = vpop.permute.xlu0 %4034
        %4036 = vrot.lane.b32.xlu0 %v4033, 3
        %v4037 = vpop.permute.xlu0 %4036
        %v4040 = vsel %vm3866, %v3899, %v3898
        %v4041 = vsel %vm3869, %v3845, %v4040
        %v4042 = vsel %vm3872, %v3902, %v4041
        %v4043 = vsel %vm3875, %v3904, %v4042
        %v4044 = vsel %vm3878, %v3906, %v4043
        %v4045 = vsel %vm3860, %v3910, %v3908
        %4046 = vrot.lane.b32.xlu0 %v4044, 6
        %v4047 = vpop.permute.xlu0 %4046
        %4048 = vrot.lane.b32.xlu0 %v4045, 6
        %v4049 = vpop.permute.xlu0 %4048
        %v4052 = vsel %vm3833, %v4024, %v4035
        %v4053 = vsel %vm3833, %v4025, %v4037
        %v4054 = vsel %vm3916, %v4052, %v4047
        %v4055 = vsel %vm3916, %v4053, %v4049
        %4056 = vrot.lane.b32.xlu0 %v4024, 127
        %v4057 = vpop.permute.xlu0 %4056
        %4058 = vrot.lane.b32.xlu0 %v4025, 127
        %v4059 = vpop.permute.xlu0 %4058
        %4062 = vrot.lane.b32.xlu0 %v4032, 2
        %v4063 = vpop.permute.xlu0 %4062
        %4064 = vrot.lane.b32.xlu0 %v4033, 2
        %v4065 = vpop.permute.xlu0 %4064
        %4068 = vrot.lane.b32.xlu0 %v4044, 5
        %v4069 = vpop.permute.xlu0 %4068
        %4070 = vrot.lane.b32.xlu0 %v4045, 5
        %v4071 = vpop.permute.xlu0 %4070
        %v4074 = vsel %vm3833, %v4057, %v4063
        %v4075 = vsel %vm3833, %v4059, %v4065
        %v4076 = vsel %vm3916, %v4074, %v4069
        %v4077 = vsel %vm3916, %v4075, %v4071
        %4078 = vrot.lane.b32.xlu0 %v4024, 126
        %v4079 = vpop.permute.xlu0 %4078
        %4080 = vrot.lane.b32.xlu0 %v4025, 126
        %v4081 = vpop.permute.xlu0 %4080
        %4084 = vrot.lane.b32.xlu0 %v4032, 1
        %v4085 = vpop.permute.xlu0 %4084
        %4086 = vrot.lane.b32.xlu0 %v4033, 1
        %v4087 = vpop.permute.xlu0 %4086
        %4090 = vrot.lane.b32.xlu0 %v4044, 4
        %v4091 = vpop.permute.xlu0 %4090
        %4092 = vrot.lane.b32.xlu0 %v4045, 4
        %v4093 = vpop.permute.xlu0 %4092
        %v4096 = vsel %vm3833, %v4079, %v4085
        %v4097 = vsel %vm3833, %v4081, %v4087
        %v4098 = vsel %vm3916, %v4096, %v4091
        %v4099 = vsel %vm3916, %v4097, %v4093
        %v4102 = vrot.slane %v3974, 1
        %v4103 = vrot.slane %v3975, 1
        %v4104 = vsel %vm324, %v4102, %v4103
        %v4108 = vrot.slane %v3996, 1
        %v4109 = vrot.slane %v3997, 1
        %v4110 = vsel %vm324, %v4108, %v4109
        %v4114 = vrot.slane %v4018, 1
        %v4115 = vrot.slane %v4019, 1
        %v4116 = vsel %vm324, %v4114, %v4115
        %v4120 = vrot.slane %v4054, 2
        %v4121 = vrot.slane %v4055, 2
        %v4122 = vsel %vm406, %v4120, %v4121
        %v4126 = vrot.slane %v4076, 2
        %v4127 = vrot.slane %v4077, 2
        %v4128 = vsel %vm406, %v4126, %v4127
        %v4132 = vrot.slane %v4098, 2
        %v4133 = vrot.slane %v4099, 2
        %v4134 = vsel %vm406, %v4132, %v4133
        %v4136 = vld [vmem:[%s3] sm:$0xff]
        %v4137 = vld [vmem:[%s3 + $0x8] sm:$0xff]
        %v4138 = vld [vmem:[%s4] sm:$0xff]
        %v4139 = vld [vmem:[%s4 + $0x8] sm:$0xff]
        %4141 = vset.pattern.permute.xlu0 0
        %4142 = vperm.xlu0 %4141, %v4138
        %v4143 = vpop.permute.xlu0 %4142
        %4146 = vset.pattern.permute.xlu0 0
        %4147 = vperm.xlu0 %4146, %v4139
        %v4148 = vpop.permute.xlu0 %4147
        %vm4150 = vcmask 588800
        %v4152 = vsel %vm4150, %v4136, 0
        %v4155 = vsel %vm4150, %v4137, 0
        %4157 = vmatprep.subr.mxu0 0.0
        %4158 = vmatpush1.msra.mxu0 0.0
        %4159 = vmatprep.subr.mxu0 0.0
        %4160 = vmatpush1.msra.mxu0 0.0
        %4161 = vmatprep.subr.mxu0 0.0
        %4162 = vmatpush1.msra.mxu0 0.0
        %4163 = vmatprep.subr.mxu0 0.0
        %4164 = vmatpush1.msra.mxu0 0.0
        %4165 = vmatprep.subr.mxu0 0.0
        %4166 = vmatpush1.msra.mxu0 0.0
        %4167 = vmatprep.subr.mxu0 0.0
        %4168 = vmatpush1.msra.mxu0 0.0
        %4169 = vmatprep.subr.mxu0 0.0
        %4170 = vmatpush1.msra.mxu0 0.0
        %4171 = vmatprep.subr.mxu0 0.0
        %4172 = vmatpush1.msra.mxu0 %v4134
        %4173 = vmatprep.subr.mxu0 0.0
        %4174 = vmatpush1.msra.mxu0 %v4128
        %4175 = vmatprep.subr.mxu0 0.0
        %4176 = vmatpush1.msra.mxu0 %v4122
        %4177 = vmatprep.subr.mxu0 0.0
        %4178 = vmatpush1.msra.mxu0 %v4116
        %4179 = vmatprep.subr.mxu0 0.0
        %4180 = vmatpush1.msra.mxu0 %v4110
        %4181 = vmatprep.subr.mxu0 0.0
        %4182 = vmatpush1.msra.mxu0 %v4104
        %4183 = vmatprep.subr.mxu0 0.0
        %4184 = vmatpush1.msra.mxu0 %v3939
        %4185 = vmatprep.subr.mxu0 0.0
        %4186 = vmatpush1.msra.mxu0 %v3928
        %4187 = vmatprep.subr.mxu0 0.0
        %4188 = vmatpush1.msra.mxu0 %v3917
        %4189 = vmatprep.subr.mxu0 0.0
        %4190 = vmatpush2.msra.mxu0 0.0
        %4191 = vmatprep.subr.mxu0 0.0
        %4192 = vmatpush2.msra.mxu0 0.0
        %4193 = vmatprep.subr.mxu0 0.0
        %4194 = vmatpush2.msra.mxu0 0.0
        %4195 = vmatprep.subr.mxu0 0.0
        %4196 = vmatpush2.msra.mxu0 0.0
        %4197 = vmatprep.subr.mxu0 0.0
        %4198 = vmatpush2.msra.mxu0 0.0
        %4199 = vmatprep.subr.mxu0 0.0
        %4200 = vmatpush2.msra.mxu0 0.0
        %4201 = vmatprep.subr.mxu0 0.0
        %4202 = vmatpush2.msra.mxu0 0.0
        %4203 = vmatprep.subr.mxu0 0.0
        %4204 = vmatpush2.msra.mxu0 0.0
        %4205 = vmatprep.subr.mxu0 0.0
        %4206 = vmatpush2.msra.mxu0 0.0
        %4207 = vmatprep.subr.mxu0 0.0
        %4208 = vmatpush2.msra.mxu0 0.0
        %4209 = vmatprep.subr.mxu0 0.0
        %4210 = vmatpush2.msra.mxu0 0.0
        %4211 = vmatprep.subr.mxu0 0.0
        %4212 = vmatpush2.msra.mxu0 0.0
        %4213 = vmatprep.subr.mxu0 0.0
        %4214 = vmatpush2.msra.mxu0 0.0
        %4215 = vmatprep.subr.mxu0 0.0
        %4216 = vmatpush2.msra.mxu0 0.0
        %4217 = vmatprep.subr.mxu0 0.0
        %4218 = vmatpush2.msra.mxu0 0.0
        %4219 = vmatprep.subr.mxu0 0.0
        %4220 = vmatpush2.msra.mxu0 0.0
        %4221 = vmatprep.mubr.f32.mxu0 0.0
        %4222 = vmatmul.mubr.f32.gmra.mxu0 %v4152
        %v4223 = vpop.f32.mrf.mxu0
        %v4224 = vadd.f32 %v4143, %v4223
        %v4225 = vpop.f32.mrf.mxu0
        %4226 = vmatprep.mubr.f32.mxu0 0.0
        %4227 = vmatmul.mubr.f32.gmra.mxu0 %v4155
        %v4228 = vpop.f32.mrf.mxu0
        %v4229 = vadd.f32 %v4148, %v4228
        %v4230 = vpop.f32.mrf.mxu0
        %4231 = vdwg.mxu0
        %v4232 = vmax.f32 %v4224, 0.0
        %v4233 = vmax.f32 %v4229, 0.0
        %vm4234 = vcmask 72704
        %4235 = vst.msk [vmem:[%s253] sm:$0xff] %vm4234, %v4232
        %4236 = vst.msk [vmem:[%s253 + $0x8] sm:$0xff] %vm4234, %v4233
        %p4237 = scmp.lt.s32.totalorder %s18, 1
        %s4238 = scalar_select %p4237, %s18, 1
        %s4239 = smul.addr %s4238, 2
        %s4240 = smul.addr %s4239, 8
        %s4241 = scalar_lea.vmem %s5, %s4240
        // Predicated region
        $region49: #{resnet_forward.1} parent=39 // pred_check
          %p4242 = pneg %p146
        $region50: #{resnet_forward.1} parent=39 // pred_check_branch
          %4244 = sbr.rel (%p4242) target = $region52
        $region51: #{resnet_forward.1} parent=39 // pred_region
          _
        $region52: #{resnet_forward.1} parent=39 // pred_fallthru
          _
      $region40: #{resnet_forward.1} parent=5 // pred_fallthru
        _
      %p4245 = scmp.le.s32.totalorder 2, %s13
      // Predicated region
      $region53: #{resnet_forward.1} parent=5 // pred_check
        %p4246 = pneg %p4245
      $region54: #{resnet_forward.1} parent=5 // pred_check_branch
        %4248 = sbr.rel (%p4246) target = $region56
      $region55: #{resnet_forward.1} parent=5 // pred_region
        %s4249 = ssub.s32 %s13, 2
        // Predicated region
        $region57: #{resnet_forward.1} parent=55 // pred_check
          %p4250 = pneg %p152
        $region58: #{resnet_forward.1} parent=55 // pred_check_branch
          %4252 = sbr.rel (%p4250) target = $region60
        $region59: #{resnet_forward.1} parent=55 // pred_region
          %p4253 = scmp.lt.s32.totalorder %s19, 1
          %s4254 = scalar_select %p4253, %s19, 1
          %s4255 = smul.addr %s4254, 2
          %s4256 = smul.addr %s4255, 8
          %s4257 = scalar_lea.vmem %s5, %s4256
        $region60: #{resnet_forward.1} parent=55 // pred_fallthru
          _
      $region56: #{resnet_forward.1} parent=5 // pred_fallthru
        _
    $region6: #{resnet_forward.1} parent=1 // loop_footer
      %s17 = sadd.s32 1, %s13
    $region7: #{resnet_forward.1} parent=1 // loop_footer_branch
      %12 = sbr.rel target = $region3
    $region8: #{resnet_forward.1} parent=1 // loop_exit
      _
    %4258 = vsyncpa [#allocation3], 1
    %s4259 = scalar_lea.sflag [#allocation3], 1
    %4260 = vsyncpa %s4259, 1
    %4261 = vsyncpa [#allocation5], 1

</llo_original>
